<compile_context>
chip_gen: v7x
topology: tpu7x:2x2x1
jax: 0.10.0
libtpu: 0.0.40
codegen_flags: <defaults>
</compile_context>

<pallas_src>
import jax
import jax.numpy as jnp
from jax import lax
from jax.experimental import pallas as pl
from jax.experimental.pallas import tpu as pltpu

TB = 32         # default batch tile (multiple of 8)
W_PAD = 32      # image width 28 padded to 32 (conv1 im2col lane group)


# ---------------------------------------------------------------------------
# Fused kernel: conv1 -> pool+relu -> conv2 -> pool+relu -> fc1+relu
#               -> fc2 -> masked log_softmax, all on one batch tile.
# ---------------------------------------------------------------------------
def _net_kernel(x_ref, s1_ref, b1_ref, c1_ref, t2_ref, b2_ref, c2_ref,
                g_ref, bf1_ref, wf2_ref, bf2_ref, o_ref):
    f32 = jnp.float32
    tb = x_ref.shape[1]
    assert tb % 8 == 0  # H-pool row-pair max relies on whole (8,128) row groups

    # ---- conv1: single matmul over H-im2col'd windows (rows=(y,b), lanes=x*10+co)
    a = x_ref[...].reshape(24 * tb, 5 * W_PAD)                     # (24*tb, 160)
    z1 = jnp.dot(a, s1_ref[...], preferred_element_type=f32)      # (24*tb, 240)
    z1 = z1 + b1_ref[...]                                          # bias tiled over lanes

    # ---- 2x2 max-pool + relu: H via sublane row-pair max, W via one merged
    #      0/1-selection matmul (even half in lanes [0,128), odd in [128,256)).
    z1 = z1.reshape(12, 2, tb, 240)
    py1 = jnp.maximum(z1[:, 0], z1[:, 1]).reshape(12 * tb, 240)
    hc1 = jnp.dot(py1, c1_ref[...], preferred_element_type=f32)    # (12*tb, 256)
    h1 = jnp.maximum(jnp.maximum(hc1[:, :128], hc1[:, 128:]), 0.0)
    h1 = h1.reshape(12, tb, 128)                                   # lanes >=120 are 0

    # ---- conv2 (dropout2d: identity in eval): 5 accumulated matmuls, K=128
    z2 = None
    for i in range(5):
        a2 = h1[i:i + 8].reshape(8 * tb, 128)
        p = jnp.dot(a2, t2_ref[i], preferred_element_type=f32)     # (8*tb, 160)
        z2 = p if z2 is None else z2 + p
    z2 = z2 + b2_ref[...]

    z2 = z2.reshape(4, 2, tb, 160)
    py2 = jnp.maximum(z2[:, 0], z2[:, 1]).reshape(4 * tb, 160)
    hc2 = jnp.dot(py2, c2_ref[...], preferred_element_type=f32)    # (4*tb, 256)
    h2 = jnp.maximum(jnp.maximum(hc2[:, :128], hc2[:, 128:]), 0.0)
    h2 = h2.reshape(4, tb, 128)                                    # lanes >=80 are 0

    # ---- fc1 (+relu): contraction over y4 as 4 accumulated (tb,128)x(128,128)
    z3 = None
    for y in range(4):
        p = jnp.dot(h2[y], g_ref[y], preferred_element_type=f32)   # (tb, 128)
        z3 = p if z3 is None else z3 + p
    h3 = jnp.maximum(z3 + bf1_ref[...], 0.0)          # lanes >= 50 stay exactly 0
    # F.dropout(training=False): identity.

    # ---- fc2 + log_softmax over the 10 valid lanes (rest are padding)
    z4 = jnp.dot(h3, wf2_ref[...], preferred_element_type=f32) + bf2_ref[...]
    col = lax.broadcasted_iota(jnp.int32, z4.shape, 1)
    valid = col < 10
    m = jnp.max(jnp.where(valid, z4, jnp.float32(-1e30)), axis=-1, keepdims=True)
    e = jnp.where(valid, jnp.exp(z4 - m), 0.0)
    lse = jnp.log(jnp.sum(e, axis=-1, keepdims=True))
    o_ref[...] = (z4 - m) - lse                       # only first 10 lanes meaningful


# ---------------------------------------------------------------------------
# Trace-time weight preprocessing (tiny; pure XLA glue on the weights only)
# ---------------------------------------------------------------------------
def _pool_select(n_out_cols, n_ch):
    """0/1 matrices picking the even / odd x columns of a (x*ch) lane layout."""
    f32 = jnp.float32
    xin = jnp.arange(2 * n_out_cols)
    k = jnp.arange(n_out_cols)
    eye = jnp.eye(n_ch, dtype=f32)
    mats = []
    for p in (0, 1):
        sel = (xin[:, None] == (2 * k[None, :] + p)).astype(f32)       # (2n, n)
        mats.append((sel[:, None, :, None] * eye[None, :, None, :])
                    .reshape(2 * n_out_cols * n_ch, n_out_cols * n_ch))
    return jnp.stack(mats)                                             # (2,2n*ch,n*ch)


def _pool_select_merged(n_out_cols, n_ch):
    """Merged even|odd selection: (2n*ch, 256); each half zero-padded to 128 lanes."""
    sel = _pool_select(n_out_cols, n_ch)                  # (2, 2n*ch, n*ch)
    nc = n_out_cols * n_ch
    sel = jnp.pad(sel, ((0, 0), (0, 0), (0, 128 - nc)))   # (2, 2n*ch, 128)
    return jnp.concatenate([sel[0], sel[1]], axis=1)      # (2n*ch, 256)


def _prepare_weights(params):
    f32 = jnp.float32
    w1 = params["conv1_w"].astype(f32)   # (10,1,5,5)
    b1 = params["conv1_b"].astype(f32)
    w2 = params["conv2_w"].astype(f32)   # (20,10,5,5)
    b2 = params["conv2_b"].astype(f32)
    wf1 = params["fc1_w"].astype(f32)    # (50,320)
    bf1 = params["fc1_b"].astype(f32)
    wf2 = params["fc2_w"].astype(f32)    # (10,50)
    bf2 = params["fc2_b"].astype(f32)

    # conv1 banded matrices, stacked along K: S[i*32+w, xo*10+co] = w1[co,0,i,w-xo]
    w1t = jnp.transpose(w1[:, 0], (1, 2, 0))                    # (i, j, co)
    j1 = jnp.arange(W_PAD)[:, None] - jnp.arange(24)[None, :]   # (32,24)
    m1 = ((j1 >= 0) & (j1 < 5)).astype(f32)
    s1 = w1t[:, jnp.clip(j1, 0, 4), :] * m1[None, :, :, None]   # (5,32,24,10)
    s1 = s1.reshape(5 * W_PAD, 240)                             # (160, 240)
    b1l = jnp.tile(b1, 24).reshape(1, 240)

    c1sel = _pool_select_merged(12, 10)       # (240, 256)
    c2sel = _pool_select_merged(4, 20)        # (160, 256)

    # conv2 banded matrices T[i]: (128, 160); T[i][x1*10+ci, xo*20+co] = w2[co,ci,i,x1-xo]
    # (K padded 120 -> 128 with zero rows to match the 128-lane pooled activations).
    w2t = jnp.transpose(w2, (2, 3, 1, 0))                       # (i, j, ci, co)
    j2 = jnp.arange(12)[:, None] - jnp.arange(8)[None, :]       # (12,8)
    m2 = ((j2 >= 0) & (j2 < 5)).astype(f32)
    t2 = w2t[:, jnp.clip(j2, 0, 4), :, :] * m2[None, :, :, None, None]  # (5,12,8,10,20)
    t2 = jnp.transpose(t2, (0, 1, 3, 2, 4)).reshape(5, 120, 160)
    t2 = jnp.pad(t2, ((0, 0), (0, 128 - 120), (0, 0)))          # (5, 128, 160)
    b2l = jnp.tile(b2, 8).reshape(1, 160)

    # fc1: pre-permute so the NCHW .view(-1,320) flatten matches the kernel's
    # (y4, x4*20+co) activation layout; pad K 80->128 and N 50->128.
    g = wf1.reshape(50, 20, 4, 4)                               # (n, co, y4, x4)
    g = jnp.transpose(g, (2, 3, 1, 0)).reshape(4, 80, 50)       # (y4, x4*20+co, n)
    g = jnp.pad(g, ((0, 0), (0, 128 - 80), (0, 128 - 50)))      # (4, 128, 128)
    bf1p = jnp.pad(bf1, (0, 128 - 50)).reshape(1, 128)

    wf2p = jnp.pad(wf2.T, ((0, 128 - 50), (0, 128 - 10)))       # (128,128)
    bf2p = jnp.pad(bf2, (0, 128 - 10)).reshape(1, 128)

    return s1, b1l, c1sel, t2, b2l, c2sel, g, bf1p, wf2p, bf2p


# ---------------------------------------------------------------------------
# Forward
# ---------------------------------------------------------------------------
def net_forward(params, x_nchw, *, batch_tile=TB):
    B = x_nchw.shape[0]
    assert x_nchw.shape[1:] == (1, 28, 28), "fc1(320) implies 1x28x28 inputs"

    # Batch tile: multiple of 8 (H-pool vreg-select trick depends on it); shrink
    # for small batches and force >= 2 grid steps so v7x's 2 TCs both run.
    bt = max(8, (int(batch_tile) // 8) * 8)
    while bt > 8 and pl.cdiv(B, bt) < 2:
        bt = max(8, ((bt // 2) // 8) * 8)
    assert bt % 8 == 0
    n_steps = max(2, pl.cdiv(B, bt))
    bp = n_steps * bt

    # Layout glue on the (tiny) input only:
    # (B,1,28,28) -> pad -> H-im2col stack of 5 shifted windows -> (24, bp, 160)
    x = x_nchw[:, 0].astype(jnp.float32)                         # (B, 28, 28)
    x = jnp.pad(x, ((0, bp - B), (0, 0), (0, W_PAD - 28)))       # (bp, 28, 32)
    xs = jnp.stack([x[:, i:i + 24, :] for i in range(5)], axis=2)  # (bp, 24, 5, 32)
    xs = jnp.transpose(xs, (1, 0, 2, 3)).reshape(24, bp, 5 * W_PAD)

    weights = _prepare_weights(params)

    def _w_spec(arr):
        return pl.BlockSpec(arr.shape, lambda g, _nd=arr.ndim: (0,) * _nd)

    in_specs = [pl.BlockSpec((24, bt, 5 * W_PAD), lambda g: (0, g, 0))]
    in_specs += [_w_spec(w) for w in weights]

    out = pl.pallas_call(
        _net_kernel,
        out_shape=jax.ShapeDtypeStruct((bp, 128), jnp.float32),
        grid=(bp // bt,),
        in_specs=in_specs,
        out_specs=pl.BlockSpec((bt, 128), lambda g: (g, 0)),
        compiler_params=pltpu.CompilerParams(
            dimension_semantics=("parallel",),
            vmem_limit_bytes=48 * 1024 * 1024),
    )(xs, *weights)
    return out[:B, :10]


# ---------------------------------------------------------------------------
# Pure-JAX reference (eval-mode semantics) and synthetic parameters
# ---------------------------------------------------------------------------
def net_reference(params, x_nchw):
    hp = lax.Precision.HIGHEST
    x = x_nchw.astype(jnp.float32)
    y = lax.conv_general_dilated(x, params["conv1_w"], (1, 1), "VALID",
                                 dimension_numbers=("NCHW", "OIHW", "NCHW"),
                                 precision=hp) + params["conv1_b"][None, :, None, None]
    B = y.shape[0]
    y = jnp.maximum(y.reshape(B, 10, 12, 2, 12, 2).max(axis=(3, 5)), 0.0)
    y = lax.conv_general_dilated(y, params["conv2_w"], (1, 1), "VALID",
                                 dimension_numbers=("NCHW", "OIHW", "NCHW"),
                                 precision=hp) + params["conv2_b"][None, :, None, None]
    y = jnp.maximum(y.reshape(B, 20, 4, 2, 4, 2).max(axis=(3, 5)), 0.0)
    y = y.reshape(B, 320)
    y = jnp.maximum(jnp.dot(y, params["fc1_w"].T, precision=hp) + params["fc1_b"], 0.0)
    z = jnp.dot(y, params["fc2_w"].T, precision=hp) + params["fc2_b"]
    return jax.nn.log_softmax(z, axis=-1)


def init_params(key):
    ks = jax.random.split(key, 8)
    return {
        "conv1_w": 0.1 * jax.random.normal(ks[0], (10, 1, 5, 5), jnp.float32),
        "conv1_b": 0.1 * jax.random.normal(ks[1], (10,), jnp.float32),
        "conv2_w": 0.1 * jax.random.normal(ks[2], (20, 10, 5, 5), jnp.float32),
        "conv2_b": 0.1 * jax.random.normal(ks[3], (20,), jnp.float32),
        "fc1_w": 0.1 * jax.random.normal(ks[4], (50, 320), jnp.float32),
        "fc1_b": 0.1 * jax.random.normal(ks[5], (50,), jnp.float32),
        "fc2_w": 0.1 * jax.random.normal(ks[6], (10, 50), jnp.float32),
        "fc2_b": 0.1 * jax.random.normal(ks[7], (10,), jnp.float32),
    }


if __name__ == "__main__":
    key = jax.random.PRNGKey(0)
    pkey, xkey, xkey2 = jax.random.split(key, 3)
    params = init_params(pkey)

    # Small-shape check (B=2): tile shrinks to 8, grid padded to 2 "parallel" steps.
    x = jax.random.normal(xkey, (2, 1, 28, 28), jnp.float32)
    out = jax.block_until_ready(jax.jit(net_forward)(params, x))
    assert out.shape == (2, 10)
    assert bool(jnp.all(jnp.isfinite(out)))
    ref = net_reference(params, x)
    assert bool(jnp.allclose(out, ref, rtol=2e-3, atol=2e-3)), \
        float(jnp.max(jnp.abs(out - ref)))

    # Larger batch exercises the 32-image tile / multi-step grid fast path.
    x_big = jax.random.normal(xkey2, (64, 1, 28, 28), jnp.float32)
    out_big = jax.block_until_ready(jax.jit(net_forward)(params, x_big))
    ref_big = net_reference(params, x_big)
    assert out_big.shape == (64, 10)
    assert bool(jnp.allclose(out_big, ref_big, rtol=2e-3, atol=2e-3)), \
        float(jnp.max(jnp.abs(out_big - ref_big)))

    print("KERNEL_OK")
</pallas_src>

<mosaic_0001>
module attributes {stable_mosaic.version = 11 : i64} {
  func.func @_net_kernel(%arg0: i32, %arg1: memref<24x8x160xf32, #tpu.memory_space<vmem>>, %arg2: memref<160x240xf32, #tpu.memory_space<vmem>>, %arg3: memref<1x240xf32, #tpu.memory_space<vmem>>, %arg4: memref<240x256xf32, #tpu.memory_space<vmem>>, %arg5: memref<5x128x160xf32, #tpu.memory_space<vmem>>, %arg6: memref<1x160xf32, #tpu.memory_space<vmem>>, %arg7: memref<160x256xf32, #tpu.memory_space<vmem>>, %arg8: memref<4x128x128xf32, #tpu.memory_space<vmem>>, %arg9: memref<1x128xf32, #tpu.memory_space<vmem>>, %arg10: memref<128x128xf32, #tpu.memory_space<vmem>>, %arg11: memref<1x128xf32, #tpu.memory_space<vmem>>, %arg12: memref<8x128xf32, #tpu.memory_space<vmem>>) attributes {dimension_semantics = [#tpu.dimension_semantics<parallel>], iteration_bounds = array<i64: 2>, scalar_prefetch = 0 : i64, scratch_operands = 0 : i64, tpu.core_type = #tpu.core_type<tc>, window_params = [{transform_indices = @transform_0, window_bounds = array<i64: 24, 8, 160>}, {pipeline_mode = #tpu.pipeline_mode<synchronous>, transform_indices = @transform_1, window_bounds = array<i64: 160, 240>}, {pipeline_mode = #tpu.pipeline_mode<synchronous>, transform_indices = @transform_2, window_bounds = array<i64: 1, 240>}, {pipeline_mode = #tpu.pipeline_mode<synchronous>, transform_indices = @transform_3, window_bounds = array<i64: 240, 256>}, {pipeline_mode = #tpu.pipeline_mode<synchronous>, transform_indices = @transform_4, window_bounds = array<i64: 5, 128, 160>}, {pipeline_mode = #tpu.pipeline_mode<synchronous>, transform_indices = @transform_5, window_bounds = array<i64: 1, 160>}, {pipeline_mode = #tpu.pipeline_mode<synchronous>, transform_indices = @transform_6, window_bounds = array<i64: 160, 256>}, {pipeline_mode = #tpu.pipeline_mode<synchronous>, transform_indices = @transform_7, window_bounds = array<i64: 4, 128, 128>}, {pipeline_mode = #tpu.pipeline_mode<synchronous>, transform_indices = @transform_8, window_bounds = array<i64: 1, 128>}, {pipeline_mode = #tpu.pipeline_mode<synchronous>, transform_indices = @transform_9, window_bounds = array<i64: 128, 128>}, {pipeline_mode = #tpu.pipeline_mode<synchronous>, transform_indices = @transform_10, window_bounds = array<i64: 1, 128>}, {transform_indices = @transform_11, window_bounds = array<i64: 8, 128>}]} {
    %c0 = arith.constant 0 : index
    %c0_0 = arith.constant 0 : index
    %c0_1 = arith.constant 0 : index
    %0 = vector.load %arg1[%c0, %c0_0, %c0_1] : memref<24x8x160xf32, #tpu.memory_space<vmem>>, vector<24x8x160xf32>
    %1 = vector.shape_cast %0 : vector<24x8x160xf32> to vector<192x160xf32>
    %c0_2 = arith.constant 0 : index
    %c0_3 = arith.constant 0 : index
    %2 = vector.load %arg2[%c0_2, %c0_3] : memref<160x240xf32, #tpu.memory_space<vmem>>, vector<160x240xf32>
    %cst = arith.constant dense<0.000000e+00> : vector<192x240xf32>
    %3 = tpu.matmul %1, %2, %cst {dimension_numbers = #tpu.dot_dimension_numbers<[1], [0], [0], [1], [0, 0, 1, 1], [], []>} : vector<192x160xf32>, vector<160x240xf32>, vector<192x240xf32> -> vector<192x240xf32>
    %c0_4 = arith.constant 0 : index
    %c0_5 = arith.constant 0 : index
    %4 = vector.load %arg3[%c0_4, %c0_5] : memref<1x240xf32, #tpu.memory_space<vmem>>, vector<1x240xf32>
    %5 = vector.broadcast %4 : vector<1x240xf32> to vector<192x240xf32>
    %6 = arith.addf %3, %5 : vector<192x240xf32>
    %7 = vector.shape_cast %6 : vector<192x240xf32> to vector<12x2x8x240xf32>
    %8 = vector.extract_strided_slice %7 {offsets = [0, 0, 0, 0], sizes = [12, 1, 8, 240], strides = [1, 1, 1, 1]} : vector<12x2x8x240xf32> to vector<12x1x8x240xf32>
    %9 = vector.shape_cast %8 : vector<12x1x8x240xf32> to vector<12x8x240xf32>
    %10 = vector.extract_strided_slice %7 {offsets = [0, 1, 0, 0], sizes = [12, 1, 8, 240], strides = [1, 1, 1, 1]} : vector<12x2x8x240xf32> to vector<12x1x8x240xf32>
    %11 = vector.shape_cast %10 : vector<12x1x8x240xf32> to vector<12x8x240xf32>
    %12 = arith.maximumf %9, %11 : vector<12x8x240xf32>
    %13 = vector.shape_cast %12 : vector<12x8x240xf32> to vector<96x240xf32>
    %c0_6 = arith.constant 0 : index
    %c0_7 = arith.constant 0 : index
    %14 = vector.load %arg4[%c0_6, %c0_7] : memref<240x256xf32, #tpu.memory_space<vmem>>, vector<240x256xf32>
    %cst_8 = arith.constant dense<0.000000e+00> : vector<96x256xf32>
    %15 = tpu.matmul %13, %14, %cst_8 {dimension_numbers = #tpu.dot_dimension_numbers<[1], [0], [0], [1], [0, 0, 1, 1], [], []>} : vector<96x240xf32>, vector<240x256xf32>, vector<96x256xf32> -> vector<96x256xf32>
    %16 = vector.extract_strided_slice %15 {offsets = [0, 0], sizes = [96, 128], strides = [1, 1]} : vector<96x256xf32> to vector<96x128xf32>
    %17 = vector.extract_strided_slice %15 {offsets = [0, 128], sizes = [96, 128], strides = [1, 1]} : vector<96x256xf32> to vector<96x128xf32>
    %18 = arith.maximumf %16, %17 : vector<96x128xf32>
    %cst_9 = arith.constant 0.000000e+00 : f32
    %19 = vector.broadcast %cst_9 : f32 to vector<96x128xf32>
    %20 = arith.maximumf %18, %19 : vector<96x128xf32>
    %21 = vector.shape_cast %20 : vector<96x128xf32> to vector<12x8x128xf32>
    %22 = vector.extract_strided_slice %21 {offsets = [0, 0, 0], sizes = [8, 8, 128], strides = [1, 1, 1]} : vector<12x8x128xf32> to vector<8x8x128xf32>
    %23 = vector.shape_cast %22 : vector<8x8x128xf32> to vector<64x128xf32>
    %c0_10 = arith.constant 0 : index
    %c0_11 = arith.constant 0 : index
    %c0_12 = arith.constant 0 : index
    %24 = vector.load %arg5[%c0_10, %c0_11, %c0_12] : memref<5x128x160xf32, #tpu.memory_space<vmem>>, vector<1x128x160xf32>
    %25 = vector.shape_cast %24 : vector<1x128x160xf32> to vector<128x160xf32>
    %cst_13 = arith.constant dense<0.000000e+00> : vector<64x160xf32>
    %26 = tpu.matmul %23, %25, %cst_13 {dimension_numbers = #tpu.dot_dimension_numbers<[1], [0], [0], [1], [0, 0, 1, 1], [], []>} : vector<64x128xf32>, vector<128x160xf32>, vector<64x160xf32> -> vector<64x160xf32>
    %27 = vector.extract_strided_slice %21 {offsets = [1, 0, 0], sizes = [8, 8, 128], strides = [1, 1, 1]} : vector<12x8x128xf32> to vector<8x8x128xf32>
    %28 = vector.shape_cast %27 : vector<8x8x128xf32> to vector<64x128xf32>
    %c1 = arith.constant 1 : index
    %c0_14 = arith.constant 0 : index
    %c0_15 = arith.constant 0 : index
    %29 = vector.load %arg5[%c1, %c0_14, %c0_15] : memref<5x128x160xf32, #tpu.memory_space<vmem>>, vector<1x128x160xf32>
    %30 = vector.shape_cast %29 : vector<1x128x160xf32> to vector<128x160xf32>
    %cst_16 = arith.constant dense<0.000000e+00> : vector<64x160xf32>
    %31 = tpu.matmul %28, %30, %cst_16 {dimension_numbers = #tpu.dot_dimension_numbers<[1], [0], [0], [1], [0, 0, 1, 1], [], []>} : vector<64x128xf32>, vector<128x160xf32>, vector<64x160xf32> -> vector<64x160xf32>
    %32 = arith.addf %26, %31 : vector<64x160xf32>
    %33 = vector.extract_strided_slice %21 {offsets = [2, 0, 0], sizes = [8, 8, 128], strides = [1, 1, 1]} : vector<12x8x128xf32> to vector<8x8x128xf32>
    %34 = vector.shape_cast %33 : vector<8x8x128xf32> to vector<64x128xf32>
    %c2 = arith.constant 2 : index
    %c0_17 = arith.constant 0 : index
    %c0_18 = arith.constant 0 : index
    %35 = vector.load %arg5[%c2, %c0_17, %c0_18] : memref<5x128x160xf32, #tpu.memory_space<vmem>>, vector<1x128x160xf32>
    %36 = vector.shape_cast %35 : vector<1x128x160xf32> to vector<128x160xf32>
    %cst_19 = arith.constant dense<0.000000e+00> : vector<64x160xf32>
    %37 = tpu.matmul %34, %36, %cst_19 {dimension_numbers = #tpu.dot_dimension_numbers<[1], [0], [0], [1], [0, 0, 1, 1], [], []>} : vector<64x128xf32>, vector<128x160xf32>, vector<64x160xf32> -> vector<64x160xf32>
    %38 = arith.addf %32, %37 : vector<64x160xf32>
    %39 = vector.extract_strided_slice %21 {offsets = [3, 0, 0], sizes = [8, 8, 128], strides = [1, 1, 1]} : vector<12x8x128xf32> to vector<8x8x128xf32>
    %40 = vector.shape_cast %39 : vector<8x8x128xf32> to vector<64x128xf32>
    %c3 = arith.constant 3 : index
    %c0_20 = arith.constant 0 : index
    %c0_21 = arith.constant 0 : index
    %41 = vector.load %arg5[%c3, %c0_20, %c0_21] : memref<5x128x160xf32, #tpu.memory_space<vmem>>, vector<1x128x160xf32>
    %42 = vector.shape_cast %41 : vector<1x128x160xf32> to vector<128x160xf32>
    %cst_22 = arith.constant dense<0.000000e+00> : vector<64x160xf32>
    %43 = tpu.matmul %40, %42, %cst_22 {dimension_numbers = #tpu.dot_dimension_numbers<[1], [0], [0], [1], [0, 0, 1, 1], [], []>} : vector<64x128xf32>, vector<128x160xf32>, vector<64x160xf32> -> vector<64x160xf32>
    %44 = arith.addf %38, %43 : vector<64x160xf32>
    %45 = vector.extract_strided_slice %21 {offsets = [4, 0, 0], sizes = [8, 8, 128], strides = [1, 1, 1]} : vector<12x8x128xf32> to vector<8x8x128xf32>
    %46 = vector.shape_cast %45 : vector<8x8x128xf32> to vector<64x128xf32>
    %c4 = arith.constant 4 : index
    %c0_23 = arith.constant 0 : index
    %c0_24 = arith.constant 0 : index
    %47 = vector.load %arg5[%c4, %c0_23, %c0_24] : memref<5x128x160xf32, #tpu.memory_space<vmem>>, vector<1x128x160xf32>
    %48 = vector.shape_cast %47 : vector<1x128x160xf32> to vector<128x160xf32>
    %cst_25 = arith.constant dense<0.000000e+00> : vector<64x160xf32>
    %49 = tpu.matmul %46, %48, %cst_25 {dimension_numbers = #tpu.dot_dimension_numbers<[1], [0], [0], [1], [0, 0, 1, 1], [], []>} : vector<64x128xf32>, vector<128x160xf32>, vector<64x160xf32> -> vector<64x160xf32>
    %50 = arith.addf %44, %49 : vector<64x160xf32>
    %c0_26 = arith.constant 0 : index
    %c0_27 = arith.constant 0 : index
    %51 = vector.load %arg6[%c0_26, %c0_27] : memref<1x160xf32, #tpu.memory_space<vmem>>, vector<1x160xf32>
    %52 = vector.broadcast %51 : vector<1x160xf32> to vector<64x160xf32>
    %53 = arith.addf %50, %52 : vector<64x160xf32>
    %54 = vector.shape_cast %53 : vector<64x160xf32> to vector<4x2x8x160xf32>
    %55 = vector.extract_strided_slice %54 {offsets = [0, 0, 0, 0], sizes = [4, 1, 8, 160], strides = [1, 1, 1, 1]} : vector<4x2x8x160xf32> to vector<4x1x8x160xf32>
    %56 = vector.shape_cast %55 : vector<4x1x8x160xf32> to vector<4x8x160xf32>
    %57 = vector.extract_strided_slice %54 {offsets = [0, 1, 0, 0], sizes = [4, 1, 8, 160], strides = [1, 1, 1, 1]} : vector<4x2x8x160xf32> to vector<4x1x8x160xf32>
    %58 = vector.shape_cast %57 : vector<4x1x8x160xf32> to vector<4x8x160xf32>
    %59 = arith.maximumf %56, %58 : vector<4x8x160xf32>
    %60 = vector.shape_cast %59 : vector<4x8x160xf32> to vector<32x160xf32>
    %c0_28 = arith.constant 0 : index
    %c0_29 = arith.constant 0 : index
    %61 = vector.load %arg7[%c0_28, %c0_29] : memref<160x256xf32, #tpu.memory_space<vmem>>, vector<160x256xf32>
    %cst_30 = arith.constant dense<0.000000e+00> : vector<32x256xf32>
    %62 = tpu.matmul %60, %61, %cst_30 {dimension_numbers = #tpu.dot_dimension_numbers<[1], [0], [0], [1], [0, 0, 1, 1], [], []>} : vector<32x160xf32>, vector<160x256xf32>, vector<32x256xf32> -> vector<32x256xf32>
    %63 = vector.extract_strided_slice %62 {offsets = [0, 0], sizes = [32, 128], strides = [1, 1]} : vector<32x256xf32> to vector<32x128xf32>
    %64 = vector.extract_strided_slice %62 {offsets = [0, 128], sizes = [32, 128], strides = [1, 1]} : vector<32x256xf32> to vector<32x128xf32>
    %65 = arith.maximumf %63, %64 : vector<32x128xf32>
    %cst_31 = arith.constant 0.000000e+00 : f32
    %66 = vector.broadcast %cst_31 : f32 to vector<32x128xf32>
    %67 = arith.maximumf %65, %66 : vector<32x128xf32>
    %68 = vector.shape_cast %67 : vector<32x128xf32> to vector<4x8x128xf32>
    %69 = vector.extract_strided_slice %68 {offsets = [0, 0, 0], sizes = [1, 8, 128], strides = [1, 1, 1]} : vector<4x8x128xf32> to vector<1x8x128xf32>
    %70 = vector.shape_cast %69 : vector<1x8x128xf32> to vector<8x128xf32>
    %c0_32 = arith.constant 0 : index
    %c0_33 = arith.constant 0 : index
    %c0_34 = arith.constant 0 : index
    %71 = vector.load %arg8[%c0_32, %c0_33, %c0_34] : memref<4x128x128xf32, #tpu.memory_space<vmem>>, vector<1x128x128xf32>
    %72 = vector.shape_cast %71 : vector<1x128x128xf32> to vector<128x128xf32>
    %cst_35 = arith.constant dense<0.000000e+00> : vector<8x128xf32>
    %73 = tpu.matmul %70, %72, %cst_35 {dimension_numbers = #tpu.dot_dimension_numbers<[1], [0], [0], [1], [0, 0, 1, 1], [], []>} : vector<8x128xf32>, vector<128x128xf32>, vector<8x128xf32> -> vector<8x128xf32>
    %74 = vector.extract_strided_slice %68 {offsets = [1, 0, 0], sizes = [1, 8, 128], strides = [1, 1, 1]} : vector<4x8x128xf32> to vector<1x8x128xf32>
    %75 = vector.shape_cast %74 : vector<1x8x128xf32> to vector<8x128xf32>
    %c1_36 = arith.constant 1 : index
    %c0_37 = arith.constant 0 : index
    %c0_38 = arith.constant 0 : index
    %76 = vector.load %arg8[%c1_36, %c0_37, %c0_38] : memref<4x128x128xf32, #tpu.memory_space<vmem>>, vector<1x128x128xf32>
    %77 = vector.shape_cast %76 : vector<1x128x128xf32> to vector<128x128xf32>
    %cst_39 = arith.constant dense<0.000000e+00> : vector<8x128xf32>
    %78 = tpu.matmul %75, %77, %cst_39 {dimension_numbers = #tpu.dot_dimension_numbers<[1], [0], [0], [1], [0, 0, 1, 1], [], []>} : vector<8x128xf32>, vector<128x128xf32>, vector<8x128xf32> -> vector<8x128xf32>
    %79 = arith.addf %73, %78 : vector<8x128xf32>
    %80 = vector.extract_strided_slice %68 {offsets = [2, 0, 0], sizes = [1, 8, 128], strides = [1, 1, 1]} : vector<4x8x128xf32> to vector<1x8x128xf32>
    %81 = vector.shape_cast %80 : vector<1x8x128xf32> to vector<8x128xf32>
    %c2_40 = arith.constant 2 : index
    %c0_41 = arith.constant 0 : index
    %c0_42 = arith.constant 0 : index
    %82 = vector.load %arg8[%c2_40, %c0_41, %c0_42] : memref<4x128x128xf32, #tpu.memory_space<vmem>>, vector<1x128x128xf32>
    %83 = vector.shape_cast %82 : vector<1x128x128xf32> to vector<128x128xf32>
    %cst_43 = arith.constant dense<0.000000e+00> : vector<8x128xf32>
    %84 = tpu.matmul %81, %83, %cst_43 {dimension_numbers = #tpu.dot_dimension_numbers<[1], [0], [0], [1], [0, 0, 1, 1], [], []>} : vector<8x128xf32>, vector<128x128xf32>, vector<8x128xf32> -> vector<8x128xf32>
    %85 = arith.addf %79, %84 : vector<8x128xf32>
    %86 = vector.extract_strided_slice %68 {offsets = [3, 0, 0], sizes = [1, 8, 128], strides = [1, 1, 1]} : vector<4x8x128xf32> to vector<1x8x128xf32>
    %87 = vector.shape_cast %86 : vector<1x8x128xf32> to vector<8x128xf32>
    %c3_44 = arith.constant 3 : index
    %c0_45 = arith.constant 0 : index
    %c0_46 = arith.constant 0 : index
    %88 = vector.load %arg8[%c3_44, %c0_45, %c0_46] : memref<4x128x128xf32, #tpu.memory_space<vmem>>, vector<1x128x128xf32>
    %89 = vector.shape_cast %88 : vector<1x128x128xf32> to vector<128x128xf32>
    %cst_47 = arith.constant dense<0.000000e+00> : vector<8x128xf32>
    %90 = tpu.matmul %87, %89, %cst_47 {dimension_numbers = #tpu.dot_dimension_numbers<[1], [0], [0], [1], [0, 0, 1, 1], [], []>} : vector<8x128xf32>, vector<128x128xf32>, vector<8x128xf32> -> vector<8x128xf32>
    %91 = arith.addf %85, %90 : vector<8x128xf32>
    %c0_48 = arith.constant 0 : index
    %c0_49 = arith.constant 0 : index
    %92 = vector.load %arg9[%c0_48, %c0_49] : memref<1x128xf32, #tpu.memory_space<vmem>>, vector<1x128xf32>
    %93 = vector.broadcast %92 : vector<1x128xf32> to vector<8x128xf32>
    %94 = arith.addf %91, %93 : vector<8x128xf32>
    %cst_50 = arith.constant 0.000000e+00 : f32
    %95 = vector.broadcast %cst_50 : f32 to vector<8x128xf32>
    %96 = arith.maximumf %94, %95 : vector<8x128xf32>
    %c0_51 = arith.constant 0 : index
    %c0_52 = arith.constant 0 : index
    %97 = vector.load %arg10[%c0_51, %c0_52] : memref<128x128xf32, #tpu.memory_space<vmem>>, vector<128x128xf32>
    %cst_53 = arith.constant dense<0.000000e+00> : vector<8x128xf32>
    %98 = tpu.matmul %96, %97, %cst_53 {dimension_numbers = #tpu.dot_dimension_numbers<[1], [0], [0], [1], [0, 0, 1, 1], [], []>} : vector<8x128xf32>, vector<128x128xf32>, vector<8x128xf32> -> vector<8x128xf32>
    %c0_54 = arith.constant 0 : index
    %c0_55 = arith.constant 0 : index
    %99 = vector.load %arg11[%c0_54, %c0_55] : memref<1x128xf32, #tpu.memory_space<vmem>>, vector<1x128xf32>
    %100 = vector.broadcast %99 : vector<1x128xf32> to vector<8x128xf32>
    %101 = arith.addf %98, %100 : vector<8x128xf32>
    %102 = tpu.iota {dimensions = array<i32: 1>} : vector<8x128xi32>
    %c10_i32 = arith.constant 10 : i32
    %103 = vector.broadcast %c10_i32 : i32 to vector<8x128xi32>
    %104 = arith.cmpi slt, %102, %103 : vector<8x128xi32>
    %cst_56 = arith.constant -1.000000e+30 : f32
    %105 = vector.broadcast %cst_56 : f32 to vector<8x128xf32>
    %106 = arith.select %104, %101, %105 : vector<8x128xi1>, vector<8x128xf32>
    %cst_57 = arith.constant dense<0xFF800000> : vector<8xf32>
    %107 = vector.multi_reduction <maximumf>, %106, %cst_57 [1] : vector<8x128xf32> to vector<8xf32>
    %108 = vector.shape_cast %107 : vector<8xf32> to vector<8x1xf32>
    %109 = vector.broadcast %108 : vector<8x1xf32> to vector<8x128xf32>
    %110 = arith.subf %101, %109 : vector<8x128xf32>
    %111 = math.exp %110 : vector<8x128xf32>
    %cst_58 = arith.constant 0.000000e+00 : f32
    %112 = vector.broadcast %cst_58 : f32 to vector<8x128xf32>
    %113 = arith.select %104, %111, %112 : vector<8x128xi1>, vector<8x128xf32>
    %cst_59 = arith.constant dense<0.000000e+00> : vector<8xf32>
    %114 = vector.multi_reduction <add>, %113, %cst_59 [1] : vector<8x128xf32> to vector<8xf32>
    %115 = vector.shape_cast %114 : vector<8xf32> to vector<8x1xf32>
    %116 = math.log %115 : vector<8x1xf32>
    %117 = vector.broadcast %108 : vector<8x1xf32> to vector<8x128xf32>
    %118 = arith.subf %101, %117 : vector<8x128xf32>
    %119 = vector.broadcast %116 : vector<8x1xf32> to vector<8x128xf32>
    %120 = arith.subf %118, %119 : vector<8x128xf32>
    %c0_60 = arith.constant 0 : index
    %c0_61 = arith.constant 0 : index
    %121 = vector.load %arg12[%c0_60, %c0_61] : memref<8x128xf32, #tpu.memory_space<vmem>>, vector<8x128xf32>
    tpu.vector_store %arg12[%c0_60, %c0_61], %120 {strides = array<i32>} : memref<8x128xf32, #tpu.memory_space<vmem>>, vector<8x128xf32>,
    return
  }
  func.func @transform_0(%arg0: i32) -> (i32, i32, i32) {
    %c0_i32 = arith.constant 0 : i32
    %c0_i32_0 = arith.constant 0 : i32
    %c0_i32_1 = arith.constant 0 : i32
    return %c0_i32, %arg0, %c0_i32_0 : i32, i32, i32
  }
  func.func @transform_1(%arg0: i32) -> (i32, i32) {
    %c0_i32 = arith.constant 0 : i32
    %c0_i32_0 = arith.constant 0 : i32
    %c0_i32_1 = arith.constant 0 : i32
    return %c0_i32, %c0_i32_0 : i32, i32
  }
  func.func @transform_2(%arg0: i32) -> (i32, i32) {
    %c0_i32 = arith.constant 0 : i32
    %c0_i32_0 = arith.constant 0 : i32
    %c0_i32_1 = arith.constant 0 : i32
    return %c0_i32, %c0_i32_0 : i32, i32
  }
  func.func @transform_3(%arg0: i32) -> (i32, i32) {
    %c0_i32 = arith.constant 0 : i32
    %c0_i32_0 = arith.constant 0 : i32
    %c0_i32_1 = arith.constant 0 : i32
    return %c0_i32, %c0_i32_0 : i32, i32
  }
  func.func @transform_4(%arg0: i32) -> (i32, i32, i32) {
    %c0_i32 = arith.constant 0 : i32
    %c0_i32_0 = arith.constant 0 : i32
    %c0_i32_1 = arith.constant 0 : i32
    %c0_i32_2 = arith.constant 0 : i32
    return %c0_i32, %c0_i32_0, %c0_i32_1 : i32, i32, i32
  }
  func.func @transform_5(%arg0: i32) -> (i32, i32) {
    %c0_i32 = arith.constant 0 : i32
    %c0_i32_0 = arith.constant 0 : i32
    %c0_i32_1 = arith.constant 0 : i32
    return %c0_i32, %c0_i32_0 : i32, i32
  }
  func.func @transform_6(%arg0: i32) -> (i32, i32) {
    %c0_i32 = arith.constant 0 : i32
    %c0_i32_0 = arith.constant 0 : i32
    %c0_i32_1 = arith.constant 0 : i32
    return %c0_i32, %c0_i32_0 : i32, i32
  }
  func.func @transform_7(%arg0: i32) -> (i32, i32, i32) {
    %c0_i32 = arith.constant 0 : i32
    %c0_i32_0 = arith.constant 0 : i32
    %c0_i32_1 = arith.constant 0 : i32
    %c0_i32_2 = arith.constant 0 : i32
    return %c0_i32, %c0_i32_0, %c0_i32_1 : i32, i32, i32
  }
  func.func @transform_8(%arg0: i32) -> (i32, i32) {
    %c0_i32 = arith.constant 0 : i32
    %c0_i32_0 = arith.constant 0 : i32
    %c0_i32_1 = arith.constant 0 : i32
    return %c0_i32, %c0_i32_0 : i32, i32
  }
  func.func @transform_9(%arg0: i32) -> (i32, i32) {
    %c0_i32 = arith.constant 0 : i32
    %c0_i32_0 = arith.constant 0 : i32
    %c0_i32_1 = arith.constant 0 : i32
    return %c0_i32, %c0_i32_0 : i32, i32
  }
  func.func @transform_10(%arg0: i32) -> (i32, i32) {
    %c0_i32 = arith.constant 0 : i32
    %c0_i32_0 = arith.constant 0 : i32
    %c0_i32_1 = arith.constant 0 : i32
    return %c0_i32, %c0_i32_0 : i32, i32
  }
  func.func @transform_11(%arg0: i32) -> (i32, i32) {
    %c0_i32 = arith.constant 0 : i32
    %c0_i32_0 = arith.constant 0 : i32
    return %arg0, %c0_i32 : i32, i32
  }
}

</mosaic_0001>

<llo_original>
// kernel: tile.13
$region0: #{tile.13}
  #allocation0 [shape = 's32[1]{0}', space=sflag, size = 0x4, scoped, tag = 'scoped memory for tile.13']
  %s0 = inlined_call_operand.vmem [shape: f32[10], index: 0, kind: input, shape index: {}]
  %s1 = inlined_call_operand.vmem [shape: f32[24,10], index: 1, kind: output, shape index: {}]
  // Predicated region
  $region2: #{tile.13} parent=0 // pred_check
    _
  $region3: #{tile.13} parent=0 // pred_check_branch
    %3 = sbr.rel (0) target = $region5
  $region4: #{tile.13} parent=0 // pred_region
    _
  $region5: #{tile.13} parent=0 // pred_fallthru
    _
  %v4 = vld [vmem:[%s0] ss:$0 sm:$0xff]
  %5 = vst [vmem:[%s1] sm:$0xff] %v4
  %s6 = scalar_lea.vmem %s1, 8
  %7 = vst [vmem:[%s6] sm:$0xff] %v4
  %s8 = scalar_lea.vmem %s1, 16
  %9 = vst [vmem:[%s8] sm:$0xff] %v4

// kernel: tile.14
$region0: #{tile.14}
  %s0 = inlined_call_operand.vmem [shape: f32[24,10], index: 0, kind: input, shape index: {}]
  %s1 = inlined_call_operand.vmem [shape: f32[1,240], index: 1, kind: output, shape index: {}]
  $region1: #{tile.14} parent=0
    #allocation0 [shape = 'u8[8192]{0}', space=vmem, size = 0x2000, scoped, tag = 'scoped mem for output reshape']
    %v2 = vld [vmem:[%s0] sm:$0x1]
    %vm3 = vcmask 80896
    %4 = vst.msk [vmem:[#allocation0] sm:$0x1] %vm3, %v2
    %s5 = scalar_lea.vmem %s0, 12
    %v6 = vld [vmem:[%s5] sm:$0x1]
    %s7 = scalar_lea.vmem %s0, 12
    %v8 = vld [vmem:[%s7] sm:$0x1]
    %vm9 = vcmask 64512
    %v10 = vsel %vm9, %v8, %v6
    %11 = vrot.lane.b32.xlu0 %v10, 120
    %v12 = vpop.permute.xlu0 %11
    %vm13 = vcmask 15360
    %s14 = scalar_lea.vmem [#allocation0], 8
    %15 = vst.msk [vmem:[%s14] sm:$0x1] %vm13, %v12
    %vm16 = vcmask 1048512
    %17 = vst.msk [vmem:[#allocation0] sm:$0x1] %vm16, %v12
    %s18 = scalar_lea.vmem %s0, 11
    %v19 = vld [vmem:[%s18] sm:$0x1]
    %20 = vrot.lane.b32.xlu0 %v19, 110
    %v21 = vpop.permute.xlu0 %20
    %vm22 = vcmask 982896
    %23 = vst.msk [vmem:[#allocation0] sm:$0x1] %vm22, %v21
    %s24 = scalar_lea.vmem %s0, 23
    %v25 = vld [vmem:[%s24] sm:$0x1]
    %26 = vrot.lane.b32.xlu0 %v25, 102
    %v27 = vpop.permute.xlu0 %26
    %vm28 = vcmask 917296
    %s29 = scalar_lea.vmem [#allocation0], 8
    %30 = vst.msk [vmem:[%s29] sm:$0x1] %vm28, %v27
    %s31 = scalar_lea.vmem %s0, 10
    %v32 = vld [vmem:[%s31] sm:$0x1]
    %33 = vrot.lane.b32.xlu0 %v32, 100
    %v34 = vpop.permute.xlu0 %33
    %vm35 = vcmask 900896
    %36 = vst.msk [vmem:[#allocation0] sm:$0x1] %vm35, %v34
    %s37 = scalar_lea.vmem %s0, 22
    %v38 = vld [vmem:[%s37] sm:$0x1]
    %39 = vrot.lane.b32.xlu0 %v38, 92
    %v40 = vpop.permute.xlu0 %39
    %vm41 = vcmask 835296
    %s42 = scalar_lea.vmem [#allocation0], 8
    %43 = vst.msk [vmem:[%s42] sm:$0x1] %vm41, %v40
    %s44 = scalar_lea.vmem %s0, 9
    %v45 = vld [vmem:[%s44] sm:$0x1]
    %46 = vrot.lane.b32.xlu0 %v45, 90
    %v47 = vpop.permute.xlu0 %46
    %vm48 = vcmask 818896
    %49 = vst.msk [vmem:[#allocation0] sm:$0x1] %vm48, %v47
    %s50 = scalar_lea.vmem %s0, 21
    %v51 = vld [vmem:[%s50] sm:$0x1]
    %52 = vrot.lane.b32.xlu0 %v51, 82
    %v53 = vpop.permute.xlu0 %52
    %vm54 = vcmask 753296
    %s55 = scalar_lea.vmem [#allocation0], 8
    %56 = vst.msk [vmem:[%s55] sm:$0x1] %vm54, %v53
    %s57 = scalar_lea.vmem %s0, 8
    %v58 = vld [vmem:[%s57] sm:$0x1]
    %59 = vrot.lane.b32.xlu0 %v58, 80
    %v60 = vpop.permute.xlu0 %59
    %vm61 = vcmask 736896
    %62 = vst.msk [vmem:[#allocation0] sm:$0x1] %vm61, %v60
    %s63 = scalar_lea.vmem %s0, 20
    %v64 = vld [vmem:[%s63] sm:$0x1]
    %65 = vrot.lane.b32.xlu0 %v64, 72
    %v66 = vpop.permute.xlu0 %65
    %vm67 = vcmask 671296
    %s68 = scalar_lea.vmem [#allocation0], 8
    %69 = vst.msk [vmem:[%s68] sm:$0x1] %vm67, %v66
    %s70 = scalar_lea.vmem %s0, 7
    %v71 = vld [vmem:[%s70] sm:$0x1]
    %72 = vrot.lane.b32.xlu0 %v71, 70
    %v73 = vpop.permute.xlu0 %72
    %vm74 = vcmask 654896
    %75 = vst.msk [vmem:[#allocation0] sm:$0x1] %vm74, %v73
    %s76 = scalar_lea.vmem %s0, 19
    %v77 = vld [vmem:[%s76] sm:$0x1]
    %78 = vrot.lane.b32.xlu0 %v77, 62
    %v79 = vpop.permute.xlu0 %78
    %vm80 = vcmask 589296
    %s81 = scalar_lea.vmem [#allocation0], 8
    %82 = vst.msk [vmem:[%s81] sm:$0x1] %vm80, %v79
    %s83 = scalar_lea.vmem %s0, 6
    %v84 = vld [vmem:[%s83] sm:$0x1]
    %85 = vrot.lane.b32.xlu0 %v84, 60
    %v86 = vpop.permute.xlu0 %85
    %vm87 = vcmask 572896
    %88 = vst.msk [vmem:[#allocation0] sm:$0x1] %vm87, %v86
    %s89 = scalar_lea.vmem %s0, 18
    %v90 = vld [vmem:[%s89] sm:$0x1]
    %91 = vrot.lane.b32.xlu0 %v90, 52
    %v92 = vpop.permute.xlu0 %91
    %vm93 = vcmask 507296
    %s94 = scalar_lea.vmem [#allocation0], 8
    %95 = vst.msk [vmem:[%s94] sm:$0x1] %vm93, %v92
    %s96 = scalar_lea.vmem %s0, 5
    %v97 = vld [vmem:[%s96] sm:$0x1]
    %98 = vrot.lane.b32.xlu0 %v97, 50
    %v99 = vpop.permute.xlu0 %98
    %vm100 = vcmask 490896
    %101 = vst.msk [vmem:[#allocation0] sm:$0x1] %vm100, %v99
    %s102 = scalar_lea.vmem %s0, 17
    %v103 = vld [vmem:[%s102] sm:$0x1]
    %104 = vrot.lane.b32.xlu0 %v103, 42
    %v105 = vpop.permute.xlu0 %104
    %vm106 = vcmask 425296
    %s107 = scalar_lea.vmem [#allocation0], 8
    %108 = vst.msk [vmem:[%s107] sm:$0x1] %vm106, %v105
    %s109 = scalar_lea.vmem %s0, 4
    %v110 = vld [vmem:[%s109] sm:$0x1]
    %111 = vrot.lane.b32.xlu0 %v110, 40
    %v112 = vpop.permute.xlu0 %111
    %vm113 = vcmask 408896
    %114 = vst.msk [vmem:[#allocation0] sm:$0x1] %vm113, %v112
    %s115 = scalar_lea.vmem %s0, 16
    %v116 = vld [vmem:[%s115] sm:$0x1]
    %117 = vrot.lane.b32.xlu0 %v116, 32
    %v118 = vpop.permute.xlu0 %117
    %vm119 = vcmask 343296
    %s120 = scalar_lea.vmem [#allocation0], 8
    %121 = vst.msk [vmem:[%s120] sm:$0x1] %vm119, %v118
    %s122 = scalar_lea.vmem %s0, 3
    %v123 = vld [vmem:[%s122] sm:$0x1]
    %124 = vrot.lane.b32.xlu0 %v123, 30
    %v125 = vpop.permute.xlu0 %124
    %vm126 = vcmask 326896
    %127 = vst.msk [vmem:[#allocation0] sm:$0x1] %vm126, %v125
    %s128 = scalar_lea.vmem %s0, 15
    %v129 = vld [vmem:[%s128] sm:$0x1]
    %130 = vrot.lane.b32.xlu0 %v129, 22
    %v131 = vpop.permute.xlu0 %130
    %vm132 = vcmask 261296
    %s133 = scalar_lea.vmem [#allocation0], 8
    %134 = vst.msk [vmem:[%s133] sm:$0x1] %vm132, %v131
    %s135 = scalar_lea.vmem %s0, 2
    %v136 = vld [vmem:[%s135] sm:$0x1]
    %137 = vrot.lane.b32.xlu0 %v136, 20
    %v138 = vpop.permute.xlu0 %137
    %vm139 = vcmask 244896
    %140 = vst.msk [vmem:[#allocation0] sm:$0x1] %vm139, %v138
    %s141 = scalar_lea.vmem %s0, 14
    %v142 = vld [vmem:[%s141] sm:$0x1]
    %143 = vrot.lane.b32.xlu0 %v142, 12
    %v144 = vpop.permute.xlu0 %143
    %vm145 = vcmask 179296
    %s146 = scalar_lea.vmem [#allocation0], 8
    %147 = vst.msk [vmem:[%s146] sm:$0x1] %vm145, %v144
    %s148 = scalar_lea.vmem %s0, 1
    %v149 = vld [vmem:[%s148] sm:$0x1]
    %150 = vrot.lane.b32.xlu0 %v149, 10
    %v151 = vpop.permute.xlu0 %150
    %vm152 = vcmask 162896
    %153 = vst.msk [vmem:[#allocation0] sm:$0x1] %vm152, %v151
    %s154 = scalar_lea.vmem %s0, 13
    %v155 = vld [vmem:[%s154] sm:$0x1]
    %156 = vrot.lane.b32.xlu0 %v155, 2
    %v157 = vpop.permute.xlu0 %156
    %vm158 = vcmask 97296
    %s159 = scalar_lea.vmem [#allocation0], 8
    %160 = vst.msk [vmem:[%s159] sm:$0x1] %vm158, %v157
    %s162 = sshllo.u32 0, 1
    %v164 = vld [vmem:[#allocation0] sm:%s162]
    %s165 = sshllo.u32 0, 1
    %166 = vst [vmem:[%s1] sm:%s165] %v164
    %s167 = scalar_lea.vmem [#allocation0], 8
    %v168 = vld [vmem:[%s167] sm:%s162]
    %s169 = sshllo.u32 0, 1
    %s170 = scalar_lea.vmem %s1, 1
    %171 = vst [vmem:[%s170] sm:%s169] %v168

// kernel: tile.18
$region0: #{tile.18}
  #allocation0 [shape = 's32[1]{0}', space=sflag, size = 0x4, scoped, tag = 'scoped memory for tile.18']
  %s0 = inlined_call_operand.vmem [shape: f32[20], index: 0, kind: input, shape index: {}]
  %s1 = inlined_call_operand.vmem [shape: f32[8,20], index: 1, kind: output, shape index: {}]
  // Predicated region
  $region2: #{tile.18} parent=0 // pred_check
    _
  $region3: #{tile.18} parent=0 // pred_check_branch
    %3 = sbr.rel (0) target = $region5
  $region4: #{tile.18} parent=0 // pred_region
    _
  $region5: #{tile.18} parent=0 // pred_fallthru
    _
  %v4 = vld [vmem:[%s0] ss:$0 sm:$0xff]
  %5 = vst [vmem:[%s1] sm:$0xff] %v4

// kernel: tile.19
$region0: #{tile.19}
  %s0 = inlined_call_operand.vmem [shape: f32[8,20], index: 0, kind: input, shape index: {}]
  %s1 = inlined_call_operand.vmem [shape: f32[1,160], index: 1, kind: output, shape index: {}]
  $region1: #{tile.19} parent=0
    #allocation0 [shape = 'u8[8192]{0}', space=vmem, size = 0x2000, scoped, tag = 'scoped mem for output reshape']
    %v2 = vld [vmem:[%s0] sm:$0x1]
    %vm3 = vcmask 162816
    %4 = vst.msk [vmem:[#allocation0] sm:$0x1] %vm3, %v2
    %s5 = scalar_lea.vmem %s0, 6
    %v6 = vld [vmem:[%s5] sm:$0x1]
    %s7 = scalar_lea.vmem %s0, 6
    %v8 = vld [vmem:[%s7] sm:$0x1]
    %vm9 = vcmask 64512
    %v10 = vsel %vm9, %v8, %v6
    %11 = vrot.lane.b32.xlu0 %v10, 120
    %v12 = vpop.permute.xlu0 %11
    %vm13 = vcmask 97280
    %s14 = scalar_lea.vmem [#allocation0], 8
    %15 = vst.msk [vmem:[%s14] sm:$0x1] %vm13, %v12
    %vm16 = vcmask 1048512
    %17 = vst.msk [vmem:[#allocation0] sm:$0x1] %vm16, %v12
    %s18 = scalar_lea.vmem %s0, 5
    %v19 = vld [vmem:[%s18] sm:$0x1]
    %20 = vrot.lane.b32.xlu0 %v19, 100
    %v21 = vpop.permute.xlu0 %20
    %vm22 = vcmask 982816
    %23 = vst.msk [vmem:[#allocation0] sm:$0x1] %vm22, %v21
    %s24 = scalar_lea.vmem %s0, 4
    %v25 = vld [vmem:[%s24] sm:$0x1]
    %26 = vrot.lane.b32.xlu0 %v25, 80
    %v27 = vpop.permute.xlu0 %26
    %vm28 = vcmask 818816
    %29 = vst.msk [vmem:[#allocation0] sm:$0x1] %vm28, %v27
    %s30 = scalar_lea.vmem %s0, 3
    %v31 = vld [vmem:[%s30] sm:$0x1]
    %32 = vrot.lane.b32.xlu0 %v31, 60
    %v33 = vpop.permute.xlu0 %32
    %vm34 = vcmask 654816
    %35 = vst.msk [vmem:[#allocation0] sm:$0x1] %vm34, %v33
    %s36 = scalar_lea.vmem %s0, 2
    %v37 = vld [vmem:[%s36] sm:$0x1]
    %38 = vrot.lane.b32.xlu0 %v37, 40
    %v39 = vpop.permute.xlu0 %38
    %vm40 = vcmask 490816
    %41 = vst.msk [vmem:[#allocation0] sm:$0x1] %vm40, %v39
    %s42 = scalar_lea.vmem %s0, 1
    %v43 = vld [vmem:[%s42] sm:$0x1]
    %44 = vrot.lane.b32.xlu0 %v43, 20
    %v45 = vpop.permute.xlu0 %44
    %vm46 = vcmask 326816
    %47 = vst.msk [vmem:[#allocation0] sm:$0x1] %vm46, %v45
    %s48 = scalar_lea.vmem %s0, 7
    %v49 = vld [vmem:[%s48] sm:$0x1]
    %50 = vrot.lane.b32.xlu0 %v49, 12
    %v51 = vpop.permute.xlu0 %50
    %vm52 = vcmask 261216
    %s53 = scalar_lea.vmem [#allocation0], 8
    %54 = vst.msk [vmem:[%s53] sm:$0x1] %vm52, %v51
    %s56 = sshllo.u32 0, 1
    %v58 = vld [vmem:[#allocation0] sm:%s56]
    %s59 = sshllo.u32 0, 1
    %60 = vst [vmem:[%s1] sm:%s59] %v58
    %s61 = scalar_lea.vmem [#allocation0], 8
    %v62 = vld [vmem:[%s61] sm:%s56]
    %s63 = sshllo.u32 0, 1
    %s64 = scalar_lea.vmem %s1, 1
    %65 = vst [vmem:[%s64] sm:%s63] %v62

// kernel: net_forward.1
$region0: #{net_forward.1}
  #allocation0 [shape = 'u32[]', space=smem, size = 0x4, offset = 0x4, fixed_abs, tag = 'smem constant byte address 0x4 - core index']
  #allocation1 [shape = 'u32[144,128]{1,0:T(1,128)}', space=vmem, size = 0x12000, scoped, tag = 'internal scratch']
  %s0 = inlined_call_operand.vmem [shape: f32[24,16,160], index: 0, kind: input, shape index: {}]
  %s1 = inlined_call_operand.vmem [shape: f32[160,240], index: 1, kind: input, shape index: {}]
  %s2 = inlined_call_operand.vmem [shape: f32[1,240], index: 2, kind: input, shape index: {}]
  %s3 = inlined_call_operand.vmem [shape: f32[240,256], index: 3, kind: input, shape index: {}]
  %s4 = inlined_call_operand.vmem [shape: f32[5,128,160], index: 4, kind: input, shape index: {}]
  %s5 = inlined_call_operand.vmem [shape: f32[1,160], index: 5, kind: input, shape index: {}]
  %s6 = inlined_call_operand.vmem [shape: f32[160,256], index: 6, kind: input, shape index: {}]
  %s7 = inlined_call_operand.vmem [shape: f32[4,128,128], index: 7, kind: input, shape index: {}]
  %s8 = inlined_call_operand.vmem [shape: f32[1,128], index: 8, kind: input, shape index: {}]
  %s9 = inlined_call_operand.vmem [shape: f32[128,128], index: 9, kind: input, shape index: {}]
  %s10 = inlined_call_operand.vmem [shape: f32[1,128], index: 10, kind: input, shape index: {}]
  %s11 = inlined_call_operand.vmem [shape: f32[16,128], index: 11, kind: output, shape index: {}]
  %s12 = sld [smem:[#allocation0]]
  $region100: #{net_forward.1} parent=0
    _
  %s14 = ssub.s32 1, %s12
  %s15 = scalar_select 0, %s14, %s12
  $region1: #{net_forward.1} parent=0
    #allocation2 [shape = 'u8[393216]{0}', space=vmem, size = 0x60000, scoped, tag = 'input window, operand 0']
    loop: start=0, step=1, limit=4
    $region2: #{net_forward.1} parent=1 // loop_pre_header
      _
    $region3: #{net_forward.1} parent=1 // loop_header
      %s17 = sphi 0, %s21
      %p18 = scmp.ge.s32.totalorder %s17, 4
      %s27 = sphi 0, %s29
      %s30 = sphi 0, %s27
      %s31 = sphi 0, %s30
      %s47 = sphi 0, %s31
      %s51 = sphi 0, %s51
      %s53 = sphi 0, %s51
      %s54 = sphi 0, %s53
      %s68 = sphi 0, %s54
      %s72 = sphi 0, %s72
      %s74 = sphi 0, %s72
      %s75 = sphi 0, %s74
      %s89 = sphi 0, %s75
      %s93 = sphi 0, %s93
      %s95 = sphi 0, %s93
      %s96 = sphi 0, %s95
      %s110 = sphi 0, %s96
      %s114 = sphi 0, %s114
      %s116 = sphi 0, %s114
      %s117 = sphi 0, %s116
      %s131 = sphi 0, %s117
      %s135 = sphi 0, %s135
      %s137 = sphi 0, %s135
      %s138 = sphi 0, %s137
      %s152 = sphi 0, %s138
      %s156 = sphi 0, %s156
      %s158 = sphi 0, %s156
      %s159 = sphi 0, %s158
      %s173 = sphi 0, %s159
      %s177 = sphi 0, %s177
      %s179 = sphi 0, %s177
      %s180 = sphi 0, %s179
      %s194 = sphi 0, %s180
      %s198 = sphi 0, %s198
      %s200 = sphi 0, %s198
      %s201 = sphi 0, %s200
      %s215 = sphi 0, %s201
      %s219 = sphi 0, %s219
      %s221 = sphi 0, %s219
      %s222 = sphi 0, %s221
      %s236 = sphi 0, %s222
      %s240 = sphi 0, %s240
      %s242 = sphi 0, %s240
      %s243 = sphi 0, %s242
      %s257 = sphi 0, %s243
      %s263 = sphi 0, %s265
      %s266 = sphi 0, %s263
      %s267 = sphi 0, %s266
      %s283 = sphi 0, %s267
    $region4: #{net_forward.1} parent=1 // loop_header_branch
      %20 = sbr.rel (%p18) target = $region8
    $region5: #{net_forward.1} parent=1 // loop_body
      %s22 = ssub.s32 %s17, 1
      %s23 = ssub.s32 %s17, 2
      %s24 = sadd.s32 %s17, 1
      %s25 = ssub.s32 %s17, %s24
      %p26 = scmp.eq.s32.totalorder %s25, 0
      %s28 = sadd.s32 %s27, 1
      %s29 = scalar_select %p26, %s27, %s28
      %p32 = pneg %p26
      %p33 = scmp.eq.s32.totalorder %s17, 1
      %p34 = por %p32, %p33
      %p35 = scmp.ne.s32.totalorder %s27, %s30
      %p36 = scmp.eq.s32.totalorder %s17, 0
      %p37 = por %p35, %p36
      %p38 = scmp.ne.s32.totalorder %s27, %s30
      %p39 = scmp.eq.s32.totalorder %s22, 1
      %p40 = por %p38, %p39
      %p41 = scmp.ne.s32.totalorder %s30, %s31
      %p42 = scmp.eq.s32.totalorder %s22, 0
      %p43 = por %p41, %p42
      %p44 = scmp.ne.s32.totalorder %s30, %s31
      %p45 = scmp.eq.s32.totalorder %s23, 1
      %p46 = por %p44, %p45
      %p48 = scmp.ne.s32.totalorder %s31, %s47
      %p49 = scmp.eq.s32.totalorder %s23, 0
      %p50 = por %p48, %p49
      %s52 = sadd.s32 %s51, 1
      %p55 = scmp.eq.s32.totalorder %s17, 1
      %p56 = scmp.ne.s32.totalorder %s51, %s53
      %p57 = scmp.eq.s32.totalorder %s17, 0
      %p58 = por %p56, %p57
      %p59 = scmp.ne.s32.totalorder %s51, %s53
      %p60 = scmp.eq.s32.totalorder %s22, 1
      %p61 = por %p59, %p60
      %p62 = scmp.ne.s32.totalorder %s53, %s54
      %p63 = scmp.eq.s32.totalorder %s22, 0
      %p64 = por %p62, %p63
      %p65 = scmp.ne.s32.totalorder %s53, %s54
      %p66 = scmp.eq.s32.totalorder %s23, 1
      %p67 = por %p65, %p66
      %p69 = scmp.ne.s32.totalorder %s54, %s68
      %p70 = scmp.eq.s32.totalorder %s23, 0
      %p71 = por %p69, %p70
      %s73 = sadd.s32 %s72, 1
      %p76 = scmp.eq.s32.totalorder %s17, 1
      %p77 = scmp.ne.s32.totalorder %s72, %s74
      %p78 = scmp.eq.s32.totalorder %s17, 0
      %p79 = por %p77, %p78
      %p80 = scmp.ne.s32.totalorder %s72, %s74
      %p81 = scmp.eq.s32.totalorder %s22, 1
      %p82 = por %p80, %p81
      %p83 = scmp.ne.s32.totalorder %s74, %s75
      %p84 = scmp.eq.s32.totalorder %s22, 0
      %p85 = por %p83, %p84
      %p86 = scmp.ne.s32.totalorder %s74, %s75
      %p87 = scmp.eq.s32.totalorder %s23, 1
      %p88 = por %p86, %p87
      %p90 = scmp.ne.s32.totalorder %s75, %s89
      %p91 = scmp.eq.s32.totalorder %s23, 0
      %p92 = por %p90, %p91
      %s94 = sadd.s32 %s93, 1
      %p97 = scmp.eq.s32.totalorder %s17, 1
      %p98 = scmp.ne.s32.totalorder %s93, %s95
      %p99 = scmp.eq.s32.totalorder %s17, 0
      %p100 = por %p98, %p99
      %p101 = scmp.ne.s32.totalorder %s93, %s95
      %p102 = scmp.eq.s32.totalorder %s22, 1
      %p103 = por %p101, %p102
      %p104 = scmp.ne.s32.totalorder %s95, %s96
      %p105 = scmp.eq.s32.totalorder %s22, 0
      %p106 = por %p104, %p105
      %p107 = scmp.ne.s32.totalorder %s95, %s96
      %p108 = scmp.eq.s32.totalorder %s23, 1
      %p109 = por %p107, %p108
      %p111 = scmp.ne.s32.totalorder %s96, %s110
      %p112 = scmp.eq.s32.totalorder %s23, 0
      %p113 = por %p111, %p112
      %s115 = sadd.s32 %s114, 1
      %p118 = scmp.eq.s32.totalorder %s17, 1
      %p119 = scmp.ne.s32.totalorder %s114, %s116
      %p120 = scmp.eq.s32.totalorder %s17, 0
      %p121 = por %p119, %p120
      %p122 = scmp.ne.s32.totalorder %s114, %s116
      %p123 = scmp.eq.s32.totalorder %s22, 1
      %p124 = por %p122, %p123
      %p125 = scmp.ne.s32.totalorder %s116, %s117
      %p126 = scmp.eq.s32.totalorder %s22, 0
      %p127 = por %p125, %p126
      %p128 = scmp.ne.s32.totalorder %s116, %s117
      %p129 = scmp.eq.s32.totalorder %s23, 1
      %p130 = por %p128, %p129
      %p132 = scmp.ne.s32.totalorder %s117, %s131
      %p133 = scmp.eq.s32.totalorder %s23, 0
      %p134 = por %p132, %p133
      %s136 = sadd.s32 %s135, 1
      %p139 = scmp.eq.s32.totalorder %s17, 1
      %p140 = scmp.ne.s32.totalorder %s135, %s137
      %p141 = scmp.eq.s32.totalorder %s17, 0
      %p142 = por %p140, %p141
      %p143 = scmp.ne.s32.totalorder %s135, %s137
      %p144 = scmp.eq.s32.totalorder %s22, 1
      %p145 = por %p143, %p144
      %p146 = scmp.ne.s32.totalorder %s137, %s138
      %p147 = scmp.eq.s32.totalorder %s22, 0
      %p148 = por %p146, %p147
      %p149 = scmp.ne.s32.totalorder %s137, %s138
      %p150 = scmp.eq.s32.totalorder %s23, 1
      %p151 = por %p149, %p150
      %p153 = scmp.ne.s32.totalorder %s138, %s152
      %p154 = scmp.eq.s32.totalorder %s23, 0
      %p155 = por %p153, %p154
      %s157 = sadd.s32 %s156, 1
      %p160 = scmp.eq.s32.totalorder %s17, 1
      %p161 = scmp.ne.s32.totalorder %s156, %s158
      %p162 = scmp.eq.s32.totalorder %s17, 0
      %p163 = por %p161, %p162
      %p164 = scmp.ne.s32.totalorder %s156, %s158
      %p165 = scmp.eq.s32.totalorder %s22, 1
      %p166 = por %p164, %p165
      %p167 = scmp.ne.s32.totalorder %s158, %s159
      %p168 = scmp.eq.s32.totalorder %s22, 0
      %p169 = por %p167, %p168
      %p170 = scmp.ne.s32.totalorder %s158, %s159
      %p171 = scmp.eq.s32.totalorder %s23, 1
      %p172 = por %p170, %p171
      %p174 = scmp.ne.s32.totalorder %s159, %s173
      %p175 = scmp.eq.s32.totalorder %s23, 0
      %p176 = por %p174, %p175
      %s178 = sadd.s32 %s177, 1
      %p181 = scmp.eq.s32.totalorder %s17, 1
      %p182 = scmp.ne.s32.totalorder %s177, %s179
      %p183 = scmp.eq.s32.totalorder %s17, 0
      %p184 = por %p182, %p183
      %p185 = scmp.ne.s32.totalorder %s177, %s179
      %p186 = scmp.eq.s32.totalorder %s22, 1
      %p187 = por %p185, %p186
      %p188 = scmp.ne.s32.totalorder %s179, %s180
      %p189 = scmp.eq.s32.totalorder %s22, 0
      %p190 = por %p188, %p189
      %p191 = scmp.ne.s32.totalorder %s179, %s180
      %p192 = scmp.eq.s32.totalorder %s23, 1
      %p193 = por %p191, %p192
      %p195 = scmp.ne.s32.totalorder %s180, %s194
      %p196 = scmp.eq.s32.totalorder %s23, 0
      %p197 = por %p195, %p196
      %s199 = sadd.s32 %s198, 1
      %p202 = scmp.eq.s32.totalorder %s17, 1
      %p203 = scmp.ne.s32.totalorder %s198, %s200
      %p204 = scmp.eq.s32.totalorder %s17, 0
      %p205 = por %p203, %p204
      %p206 = scmp.ne.s32.totalorder %s198, %s200
      %p207 = scmp.eq.s32.totalorder %s22, 1
      %p208 = por %p206, %p207
      %p209 = scmp.ne.s32.totalorder %s200, %s201
      %p210 = scmp.eq.s32.totalorder %s22, 0
      %p211 = por %p209, %p210
      %p212 = scmp.ne.s32.totalorder %s200, %s201
      %p213 = scmp.eq.s32.totalorder %s23, 1
      %p214 = por %p212, %p213
      %p216 = scmp.ne.s32.totalorder %s201, %s215
      %p217 = scmp.eq.s32.totalorder %s23, 0
      %p218 = por %p216, %p217
      %s220 = sadd.s32 %s219, 1
      %p223 = scmp.eq.s32.totalorder %s17, 1
      %p224 = scmp.ne.s32.totalorder %s219, %s221
      %p225 = scmp.eq.s32.totalorder %s17, 0
      %p226 = por %p224, %p225
      %p227 = scmp.ne.s32.totalorder %s219, %s221
      %p228 = scmp.eq.s32.totalorder %s22, 1
      %p229 = por %p227, %p228
      %p230 = scmp.ne.s32.totalorder %s221, %s222
      %p231 = scmp.eq.s32.totalorder %s22, 0
      %p232 = por %p230, %p231
      %p233 = scmp.ne.s32.totalorder %s221, %s222
      %p234 = scmp.eq.s32.totalorder %s23, 1
      %p235 = por %p233, %p234
      %p237 = scmp.ne.s32.totalorder %s222, %s236
      %p238 = scmp.eq.s32.totalorder %s23, 0
      %p239 = por %p237, %p238
      %s241 = sadd.s32 %s240, 1
      %p244 = scmp.eq.s32.totalorder %s17, 1
      %p245 = scmp.ne.s32.totalorder %s240, %s242
      %p246 = scmp.eq.s32.totalorder %s17, 0
      %p247 = por %p245, %p246
      %p248 = scmp.ne.s32.totalorder %s240, %s242
      %p249 = scmp.eq.s32.totalorder %s22, 1
      %p250 = por %p248, %p249
      %p251 = scmp.ne.s32.totalorder %s242, %s243
      %p252 = scmp.eq.s32.totalorder %s22, 0
      %p253 = por %p251, %p252
      %p254 = scmp.ne.s32.totalorder %s242, %s243
      %p255 = scmp.eq.s32.totalorder %s23, 1
      %p256 = por %p254, %p255
      %p258 = scmp.ne.s32.totalorder %s243, %s257
      %p259 = scmp.eq.s32.totalorder %s23, 0
      %p260 = por %p258, %p259
      %s261 = ssub.s32 %s17, %s24
      %p262 = scmp.eq.s32.totalorder %s261, 0
      %s264 = sadd.s32 %s263, 1
      %s265 = scalar_select %p262, %s263, %s264
      %p268 = pneg %p262
      %p269 = scmp.eq.s32.totalorder %s17, 1
      %p270 = por %p268, %p269
      %p271 = scmp.ne.s32.totalorder %s263, %s266
      %p272 = scmp.eq.s32.totalorder %s17, 0
      %p273 = por %p271, %p272
      %p274 = scmp.ne.s32.totalorder %s263, %s266
      %p275 = scmp.eq.s32.totalorder %s22, 1
      %p276 = por %p274, %p275
      %p277 = scmp.ne.s32.totalorder %s266, %s267
      %p278 = scmp.eq.s32.totalorder %s22, 0
      %p279 = por %p277, %p278
      %p280 = scmp.ne.s32.totalorder %s266, %s267
      %p281 = scmp.eq.s32.totalorder %s23, 1
      %p282 = por %p280, %p281
      %p284 = scmp.ne.s32.totalorder %s267, %s283
      %p285 = scmp.eq.s32.totalorder %s23, 0
      %p286 = por %p284, %p285
      %p287 = scmp.le.s32.totalorder 1, %s17
      %p288 = scmp.lt.s32.totalorder %s17, 3
      %p289 = pnand %p287, %p288
      %p290 = pneg %p289
      // Predicated region
      $region9: #{net_forward.1} parent=5 // pred_check
        _
      $region10: #{net_forward.1} parent=5 // pred_check_branch
        %292 = sbr.rel (%p289) target = $region12
      $region11: #{net_forward.1} parent=5 // pred_region
        %s293 = ssub.s32 %s17, 1
        // Predicated region
        $region13: #{net_forward.1} parent=11 // pred_check
          %p294 = pneg %p64
        $region14: #{net_forward.1} parent=11 // pred_check_branch
          %296 = sbr.rel (%p294) target = $region16
        $region15: #{net_forward.1} parent=11 // pred_region
          _
        $region16: #{net_forward.1} parent=11 // pred_fallthru
          _
        // Predicated region
        $region17: #{net_forward.1} parent=11 // pred_check
          %p297 = pneg %p85
        $region18: #{net_forward.1} parent=11 // pred_check_branch
          %299 = sbr.rel (%p297) target = $region20
        $region19: #{net_forward.1} parent=11 // pred_region
          _
        $region20: #{net_forward.1} parent=11 // pred_fallthru
          _
        // Predicated region
        $region21: #{net_forward.1} parent=11 // pred_check
          %p300 = pneg %p106
        $region22: #{net_forward.1} parent=11 // pred_check_branch
          %302 = sbr.rel (%p300) target = $region24
        $region23: #{net_forward.1} parent=11 // pred_region
          _
        $region24: #{net_forward.1} parent=11 // pred_fallthru
          _
        // Predicated region
        $region25: #{net_forward.1} parent=11 // pred_check
          %p303 = pneg %p127
        $region26: #{net_forward.1} parent=11 // pred_check_branch
          %305 = sbr.rel (%p303) target = $region28
        $region27: #{net_forward.1} parent=11 // pred_region
          _
        $region28: #{net_forward.1} parent=11 // pred_fallthru
          _
        // Predicated region
        $region29: #{net_forward.1} parent=11 // pred_check
          %p306 = pneg %p148
        $region30: #{net_forward.1} parent=11 // pred_check_branch
          %308 = sbr.rel (%p306) target = $region32
        $region31: #{net_forward.1} parent=11 // pred_region
          _
        $region32: #{net_forward.1} parent=11 // pred_fallthru
          _
        // Predicated region
        $region33: #{net_forward.1} parent=11 // pred_check
          %p309 = pneg %p169
        $region34: #{net_forward.1} parent=11 // pred_check_branch
          %311 = sbr.rel (%p309) target = $region36
        $region35: #{net_forward.1} parent=11 // pred_region
          _
        $region36: #{net_forward.1} parent=11 // pred_fallthru
          _
        // Predicated region
        $region37: #{net_forward.1} parent=11 // pred_check
          %p312 = pneg %p190
        $region38: #{net_forward.1} parent=11 // pred_check_branch
          %314 = sbr.rel (%p312) target = $region40
        $region39: #{net_forward.1} parent=11 // pred_region
          _
        $region40: #{net_forward.1} parent=11 // pred_fallthru
          _
        // Predicated region
        $region41: #{net_forward.1} parent=11 // pred_check
          %p315 = pneg %p211
        $region42: #{net_forward.1} parent=11 // pred_check_branch
          %317 = sbr.rel (%p315) target = $region44
        $region43: #{net_forward.1} parent=11 // pred_region
          _
        $region44: #{net_forward.1} parent=11 // pred_fallthru
          _
        // Predicated region
        $region45: #{net_forward.1} parent=11 // pred_check
          %p318 = pneg %p232
        $region46: #{net_forward.1} parent=11 // pred_check_branch
          %320 = sbr.rel (%p318) target = $region48
        $region47: #{net_forward.1} parent=11 // pred_region
          _
        $region48: #{net_forward.1} parent=11 // pred_fallthru
          _
        // Predicated region
        $region49: #{net_forward.1} parent=11 // pred_check
          %p321 = pneg %p253
        $region50: #{net_forward.1} parent=11 // pred_check_branch
          %323 = sbr.rel (%p321) target = $region52
        $region51: #{net_forward.1} parent=11 // pred_region
          _
        $region52: #{net_forward.1} parent=11 // pred_fallthru
          _
      $region12: #{net_forward.1} parent=5 // pred_fallthru
        _
      %p324 = scmp.lt.s32.totalorder %s17, 2
      // Predicated region
      $region53: #{net_forward.1} parent=5 // pred_check
        %p325 = pneg %p324
      $region54: #{net_forward.1} parent=5 // pred_check_branch
        %327 = sbr.rel (%p325) target = $region56
      $region55: #{net_forward.1} parent=5 // pred_region
        // Predicated region
        $region57: #{net_forward.1} parent=55 // pred_check
          %p328 = pneg %p37
        $region58: #{net_forward.1} parent=55 // pred_check_branch
          %330 = sbr.rel (%p328) target = $region60
        $region59: #{net_forward.1} parent=55 // pred_region
          %s331 = sand.u32 %s27, 1
          %s332 = sand.u32 %s27, 1
          %s333 = smul.addr %s332, 384
          %s334 = scalar_lea.vmem [#allocation2], %s333
          %s335 = smul.addr %s17, 2
          %s336 = smul.addr %s335, 8
          %s337 = scalar_lea.vmem %s0, %s336
          // Predicated region
          $region61: #{net_forward.1} parent=59 // pred_check
            _
          $region62: #{net_forward.1} parent=59 // pred_check_branch
            %339 = sbr.rel (0) target = $region64
          $region63: #{net_forward.1} parent=59 // pred_region
            // Predicated region
            $region65: #{net_forward.1} parent=63 // pred_check
              _
            $region66: #{net_forward.1} parent=63 // pred_check_branch
              %341 = sbr.rel (0) target = $region68
            $region67: #{net_forward.1} parent=63 // pred_region
              loop: start=0, step=1, limit=1
              $region69: #{net_forward.1} parent=67 // loop_pre_header
                _
              $region70: #{net_forward.1} parent=67 // loop_header
                %s343 = sphi 0, %s347
                %p344 = scmp.ge.s32.totalorder %s343, 1
                %s348 = sphi %s337, %s337
                %s349 = sphi %s334, %s334
              $region71: #{net_forward.1} parent=67 // loop_header_branch
                %346 = sbr.rel (%p344) target = $region75
              $region72: #{net_forward.1} parent=67 // loop_body
                %v350 = vld [vmem:[%s348] sm:$0xff]
                %351 = vst [vmem:[%s349] sm:$0xff] %v350
                %v352 = vld [vmem:[%s348 + $0x8] sm:$0xff]
                %353 = vst [vmem:[%s349 + $0x8] sm:$0xff] %v352
                %v354 = vld [vmem:[%s348 + $0x20] sm:$0xff]
                %355 = vst [vmem:[%s349 + $0x10] sm:$0xff] %v354
                %v356 = vld [vmem:[%s348 + $0x28] sm:$0xff]
                %357 = vst [vmem:[%s349 + $0x18] sm:$0xff] %v356
                %v358 = vld [vmem:[%s348 + $0x40] sm:$0xff]
                %359 = vst [vmem:[%s349 + $0x20] sm:$0xff] %v358
                %v360 = vld [vmem:[%s348 + $0x48] sm:$0xff]
                %361 = vst [vmem:[%s349 + $0x28] sm:$0xff] %v360
                %v362 = vld [vmem:[%s348 + $0x60] sm:$0xff]
                %363 = vst [vmem:[%s349 + $0x30] sm:$0xff] %v362
                %v364 = vld [vmem:[%s348 + $0x68] sm:$0xff]
                %365 = vst [vmem:[%s349 + $0x38] sm:$0xff] %v364
                %v366 = vld [vmem:[%s348 + $0x80] sm:$0xff]
                %367 = vst [vmem:[%s349 + $0x40] sm:$0xff] %v366
                %v368 = vld [vmem:[%s348 + $0x88] sm:$0xff]
                %369 = vst [vmem:[%s349 + $0x48] sm:$0xff] %v368
                %v370 = vld [vmem:[%s348 + $0xa0] sm:$0xff]
                %371 = vst [vmem:[%s349 + $0x50] sm:$0xff] %v370
                %v372 = vld [vmem:[%s348 + $0xa8] sm:$0xff]
                %373 = vst [vmem:[%s349 + $0x58] sm:$0xff] %v372
                %v374 = vld [vmem:[%s348 + $0xc0] sm:$0xff]
                %375 = vst [vmem:[%s349 + $0x60] sm:$0xff] %v374
                %v376 = vld [vmem:[%s348 + $0xc8] sm:$0xff]
                %377 = vst [vmem:[%s349 + $0x68] sm:$0xff] %v376
                %v378 = vld [vmem:[%s348 + $0xe0] sm:$0xff]
                %379 = vst [vmem:[%s349 + $0x70] sm:$0xff] %v378
                %v380 = vld [vmem:[%s348 + $0xe8] sm:$0xff]
                %381 = vst [vmem:[%s349 + $0x78] sm:$0xff] %v380
                %v382 = vld [vmem:[%s348 + $0x100] sm:$0xff]
                %383 = vst [vmem:[%s349 + $0x80] sm:$0xff] %v382
                %v384 = vld [vmem:[%s348 + $0x108] sm:$0xff]
                %385 = vst [vmem:[%s349 + $0x88] sm:$0xff] %v384
                %v386 = vld [vmem:[%s348 + $0x120] sm:$0xff]
                %387 = vst [vmem:[%s349 + $0x90] sm:$0xff] %v386
                %v388 = vld [vmem:[%s348 + $0x128] sm:$0xff]
                %389 = vst [vmem:[%s349 + $0x98] sm:$0xff] %v388
                %v390 = vld [vmem:[%s348 + $0x140] sm:$0xff]
                %391 = vst [vmem:[%s349 + $0xa0] sm:$0xff] %v390
                %v392 = vld [vmem:[%s348 + $0x148] sm:$0xff]
                %393 = vst [vmem:[%s349 + $0xa8] sm:$0xff] %v392
                %v394 = vld [vmem:[%s348 + $0x160] sm:$0xff]
                %395 = vst [vmem:[%s349 + $0xb0] sm:$0xff] %v394
                %v396 = vld [vmem:[%s348 + $0x168] sm:$0xff]
                %397 = vst [vmem:[%s349 + $0xb8] sm:$0xff] %v396
                %v398 = vld [vmem:[%s348 + $0x180] sm:$0xff]
                %399 = vst [vmem:[%s349 + $0xc0] sm:$0xff] %v398
                %v400 = vld [vmem:[%s348 + $0x188] sm:$0xff]
                %401 = vst [vmem:[%s349 + $0xc8] sm:$0xff] %v400
                %v402 = vld [vmem:[%s348 + $0x1a0] sm:$0xff]
                %403 = vst [vmem:[%s349 + $0xd0] sm:$0xff] %v402
                %v404 = vld [vmem:[%s348 + $0x1a8] sm:$0xff]
                %405 = vst [vmem:[%s349 + $0xd8] sm:$0xff] %v404
                %v406 = vld [vmem:[%s348 + $0x1c0] sm:$0xff]
                %407 = vst [vmem:[%s349 + $0xe0] sm:$0xff] %v406
                %v408 = vld [vmem:[%s348 + $0x1c8] sm:$0xff]
                %409 = vst [vmem:[%s349 + $0xe8] sm:$0xff] %v408
                %v410 = vld [vmem:[%s348 + $0x1e0] sm:$0xff]
                %411 = vst [vmem:[%s349 + $0xf0] sm:$0xff] %v410
                %v412 = vld [vmem:[%s348 + $0x1e8] sm:$0xff]
                %413 = vst [vmem:[%s349 + $0xf8] sm:$0xff] %v412
                %v414 = vld [vmem:[%s348 + $0x200] sm:$0xff]
                %415 = vst [vmem:[%s349 + $0x100] sm:$0xff] %v414
                %v416 = vld [vmem:[%s348 + $0x208] sm:$0xff]
                %417 = vst [vmem:[%s349 + $0x108] sm:$0xff] %v416
                %v418 = vld [vmem:[%s348 + $0x220] sm:$0xff]
                %419 = vst [vmem:[%s349 + $0x110] sm:$0xff] %v418
                %v420 = vld [vmem:[%s348 + $0x228] sm:$0xff]
                %421 = vst [vmem:[%s349 + $0x118] sm:$0xff] %v420
                %v422 = vld [vmem:[%s348 + $0x240] sm:$0xff]
                %423 = vst [vmem:[%s349 + $0x120] sm:$0xff] %v422
                %v424 = vld [vmem:[%s348 + $0x248] sm:$0xff]
                %425 = vst [vmem:[%s349 + $0x128] sm:$0xff] %v424
                %v426 = vld [vmem:[%s348 + $0x260] sm:$0xff]
                %427 = vst [vmem:[%s349 + $0x130] sm:$0xff] %v426
                %v428 = vld [vmem:[%s348 + $0x268] sm:$0xff]
                %429 = vst [vmem:[%s349 + $0x138] sm:$0xff] %v428
                %v430 = vld [vmem:[%s348 + $0x280] sm:$0xff]
                %431 = vst [vmem:[%s349 + $0x140] sm:$0xff] %v430
                %v432 = vld [vmem:[%s348 + $0x288] sm:$0xff]
                %433 = vst [vmem:[%s349 + $0x148] sm:$0xff] %v432
                %v434 = vld [vmem:[%s348 + $0x2a0] sm:$0xff]
                %435 = vst [vmem:[%s349 + $0x150] sm:$0xff] %v434
                %v436 = vld [vmem:[%s348 + $0x2a8] sm:$0xff]
                %437 = vst [vmem:[%s349 + $0x158] sm:$0xff] %v436
                %v438 = vld [vmem:[%s348 + $0x2c0] sm:$0xff]
                %439 = vst [vmem:[%s349 + $0x160] sm:$0xff] %v438
                %v440 = vld [vmem:[%s348 + $0x2c8] sm:$0xff]
                %441 = vst [vmem:[%s349 + $0x168] sm:$0xff] %v440
                %v442 = vld [vmem:[%s348 + $0x2e0] sm:$0xff]
                %443 = vst [vmem:[%s349 + $0x170] sm:$0xff] %v442
                %v444 = vld [vmem:[%s348 + $0x2e8] sm:$0xff]
                %445 = vst [vmem:[%s349 + $0x178] sm:$0xff] %v444
              $region73: #{net_forward.1} parent=67 // loop_footer
                %s347 = sadd.s32 1, %s343
              $region74: #{net_forward.1} parent=67 // loop_footer_branch
                %342 = sbr.rel target = $region70
              $region75: #{net_forward.1} parent=67 // loop_exit
                _
            $region68: #{net_forward.1} parent=63 // pred_fallthru
              _
            // Predicated region
            $region76: #{net_forward.1} parent=63 // pred_check
              _
            $region77: #{net_forward.1} parent=63 // pred_check_branch
              %447 = sbr.rel target = $region79
            $region78: #{net_forward.1} parent=63 // pred_region
              _
            $region79: #{net_forward.1} parent=63 // pred_fallthru
              _
          $region64: #{net_forward.1} parent=59 // pred_fallthru
            _
          %448 = vnop
        $region60: #{net_forward.1} parent=55 // pred_fallthru
          _
      $region56: #{net_forward.1} parent=5 // pred_fallthru
        _
      %p449 = scmp.le.s32.totalorder 1, %s17
      %p450 = scmp.lt.s32.totalorder %s17, 3
      %p451 = pnand %p449, %p450
      %p452 = pneg %p451
      // Predicated region
      $region80: #{net_forward.1} parent=5 // pred_check
        _
      $region81: #{net_forward.1} parent=5 // pred_check_branch
        %454 = sbr.rel (%p451) target = $region83
      $region82: #{net_forward.1} parent=5 // pred_region
        %s455 = ssub.s32 %s17, 1
        %s456 = sand.u32 %s30, 1
        %s457 = sand.u32 %s30, 1
        %s458 = smul.addr %s457, 384
        %s459 = scalar_lea.vmem [#allocation2], %s458
        // Predicated region
        $region84: #{net_forward.1} parent=82 // pred_check
          %p460 = pneg %p43
        $region85: #{net_forward.1} parent=82 // pred_check_branch
          %462 = sbr.rel (%p460) target = $region87
        $region86: #{net_forward.1} parent=82 // pred_region
          _
        $region87: #{net_forward.1} parent=82 // pred_fallthru
          _
        %s463 = sand.u32 %s30, 1
        %s464 = sand.u32 %s30, 1
        %s465 = smul.addr %s464, 384
        %s466 = scalar_lea.vmem [#allocation2], %s465
        %p467 = pneg %p43
        %p468 = pneg %p40
        %p469 = pneg %p64
        %p470 = pneg %p61
        %p471 = pneg %p85
        %p472 = pneg %p82
        %p473 = pneg %p106
        %p474 = pneg %p103
        %p475 = pneg %p127
        %p476 = pneg %p124
        %p477 = pneg %p148
        %p478 = pneg %p145
        %p479 = pneg %p169
        %p480 = pneg %p166
        %p481 = pneg %p190
        %p482 = pneg %p187
        %p483 = pneg %p211
        %p484 = pneg %p208
        %p485 = pneg %p232
        %p486 = pneg %p229
        %p487 = pneg %p253
        %p488 = pneg %p250
        %p489 = pneg %p279
        %p490 = pneg %p276
        %p491 = scmp.lt.s32.totalorder %s22, 1
        %s492 = scalar_select %p491, %s22, 1
        %s493 = smul.addr %s492, 8
        %s494 = scalar_lea.vmem %s11, %s493
        %p495 = scmp.lt.s32.totalorder %s22, 1
        %s496 = scalar_select %p495, %s22, 1
        %s497 = smul.addr %s496, 8
        %s498 = scalar_lea.vmem %s11, %s497
        %v499 = vld [vmem:[%s459] sm:$0xff]
        %v500 = vld [vmem:[%s459 + $0x8] sm:$0xff]
        %v501 = vld [vmem:[%s459 + $0x10] sm:$0xff]
        %v502 = vld [vmem:[%s459 + $0x18] sm:$0xff]
        %v503 = vld [vmem:[%s459 + $0x20] sm:$0xff]
        %v504 = vld [vmem:[%s459 + $0x28] sm:$0xff]
        %v505 = vld [vmem:[%s459 + $0x30] sm:$0xff]
        %v506 = vld [vmem:[%s459 + $0x38] sm:$0xff]
        %v507 = vld [vmem:[%s459 + $0x40] sm:$0xff]
        %v508 = vld [vmem:[%s459 + $0x48] sm:$0xff]
        %v509 = vld [vmem:[%s459 + $0x50] sm:$0xff]
        %v510 = vld [vmem:[%s459 + $0x58] sm:$0xff]
        %v511 = vld [vmem:[%s459 + $0x60] sm:$0xff]
        %v512 = vld [vmem:[%s459 + $0x68] sm:$0xff]
        %v513 = vld [vmem:[%s459 + $0x70] sm:$0xff]
        %v514 = vld [vmem:[%s459 + $0x78] sm:$0xff]
        %v515 = vld [vmem:[%s459 + $0x80] sm:$0xff]
        %v516 = vld [vmem:[%s459 + $0x88] sm:$0xff]
        %v517 = vld [vmem:[%s459 + $0x90] sm:$0xff]
        %v518 = vld [vmem:[%s459 + $0x98] sm:$0xff]
        %v519 = vld [vmem:[%s459 + $0xa0] sm:$0xff]
        %v520 = vld [vmem:[%s459 + $0xa8] sm:$0xff]
        %v521 = vld [vmem:[%s459 + $0xb0] sm:$0xff]
        %v522 = vld [vmem:[%s459 + $0xb8] sm:$0xff]
        %v523 = vld [vmem:[%s459 + $0xc0] sm:$0xff]
        %v524 = vld [vmem:[%s459 + $0xc8] sm:$0xff]
        %v525 = vld [vmem:[%s459 + $0xd0] sm:$0xff]
        %v526 = vld [vmem:[%s459 + $0xd8] sm:$0xff]
        %v527 = vld [vmem:[%s459 + $0xe0] sm:$0xff]
        %v528 = vld [vmem:[%s459 + $0xe8] sm:$0xff]
        %v529 = vld [vmem:[%s459 + $0xf0] sm:$0xff]
        %v530 = vld [vmem:[%s459 + $0xf8] sm:$0xff]
        %v531 = vld [vmem:[%s459 + $0x100] sm:$0xff]
        %v532 = vld [vmem:[%s459 + $0x108] sm:$0xff]
        %v533 = vld [vmem:[%s459 + $0x110] sm:$0xff]
        %v534 = vld [vmem:[%s459 + $0x118] sm:$0xff]
        %v535 = vld [vmem:[%s459 + $0x120] sm:$0xff]
        %v536 = vld [vmem:[%s459 + $0x128] sm:$0xff]
        %v537 = vld [vmem:[%s459 + $0x130] sm:$0xff]
        %v538 = vld [vmem:[%s459 + $0x138] sm:$0xff]
        %v539 = vld [vmem:[%s459 + $0x140] sm:$0xff]
        %v540 = vld [vmem:[%s459 + $0x148] sm:$0xff]
        %v541 = vld [vmem:[%s459 + $0x150] sm:$0xff]
        %v542 = vld [vmem:[%s459 + $0x158] sm:$0xff]
        %v543 = vld [vmem:[%s459 + $0x160] sm:$0xff]
        %v544 = vld [vmem:[%s459 + $0x168] sm:$0xff]
        %v545 = vld [vmem:[%s459 + $0x170] sm:$0xff]
        %v546 = vld [vmem:[%s459 + $0x178] sm:$0xff]
        %v547 = vld [vmem:[%s1] sm:$0xff]
        %v548 = vld [vmem:[%s1 + $0x8] sm:$0xff]
        %v549 = vld [vmem:[%s1 + $0x10] sm:$0xff]
        %v550 = vld [vmem:[%s1 + $0x18] sm:$0xff]
        %v551 = vld [vmem:[%s1 + $0x20] sm:$0xff]
        %v552 = vld [vmem:[%s1 + $0x28] sm:$0xff]
        %v553 = vld [vmem:[%s1 + $0x30] sm:$0xff]
        %v554 = vld [vmem:[%s1 + $0x38] sm:$0xff]
        %v555 = vld [vmem:[%s1 + $0x40] sm:$0xff]
        %v556 = vld [vmem:[%s1 + $0x48] sm:$0xff]
        %v557 = vld [vmem:[%s1 + $0x50] sm:$0xff]
        %v558 = vld [vmem:[%s1 + $0x58] sm:$0xff]
        %v559 = vld [vmem:[%s1 + $0x60] sm:$0xff]
        %v560 = vld [vmem:[%s1 + $0x68] sm:$0xff]
        %v561 = vld [vmem:[%s1 + $0x70] sm:$0xff]
        %v562 = vld [vmem:[%s1 + $0x78] sm:$0xff]
        %v563 = vld [vmem:[%s1 + $0x80] sm:$0xff]
        %v564 = vld [vmem:[%s1 + $0x88] sm:$0xff]
        %v565 = vld [vmem:[%s1 + $0x90] sm:$0xff]
        %v566 = vld [vmem:[%s1 + $0x98] sm:$0xff]
        %v567 = vld [vmem:[%s1 + $0xa0] sm:$0xff]
        %v568 = vld [vmem:[%s1 + $0xa8] sm:$0xff]
        %v569 = vld [vmem:[%s1 + $0xb0] sm:$0xff]
        %v570 = vld [vmem:[%s1 + $0xb8] sm:$0xff]
        %v571 = vld [vmem:[%s1 + $0xc0] sm:$0xff]
        %v572 = vld [vmem:[%s1 + $0xc8] sm:$0xff]
        %v573 = vld [vmem:[%s1 + $0xd0] sm:$0xff]
        %v574 = vld [vmem:[%s1 + $0xd8] sm:$0xff]
        %v575 = vld [vmem:[%s1 + $0xe0] sm:$0xff]
        %v576 = vld [vmem:[%s1 + $0xe8] sm:$0xff]
        %v577 = vld [vmem:[%s1 + $0xf0] sm:$0xff]
        %v578 = vld [vmem:[%s1 + $0xf8] sm:$0xff]
        %v579 = vld [vmem:[%s1 + $0x100] sm:$0xff]
        %v580 = vld [vmem:[%s1 + $0x108] sm:$0xff]
        %v581 = vld [vmem:[%s1 + $0x110] sm:$0xff]
        %v582 = vld [vmem:[%s1 + $0x118] sm:$0xff]
        %v583 = vld [vmem:[%s1 + $0x120] sm:$0xff]
        %v584 = vld [vmem:[%s1 + $0x128] sm:$0xff]
        %v585 = vld [vmem:[%s1 + $0x130] sm:$0xff]
        %v586 = vld [vmem:[%s1 + $0x138] sm:$0xff]
        %v587 = vld [vmem:[%s2] sm:$0x3]
        %v589 = vlaneseq
        %v590 = vshrl.u32 %v589, 7
        %v591 = vsub.s32 0, %v590
        %v592 = vrot.slane %v587, %v591
        %v593 = vlaneseq
        %v594 = vshrl.u32 %v593, 7
        %v595 = vsub.s32 1, %v594
        %v596 = vrot.slane %v587, %v595
        %vm599 = vcmask 261120
        %v601 = vsel %vm599, %v500, 0
        %v604 = vsel %vm599, %v502, 0
        %v607 = vsel %vm599, %v504, 0
        %v610 = vsel %vm599, %v506, 0
        %v613 = vsel %vm599, %v508, 0
        %v616 = vsel %vm599, %v510, 0
        %v619 = vsel %vm599, %v512, 0
        %v622 = vsel %vm599, %v514, 0
        %v625 = vsel %vm599, %v516, 0
        %v628 = vsel %vm599, %v518, 0
        %v631 = vsel %vm599, %v520, 0
        %v634 = vsel %vm599, %v522, 0
        %v637 = vsel %vm599, %v524, 0
        %v640 = vsel %vm599, %v526, 0
        %v643 = vsel %vm599, %v528, 0
        %v646 = vsel %vm599, %v530, 0
        %v649 = vsel %vm599, %v532, 0
        %v652 = vsel %vm599, %v534, 0
        %v655 = vsel %vm599, %v536, 0
        %v658 = vsel %vm599, %v538, 0
        %v661 = vsel %vm599, %v540, 0
        %v664 = vsel %vm599, %v542, 0
        %v667 = vsel %vm599, %v544, 0
        %v670 = vsel %vm599, %v546, 0
        %672 = vmatprep.subr.mxu0 %v548
        %673 = vmatpush1.msra.mxu0 %v547
        %674 = vmatprep.subr.mxu0 %v550
        %675 = vmatpush1.msra.mxu0 %v549
        %676 = vmatprep.subr.mxu0 %v552
        %677 = vmatpush1.msra.mxu0 %v551
        %678 = vmatprep.subr.mxu0 %v554
        %679 = vmatpush1.msra.mxu0 %v553
        %680 = vmatprep.subr.mxu0 %v556
        %681 = vmatpush1.msra.mxu0 %v555
        %682 = vmatprep.subr.mxu0 %v558
        %683 = vmatpush1.msra.mxu0 %v557
        %684 = vmatprep.subr.mxu0 %v560
        %685 = vmatpush1.msra.mxu0 %v559
        %686 = vmatprep.subr.mxu0 %v562
        %687 = vmatpush1.msra.mxu0 %v561
        %688 = vmatprep.subr.mxu0 %v564
        %689 = vmatpush1.msra.mxu0 %v563
        %690 = vmatprep.subr.mxu0 %v566
        %691 = vmatpush1.msra.mxu0 %v565
        %692 = vmatprep.subr.mxu0 %v568
        %693 = vmatpush1.msra.mxu0 %v567
        %694 = vmatprep.subr.mxu0 %v570
        %695 = vmatpush1.msra.mxu0 %v569
        %696 = vmatprep.subr.mxu0 %v572
        %697 = vmatpush1.msra.mxu0 %v571
        %698 = vmatprep.subr.mxu0 %v574
        %699 = vmatpush1.msra.mxu0 %v573
        %700 = vmatprep.subr.mxu0 %v576
        %701 = vmatpush1.msra.mxu0 %v575
        %702 = vmatprep.subr.mxu0 %v578
        %703 = vmatpush1.msra.mxu0 %v577
        %704 = vmatprep.subr.mxu0 %v580
        %705 = vmatpush1.msra.mxu0 %v579
        %706 = vmatprep.subr.mxu0 %v582
        %707 = vmatpush1.msra.mxu0 %v581
        %708 = vmatprep.subr.mxu0 %v584
        %709 = vmatpush1.msra.mxu0 %v583
        %710 = vmatprep.subr.mxu0 %v586
        %711 = vmatpush1.msra.mxu0 %v585
        %712 = vmatprep.subr.mxu0 0.0
        %713 = vmatpush1.msra.mxu0 0.0
        %714 = vmatprep.subr.mxu0 0.0
        %715 = vmatpush1.msra.mxu0 0.0
        %716 = vmatprep.subr.mxu0 0.0
        %717 = vmatpush1.msra.mxu0 0.0
        %718 = vmatprep.subr.mxu0 0.0
        %719 = vmatpush1.msra.mxu0 0.0
        %720 = vmatprep.subr.mxu0 0.0
        %721 = vmatpush1.msra.mxu0 0.0
        %722 = vmatprep.subr.mxu0 0.0
        %723 = vmatpush1.msra.mxu0 0.0
        %724 = vmatprep.subr.mxu0 0.0
        %725 = vmatpush1.msra.mxu0 0.0
        %726 = vmatprep.subr.mxu0 0.0
        %727 = vmatpush1.msra.mxu0 0.0
        %728 = vmatprep.subr.mxu0 0.0
        %729 = vmatpush1.msra.mxu0 0.0
        %730 = vmatprep.subr.mxu0 0.0
        %731 = vmatpush1.msra.mxu0 0.0
        %732 = vmatprep.subr.mxu0 0.0
        %733 = vmatpush1.msra.mxu0 0.0
        %734 = vmatprep.subr.mxu0 0.0
        %735 = vmatpush1.msra.mxu0 0.0
        %736 = vmatprep.mubr.f32.mxu0 %v601
        %737 = vmatmul.mubr.f32.gmra.mrb[0].mxu0 %v499
        %v738 = vpop.f32.mrb[0].mxu0
        %v739 = vadd.f32 %v592, %v738
        %v740 = vpop.f32.mrb[0].mxu0
        %v741 = vadd.f32 %v596, %v740
        %742 = vmatprep.mubr.f32.mxu0 %v604
        %743 = vmatmul.mubr.f32.gmra.mrb[0].mxu0 %v501
        %v744 = vpop.f32.mrb[0].mxu0
        %v745 = vadd.f32 %v592, %v744
        %v746 = vpop.f32.mrb[0].mxu0
        %v747 = vadd.f32 %v596, %v746
        %748 = vmatprep.mubr.f32.mxu0 %v607
        %749 = vmatmul.mubr.f32.gmra.mrb[0].mxu0 %v503
        %v750 = vpop.f32.mrb[0].mxu0
        %v751 = vadd.f32 %v592, %v750
        %v752 = vpop.f32.mrb[0].mxu0
        %v753 = vadd.f32 %v596, %v752
        %754 = vmatprep.mubr.f32.mxu0 %v610
        %755 = vmatmul.mubr.f32.gmra.mrb[0].mxu0 %v505
        %v756 = vpop.f32.mrb[0].mxu0
        %v757 = vadd.f32 %v592, %v756
        %v758 = vpop.f32.mrb[0].mxu0
        %v759 = vadd.f32 %v596, %v758
        %760 = vmatprep.mubr.f32.mxu0 %v613
        %761 = vmatmul.mubr.f32.gmra.mrb[0].mxu0 %v507
        %v762 = vpop.f32.mrb[0].mxu0
        %v763 = vadd.f32 %v592, %v762
        %v764 = vpop.f32.mrb[0].mxu0
        %v765 = vadd.f32 %v596, %v764
        %766 = vmatprep.mubr.f32.mxu0 %v616
        %767 = vmatmul.mubr.f32.gmra.mrb[0].mxu0 %v509
        %v768 = vpop.f32.mrb[0].mxu0
        %v769 = vadd.f32 %v592, %v768
        %v770 = vpop.f32.mrb[0].mxu0
        %v771 = vadd.f32 %v596, %v770
        %772 = vmatprep.mubr.f32.mxu0 %v619
        %773 = vmatmul.mubr.f32.gmra.mrb[0].mxu0 %v511
        %v774 = vpop.f32.mrb[0].mxu0
        %v775 = vadd.f32 %v592, %v774
        %v776 = vpop.f32.mrb[0].mxu0
        %v777 = vadd.f32 %v596, %v776
        %778 = vmatprep.mubr.f32.mxu0 %v622
        %779 = vmatmul.mubr.f32.gmra.mrb[0].mxu0 %v513
        %v780 = vpop.f32.mrb[0].mxu0
        %v781 = vadd.f32 %v592, %v780
        %v782 = vpop.f32.mrb[0].mxu0
        %v783 = vadd.f32 %v596, %v782
        %784 = vmatprep.mubr.f32.mxu0 %v625
        %785 = vmatmul.mubr.f32.gmra.mrb[0].mxu0 %v515
        %v786 = vpop.f32.mrb[0].mxu0
        %v787 = vadd.f32 %v592, %v786
        %v788 = vpop.f32.mrb[0].mxu0
        %v789 = vadd.f32 %v596, %v788
        %790 = vmatprep.mubr.f32.mxu0 %v628
        %791 = vmatmul.mubr.f32.gmra.mrb[0].mxu0 %v517
        %v792 = vpop.f32.mrb[0].mxu0
        %v793 = vadd.f32 %v592, %v792
        %v794 = vpop.f32.mrb[0].mxu0
        %v795 = vadd.f32 %v596, %v794
        %796 = vmatprep.mubr.f32.mxu0 %v631
        %797 = vmatmul.mubr.f32.gmra.mrb[0].mxu0 %v519
        %v798 = vpop.f32.mrb[0].mxu0
        %v799 = vadd.f32 %v592, %v798
        %v800 = vpop.f32.mrb[0].mxu0
        %v801 = vadd.f32 %v596, %v800
        %802 = vmatprep.mubr.f32.mxu0 %v634
        %803 = vmatmul.mubr.f32.gmra.mrb[0].mxu0 %v521
        %v804 = vpop.f32.mrb[0].mxu0
        %v805 = vadd.f32 %v592, %v804
        %v806 = vpop.f32.mrb[0].mxu0
        %v807 = vadd.f32 %v596, %v806
        %808 = vmatprep.mubr.f32.mxu0 %v637
        %809 = vmatmul.mubr.f32.gmra.mrb[0].mxu0 %v523
        %v810 = vpop.f32.mrb[0].mxu0
        %v811 = vadd.f32 %v592, %v810
        %v812 = vpop.f32.mrb[0].mxu0
        %v813 = vadd.f32 %v596, %v812
        %814 = vmatprep.mubr.f32.mxu0 %v640
        %815 = vmatmul.mubr.f32.gmra.mrb[0].mxu0 %v525
        %v816 = vpop.f32.mrb[0].mxu0
        %v817 = vadd.f32 %v592, %v816
        %v818 = vpop.f32.mrb[0].mxu0
        %v819 = vadd.f32 %v596, %v818
        %820 = vmatprep.mubr.f32.mxu0 %v643
        %821 = vmatmul.mubr.f32.gmra.mrb[0].mxu0 %v527
        %v822 = vpop.f32.mrb[0].mxu0
        %v823 = vadd.f32 %v592, %v822
        %v824 = vpop.f32.mrb[0].mxu0
        %v825 = vadd.f32 %v596, %v824
        %826 = vmatprep.mubr.f32.mxu0 %v646
        %827 = vmatmul.mubr.f32.gmra.mrb[0].mxu0 %v529
        %v828 = vpop.f32.mrb[0].mxu0
        %v829 = vadd.f32 %v592, %v828
        %v830 = vpop.f32.mrb[0].mxu0
        %v831 = vadd.f32 %v596, %v830
        %832 = vmatprep.mubr.f32.mxu0 %v649
        %833 = vmatmul.mubr.f32.gmra.mrb[0].mxu0 %v531
        %v834 = vpop.f32.mrb[0].mxu0
        %v835 = vadd.f32 %v592, %v834
        %v836 = vpop.f32.mrb[0].mxu0
        %v837 = vadd.f32 %v596, %v836
        %838 = vmatprep.mubr.f32.mxu0 %v652
        %839 = vmatmul.mubr.f32.gmra.mrb[0].mxu0 %v533
        %v840 = vpop.f32.mrb[0].mxu0
        %v841 = vadd.f32 %v592, %v840
        %v842 = vpop.f32.mrb[0].mxu0
        %v843 = vadd.f32 %v596, %v842
        %844 = vmatprep.mubr.f32.mxu0 %v655
        %845 = vmatmul.mubr.f32.gmra.mrb[0].mxu0 %v535
        %v846 = vpop.f32.mrb[0].mxu0
        %v847 = vadd.f32 %v592, %v846
        %v848 = vpop.f32.mrb[0].mxu0
        %v849 = vadd.f32 %v596, %v848
        %850 = vmatprep.mubr.f32.mxu0 %v658
        %851 = vmatmul.mubr.f32.gmra.mrb[0].mxu0 %v537
        %v852 = vpop.f32.mrb[0].mxu0
        %v853 = vadd.f32 %v592, %v852
        %v854 = vpop.f32.mrb[0].mxu0
        %v855 = vadd.f32 %v596, %v854
        %856 = vmatprep.mubr.f32.mxu0 %v661
        %857 = vmatmul.mubr.f32.gmra.mrb[0].mxu0 %v539
        %v858 = vpop.f32.mrb[0].mxu0
        %v859 = vadd.f32 %v592, %v858
        %v860 = vpop.f32.mrb[0].mxu0
        %v861 = vadd.f32 %v596, %v860
        %862 = vmatprep.mubr.f32.mxu0 %v664
        %863 = vmatmul.mubr.f32.gmra.mrb[0].mxu0 %v541
        %v864 = vpop.f32.mrb[0].mxu0
        %v865 = vadd.f32 %v592, %v864
        %v866 = vpop.f32.mrb[0].mxu0
        %v867 = vadd.f32 %v596, %v866
        %868 = vmatprep.mubr.f32.mxu0 %v667
        %869 = vmatmul.mubr.f32.gmra.mrb[0].mxu0 %v543
        %v870 = vpop.f32.mrb[0].mxu0
        %v871 = vadd.f32 %v592, %v870
        %v872 = vpop.f32.mrb[0].mxu0
        %v873 = vadd.f32 %v596, %v872
        %874 = vmatprep.mubr.f32.mxu0 %v670
        %875 = vmatmul.mubr.f32.gmra.mrb[0].mxu0 %v545
        %v876 = vpop.f32.mrb[0].mxu0
        %v877 = vadd.f32 %v592, %v876
        %v878 = vpop.f32.mrb[0].mxu0
        %v879 = vadd.f32 %v596, %v878
        %880 = vdwg.mxu0
        %v881 = vmax.f32 %v739, %v745
        %v882 = vmax.f32 %v741, %v747
        %v883 = vmax.f32 %v751, %v757
        %v884 = vmax.f32 %v753, %v759
        %v885 = vmax.f32 %v763, %v769
        %v886 = vmax.f32 %v765, %v771
        %v887 = vmax.f32 %v775, %v781
        %v888 = vmax.f32 %v777, %v783
        %v889 = vmax.f32 %v787, %v793
        %v890 = vmax.f32 %v789, %v795
        %v891 = vmax.f32 %v799, %v805
        %v892 = vmax.f32 %v801, %v807
        %v893 = vmax.f32 %v811, %v817
        %v894 = vmax.f32 %v813, %v819
        %v895 = vmax.f32 %v823, %v829
        %v896 = vmax.f32 %v825, %v831
        %v897 = vmax.f32 %v835, %v841
        %v898 = vmax.f32 %v837, %v843
        %v899 = vmax.f32 %v847, %v853
        %v900 = vmax.f32 %v849, %v855
        %v901 = vmax.f32 %v859, %v865
        %v902 = vmax.f32 %v861, %v867
        %v903 = vmax.f32 %v871, %v877
        %v904 = vmax.f32 %v873, %v879
        %v905 = vld [vmem:[%s3] sm:$0xff]
        %v906 = vld [vmem:[%s3 + $0x8] sm:$0xff]
        %v907 = vld [vmem:[%s3 + $0x10] sm:$0xff]
        %v908 = vld [vmem:[%s3 + $0x18] sm:$0xff]
        %v909 = vld [vmem:[%s3 + $0x20] sm:$0xff]
        %v910 = vld [vmem:[%s3 + $0x28] sm:$0xff]
        %v911 = vld [vmem:[%s3 + $0x30] sm:$0xff]
        %v912 = vld [vmem:[%s3 + $0x38] sm:$0xff]
        %v913 = vld [vmem:[%s3 + $0x40] sm:$0xff]
        %v914 = vld [vmem:[%s3 + $0x48] sm:$0xff]
        %v915 = vld [vmem:[%s3 + $0x50] sm:$0xff]
        %v916 = vld [vmem:[%s3 + $0x58] sm:$0xff]
        %v917 = vld [vmem:[%s3 + $0x60] sm:$0xff]
        %v918 = vld [vmem:[%s3 + $0x68] sm:$0xff]
        %v919 = vld [vmem:[%s3 + $0x70] sm:$0xff]
        %v920 = vld [vmem:[%s3 + $0x78] sm:$0xff]
        %v921 = vld [vmem:[%s3 + $0x80] sm:$0xff]
        %v922 = vld [vmem:[%s3 + $0x88] sm:$0xff]
        %v923 = vld [vmem:[%s3 + $0x90] sm:$0xff]
        %v924 = vld [vmem:[%s3 + $0x98] sm:$0xff]
        %v925 = vld [vmem:[%s3 + $0xa0] sm:$0xff]
        %v926 = vld [vmem:[%s3 + $0xa8] sm:$0xff]
        %v927 = vld [vmem:[%s3 + $0xb0] sm:$0xff]
        %v928 = vld [vmem:[%s3 + $0xb8] sm:$0xff]
        %v929 = vld [vmem:[%s3 + $0xc0] sm:$0xff]
        %v930 = vld [vmem:[%s3 + $0xc8] sm:$0xff]
        %v931 = vld [vmem:[%s3 + $0xd0] sm:$0xff]
        %v932 = vld [vmem:[%s3 + $0xd8] sm:$0xff]
        %v933 = vld [vmem:[%s3 + $0xe0] sm:$0xff]
        %v934 = vld [vmem:[%s3 + $0xe8] sm:$0xff]
        %v935 = vld [vmem:[%s3 + $0xf0] sm:$0xff]
        %v936 = vld [vmem:[%s3 + $0xf8] sm:$0xff]
        %v937 = vld [vmem:[%s3 + $0x100] sm:$0xff]
        %v938 = vld [vmem:[%s3 + $0x108] sm:$0xff]
        %v939 = vld [vmem:[%s3 + $0x110] sm:$0xff]
        %v940 = vld [vmem:[%s3 + $0x118] sm:$0xff]
        %v941 = vld [vmem:[%s3 + $0x120] sm:$0xff]
        %v942 = vld [vmem:[%s3 + $0x128] sm:$0xff]
        %v943 = vld [vmem:[%s3 + $0x130] sm:$0xff]
        %v944 = vld [vmem:[%s3 + $0x138] sm:$0xff]
        %v945 = vld [vmem:[%s3 + $0x140] sm:$0xff]
        %v946 = vld [vmem:[%s3 + $0x148] sm:$0xff]
        %v947 = vld [vmem:[%s3 + $0x150] sm:$0xff]
        %v948 = vld [vmem:[%s3 + $0x158] sm:$0xff]
        %v949 = vld [vmem:[%s3 + $0x160] sm:$0xff]
        %v950 = vld [vmem:[%s3 + $0x168] sm:$0xff]
        %v951 = vld [vmem:[%s3 + $0x170] sm:$0xff]
        %v952 = vld [vmem:[%s3 + $0x178] sm:$0xff]
        %v953 = vld [vmem:[%s3 + $0x180] sm:$0xff]
        %v954 = vld [vmem:[%s3 + $0x188] sm:$0xff]
        %v955 = vld [vmem:[%s3 + $0x190] sm:$0xff]
        %v956 = vld [vmem:[%s3 + $0x198] sm:$0xff]
        %v957 = vld [vmem:[%s3 + $0x1a0] sm:$0xff]
        %v958 = vld [vmem:[%s3 + $0x1a8] sm:$0xff]
        %v959 = vld [vmem:[%s3 + $0x1b0] sm:$0xff]
        %v960 = vld [vmem:[%s3 + $0x1b8] sm:$0xff]
        %v961 = vld [vmem:[%s3 + $0x1c0] sm:$0xff]
        %v962 = vld [vmem:[%s3 + $0x1c8] sm:$0xff]
        %v963 = vld [vmem:[%s3 + $0x1d0] sm:$0xff]
        %v964 = vld [vmem:[%s3 + $0x1d8] sm:$0xff]
        %vm965 = vcmask 916480
        %v967 = vsel %vm965, %v882, 0
        %v970 = vsel %vm965, %v884, 0
        %v973 = vsel %vm965, %v886, 0
        %v976 = vsel %vm965, %v888, 0
        %v979 = vsel %vm965, %v890, 0
        %v982 = vsel %vm965, %v892, 0
        %v985 = vsel %vm965, %v894, 0
        %v988 = vsel %vm965, %v896, 0
        %v991 = vsel %vm965, %v898, 0
        %v994 = vsel %vm965, %v900, 0
        %v997 = vsel %vm965, %v902, 0
        %v1000 = vsel %vm965, %v904, 0
        %1002 = vmatprep.subr.mxu0 %v906
        %1003 = vmatpush1.msra.mxu0 %v905
        %1004 = vmatprep.subr.mxu0 %v908
        %1005 = vmatpush1.msra.mxu0 %v907
        %1006 = vmatprep.subr.mxu0 %v910
        %1007 = vmatpush1.msra.mxu0 %v909
        %1008 = vmatprep.subr.mxu0 %v912
        %1009 = vmatpush1.msra.mxu0 %v911
        %1010 = vmatprep.subr.mxu0 %v914
        %1011 = vmatpush1.msra.mxu0 %v913
        %1012 = vmatprep.subr.mxu0 %v916
        %1013 = vmatpush1.msra.mxu0 %v915
        %1014 = vmatprep.subr.mxu0 %v918
        %1015 = vmatpush1.msra.mxu0 %v917
        %1016 = vmatprep.subr.mxu0 %v920
        %1017 = vmatpush1.msra.mxu0 %v919
        %1018 = vmatprep.subr.mxu0 %v922
        %1019 = vmatpush1.msra.mxu0 %v921
        %1020 = vmatprep.subr.mxu0 %v924
        %1021 = vmatpush1.msra.mxu0 %v923
        %1022 = vmatprep.subr.mxu0 %v926
        %1023 = vmatpush1.msra.mxu0 %v925
        %1024 = vmatprep.subr.mxu0 %v928
        %1025 = vmatpush1.msra.mxu0 %v927
        %1026 = vmatprep.subr.mxu0 %v930
        %1027 = vmatpush1.msra.mxu0 %v929
        %1028 = vmatprep.subr.mxu0 %v932
        %1029 = vmatpush1.msra.mxu0 %v931
        %1030 = vmatprep.subr.mxu0 %v934
        %1031 = vmatpush1.msra.mxu0 %v933
        %1032 = vmatprep.subr.mxu0 %v936
        %1033 = vmatpush1.msra.mxu0 %v935
        %1034 = vmatprep.subr.mxu0 %v938
        %1035 = vmatpush1.msra.mxu0 %v937
        %1036 = vmatprep.subr.mxu0 %v940
        %1037 = vmatpush1.msra.mxu0 %v939
        %1038 = vmatprep.subr.mxu0 %v942
        %1039 = vmatpush1.msra.mxu0 %v941
        %1040 = vmatprep.subr.mxu0 %v944
        %1041 = vmatpush1.msra.mxu0 %v943
        %1042 = vmatprep.subr.mxu0 %v946
        %1043 = vmatpush1.msra.mxu0 %v945
        %1044 = vmatprep.subr.mxu0 %v948
        %1045 = vmatpush1.msra.mxu0 %v947
        %1046 = vmatprep.subr.mxu0 %v950
        %1047 = vmatpush1.msra.mxu0 %v949
        %1048 = vmatprep.subr.mxu0 %v952
        %1049 = vmatpush1.msra.mxu0 %v951
        %1050 = vmatprep.subr.mxu0 %v954
        %1051 = vmatpush1.msra.mxu0 %v953
        %1052 = vmatprep.subr.mxu0 %v956
        %1053 = vmatpush1.msra.mxu0 %v955
        %1054 = vmatprep.subr.mxu0 %v958
        %1055 = vmatpush1.msra.mxu0 %v957
        %1056 = vmatprep.subr.mxu0 %v960
        %1057 = vmatpush1.msra.mxu0 %v959
        %1058 = vmatprep.subr.mxu0 %v962
        %1059 = vmatpush1.msra.mxu0 %v961
        %1060 = vmatprep.subr.mxu0 %v964
        %1061 = vmatpush1.msra.mxu0 %v963
        %1062 = vmatprep.subr.mxu0 0.0
        %1063 = vmatpush1.msra.mxu0 0.0
        %1064 = vmatprep.subr.mxu0 0.0
        %1065 = vmatpush1.msra.mxu0 0.0
        %1066 = vmatprep.mubr.f32.mxu0 %v967
        %1067 = vmatmul.mubr.f32.gmra.mrb[0].mxu0 %v881
        %v1068 = vpop.f32.mrb[0].mxu0
        %v1069 = vadd.f32 0.0, %v1068
        %v1070 = vpop.f32.mrb[0].mxu0
        %v1071 = vadd.f32 0.0, %v1070
        %1072 = vmatprep.mubr.f32.mxu0 %v970
        %1073 = vmatmul.mubr.f32.gmra.mrb[0].mxu0 %v883
        %v1074 = vpop.f32.mrb[0].mxu0
        %v1075 = vadd.f32 0.0, %v1074
        %v1076 = vpop.f32.mrb[0].mxu0
        %v1077 = vadd.f32 0.0, %v1076
        %1078 = vmatprep.mubr.f32.mxu0 %v973
        %1079 = vmatmul.mubr.f32.gmra.mrb[0].mxu0 %v885
        %v1080 = vpop.f32.mrb[0].mxu0
        %v1081 = vadd.f32 0.0, %v1080
        %v1082 = vpop.f32.mrb[0].mxu0
        %v1083 = vadd.f32 0.0, %v1082
        %1084 = vmatprep.mubr.f32.mxu0 %v976
        %1085 = vmatmul.mubr.f32.gmra.mrb[0].mxu0 %v887
        %v1086 = vpop.f32.mrb[0].mxu0
        %v1087 = vadd.f32 0.0, %v1086
        %v1088 = vpop.f32.mrb[0].mxu0
        %v1089 = vadd.f32 0.0, %v1088
        %1090 = vmatprep.mubr.f32.mxu0 %v979
        %1091 = vmatmul.mubr.f32.gmra.mrb[0].mxu0 %v889
        %v1092 = vpop.f32.mrb[0].mxu0
        %v1093 = vadd.f32 0.0, %v1092
        %v1094 = vpop.f32.mrb[0].mxu0
        %v1095 = vadd.f32 0.0, %v1094
        %1096 = vmatprep.mubr.f32.mxu0 %v982
        %1097 = vmatmul.mubr.f32.gmra.mrb[0].mxu0 %v891
        %v1098 = vpop.f32.mrb[0].mxu0
        %v1099 = vadd.f32 0.0, %v1098
        %v1100 = vpop.f32.mrb[0].mxu0
        %v1101 = vadd.f32 0.0, %v1100
        %1102 = vmatprep.mubr.f32.mxu0 %v985
        %1103 = vmatmul.mubr.f32.gmra.mrb[0].mxu0 %v893
        %v1104 = vpop.f32.mrb[0].mxu0
        %v1105 = vadd.f32 0.0, %v1104
        %v1106 = vpop.f32.mrb[0].mxu0
        %v1107 = vadd.f32 0.0, %v1106
        %1108 = vmatprep.mubr.f32.mxu0 %v988
        %1109 = vmatmul.mubr.f32.gmra.mrb[0].mxu0 %v895
        %v1110 = vpop.f32.mrb[0].mxu0
        %v1111 = vadd.f32 0.0, %v1110
        %v1112 = vpop.f32.mrb[0].mxu0
        %v1113 = vadd.f32 0.0, %v1112
        %1114 = vmatprep.mubr.f32.mxu0 %v991
        %1115 = vmatmul.mubr.f32.gmra.mrb[0].mxu0 %v897
        %v1116 = vpop.f32.mrb[0].mxu0
        %v1117 = vadd.f32 0.0, %v1116
        %v1118 = vpop.f32.mrb[0].mxu0
        %v1119 = vadd.f32 0.0, %v1118
        %1120 = vmatprep.mubr.f32.mxu0 %v994
        %1121 = vmatmul.mubr.f32.gmra.mrb[0].mxu0 %v899
        %v1122 = vpop.f32.mrb[0].mxu0
        %v1123 = vadd.f32 0.0, %v1122
        %v1124 = vpop.f32.mrb[0].mxu0
        %v1125 = vadd.f32 0.0, %v1124
        %1126 = vmatprep.mubr.f32.mxu0 %v997
        %1127 = vmatmul.mubr.f32.gmra.mrb[0].mxu0 %v901
        %v1128 = vpop.f32.mrb[0].mxu0
        %v1129 = vadd.f32 0.0, %v1128
        %v1130 = vpop.f32.mrb[0].mxu0
        %v1131 = vadd.f32 0.0, %v1130
        %1132 = vmatprep.mubr.f32.mxu0 %v1000
        %1133 = vmatmul.mubr.f32.gmra.mrb[0].mxu0 %v903
        %v1134 = vpop.f32.mrb[0].mxu0
        %v1135 = vadd.f32 0.0, %v1134
        %v1136 = vpop.f32.mrb[0].mxu0
        %v1137 = vadd.f32 0.0, %v1136
        %1138 = vdwg.mxu0
        %v1139 = vmax.f32 %v1069, %v1071
        %v1140 = vmax.f32 %v1075, %v1077
        %v1141 = vmax.f32 %v1081, %v1083
        %v1142 = vmax.f32 %v1087, %v1089
        %v1143 = vmax.f32 %v1093, %v1095
        %v1144 = vmax.f32 %v1099, %v1101
        %v1145 = vmax.f32 %v1105, %v1107
        %v1146 = vmax.f32 %v1111, %v1113
        %v1147 = vmax.f32 %v1117, %v1119
        %v1148 = vmax.f32 %v1123, %v1125
        %v1149 = vmax.f32 %v1129, %v1131
        %v1150 = vmax.f32 %v1135, %v1137
        %v1151 = vmax.f32 %v1139, 0.0
        %v1152 = vmax.f32 %v1140, 0.0
        %v1153 = vmax.f32 %v1141, 0.0
        %v1154 = vmax.f32 %v1142, 0.0
        %v1155 = vmax.f32 %v1143, 0.0
        %v1156 = vmax.f32 %v1144, 0.0
        %v1157 = vmax.f32 %v1145, 0.0
        %v1158 = vmax.f32 %v1146, 0.0
        %v1159 = vmax.f32 %v1147, 0.0
        %v1160 = vmax.f32 %v1148, 0.0
        %v1161 = vmax.f32 %v1149, 0.0
        %v1162 = vmax.f32 %v1150, 0.0
        %v1163 = vld [vmem:[%s4] sm:$0xff]
        %v1164 = vld [vmem:[%s4 + $0x8] sm:$0xff]
        %v1165 = vld [vmem:[%s4 + $0x10] sm:$0xff]
        %v1166 = vld [vmem:[%s4 + $0x18] sm:$0xff]
        %v1167 = vld [vmem:[%s4 + $0x20] sm:$0xff]
        %v1168 = vld [vmem:[%s4 + $0x28] sm:$0xff]
        %v1169 = vld [vmem:[%s4 + $0x30] sm:$0xff]
        %v1170 = vld [vmem:[%s4 + $0x38] sm:$0xff]
        %v1171 = vld [vmem:[%s4 + $0x40] sm:$0xff]
        %v1172 = vld [vmem:[%s4 + $0x48] sm:$0xff]
        %v1173 = vld [vmem:[%s4 + $0x50] sm:$0xff]
        %v1174 = vld [vmem:[%s4 + $0x58] sm:$0xff]
        %v1175 = vld [vmem:[%s4 + $0x60] sm:$0xff]
        %v1176 = vld [vmem:[%s4 + $0x68] sm:$0xff]
        %v1177 = vld [vmem:[%s4 + $0x70] sm:$0xff]
        %v1178 = vld [vmem:[%s4 + $0x78] sm:$0xff]
        %v1179 = vld [vmem:[%s4 + $0x80] sm:$0xff]
        %v1180 = vld [vmem:[%s4 + $0x88] sm:$0xff]
        %v1181 = vld [vmem:[%s4 + $0x90] sm:$0xff]
        %v1182 = vld [vmem:[%s4 + $0x98] sm:$0xff]
        %v1183 = vld [vmem:[%s4 + $0xa0] sm:$0xff]
        %v1184 = vld [vmem:[%s4 + $0xa8] sm:$0xff]
        %v1185 = vld [vmem:[%s4 + $0xb0] sm:$0xff]
        %v1186 = vld [vmem:[%s4 + $0xb8] sm:$0xff]
        %v1187 = vld [vmem:[%s4 + $0xc0] sm:$0xff]
        %v1188 = vld [vmem:[%s4 + $0xc8] sm:$0xff]
        %v1189 = vld [vmem:[%s4 + $0xd0] sm:$0xff]
        %v1190 = vld [vmem:[%s4 + $0xd8] sm:$0xff]
        %v1191 = vld [vmem:[%s4 + $0xe0] sm:$0xff]
        %v1192 = vld [vmem:[%s4 + $0xe8] sm:$0xff]
        %v1193 = vld [vmem:[%s4 + $0xf0] sm:$0xff]
        %v1194 = vld [vmem:[%s4 + $0xf8] sm:$0xff]
        %s1195 = scalar_lea.vmem %s4, 256
        %v1196 = vld [vmem:[%s1195] sm:$0xff]
        %v1197 = vld [vmem:[%s1195 + $0x8] sm:$0xff]
        %v1198 = vld [vmem:[%s1195 + $0x10] sm:$0xff]
        %v1199 = vld [vmem:[%s1195 + $0x18] sm:$0xff]
        %v1200 = vld [vmem:[%s1195 + $0x20] sm:$0xff]
        %v1201 = vld [vmem:[%s1195 + $0x28] sm:$0xff]
        %v1202 = vld [vmem:[%s1195 + $0x30] sm:$0xff]
        %v1203 = vld [vmem:[%s1195 + $0x38] sm:$0xff]
        %v1204 = vld [vmem:[%s1195 + $0x40] sm:$0xff]
        %v1205 = vld [vmem:[%s1195 + $0x48] sm:$0xff]
        %v1206 = vld [vmem:[%s1195 + $0x50] sm:$0xff]
        %v1207 = vld [vmem:[%s1195 + $0x58] sm:$0xff]
        %v1208 = vld [vmem:[%s1195 + $0x60] sm:$0xff]
        %v1209 = vld [vmem:[%s1195 + $0x68] sm:$0xff]
        %v1210 = vld [vmem:[%s1195 + $0x70] sm:$0xff]
        %v1211 = vld [vmem:[%s1195 + $0x78] sm:$0xff]
        %v1212 = vld [vmem:[%s1195 + $0x80] sm:$0xff]
        %v1213 = vld [vmem:[%s1195 + $0x88] sm:$0xff]
        %v1214 = vld [vmem:[%s1195 + $0x90] sm:$0xff]
        %v1215 = vld [vmem:[%s1195 + $0x98] sm:$0xff]
        %v1216 = vld [vmem:[%s1195 + $0xa0] sm:$0xff]
        %v1217 = vld [vmem:[%s1195 + $0xa8] sm:$0xff]
        %v1218 = vld [vmem:[%s1195 + $0xb0] sm:$0xff]
        %v1219 = vld [vmem:[%s1195 + $0xb8] sm:$0xff]
        %v1220 = vld [vmem:[%s1195 + $0xc0] sm:$0xff]
        %v1221 = vld [vmem:[%s1195 + $0xc8] sm:$0xff]
        %v1222 = vld [vmem:[%s1195 + $0xd0] sm:$0xff]
        %v1223 = vld [vmem:[%s1195 + $0xd8] sm:$0xff]
        %v1224 = vld [vmem:[%s1195 + $0xe0] sm:$0xff]
        %v1225 = vld [vmem:[%s1195 + $0xe8] sm:$0xff]
        %v1226 = vld [vmem:[%s1195 + $0xf0] sm:$0xff]
        %v1227 = vld [vmem:[%s1195 + $0xf8] sm:$0xff]
        %1228 = vmatprep.subr.mxu0 %v1197
        %1229 = vmatpush1.msra.mxu0 %v1196
        %1230 = vmatprep.subr.mxu0 %v1199
        %1231 = vmatpush1.msra.mxu0 %v1198
        %1232 = vmatprep.subr.mxu0 %v1201
        %1233 = vmatpush1.msra.mxu0 %v1200
        %1234 = vmatprep.subr.mxu0 %v1203
        %1235 = vmatpush1.msra.mxu0 %v1202
        %1236 = vmatprep.subr.mxu0 %v1205
        %1237 = vmatpush1.msra.mxu0 %v1204
        %1238 = vmatprep.subr.mxu0 %v1207
        %1239 = vmatpush1.msra.mxu0 %v1206
        %1240 = vmatprep.subr.mxu0 %v1209
        %1241 = vmatpush1.msra.mxu0 %v1208
        %1242 = vmatprep.subr.mxu0 %v1211
        %1243 = vmatpush1.msra.mxu0 %v1210
        %1244 = vmatprep.subr.mxu0 %v1213
        %1245 = vmatpush1.msra.mxu0 %v1212
        %1246 = vmatprep.subr.mxu0 %v1215
        %1247 = vmatpush1.msra.mxu0 %v1214
        %1248 = vmatprep.subr.mxu0 %v1217
        %1249 = vmatpush1.msra.mxu0 %v1216
        %1250 = vmatprep.subr.mxu0 %v1219
        %1251 = vmatpush1.msra.mxu0 %v1218
        %1252 = vmatprep.subr.mxu0 %v1221
        %1253 = vmatpush1.msra.mxu0 %v1220
        %1254 = vmatprep.subr.mxu0 %v1223
        %1255 = vmatpush1.msra.mxu0 %v1222
        %1256 = vmatprep.subr.mxu0 %v1225
        %1257 = vmatpush1.msra.mxu0 %v1224
        %1258 = vmatprep.subr.mxu0 %v1227
        %1259 = vmatpush1.msra.mxu0 %v1226
        %1260 = vmatprep.subr.mxu0 0.0
        %1261 = vmatpush1.msra.mxu0 0.0
        %1262 = vmatprep.subr.mxu0 0.0
        %1263 = vmatpush1.msra.mxu0 0.0
        %1264 = vmatprep.subr.mxu0 0.0
        %1265 = vmatpush1.msra.mxu0 0.0
        %1266 = vmatprep.subr.mxu0 0.0
        %1267 = vmatpush1.msra.mxu0 0.0
        %1268 = vmatprep.subr.mxu0 0.0
        %1269 = vmatpush1.msra.mxu0 0.0
        %1270 = vmatprep.subr.mxu0 0.0
        %1271 = vmatpush1.msra.mxu0 0.0
        %1272 = vmatprep.subr.mxu0 0.0
        %1273 = vmatpush1.msra.mxu0 0.0
        %1274 = vmatprep.subr.mxu0 0.0
        %1275 = vmatpush1.msra.mxu0 0.0
        %1276 = vmatprep.subr.mxu0 0.0
        %1277 = vmatpush1.msra.mxu0 0.0
        %1278 = vmatprep.subr.mxu0 0.0
        %1279 = vmatpush1.msra.mxu0 0.0
        %1280 = vmatprep.subr.mxu0 0.0
        %1281 = vmatpush1.msra.mxu0 0.0
        %1282 = vmatprep.subr.mxu0 0.0
        %1283 = vmatpush1.msra.mxu0 0.0
        %1284 = vmatprep.subr.mxu0 0.0
        %1285 = vmatpush1.msra.mxu0 0.0
        %1286 = vmatprep.subr.mxu0 0.0
        %1287 = vmatpush1.msra.mxu0 0.0
        %1288 = vmatprep.subr.mxu0 0.0
        %1289 = vmatpush1.msra.mxu0 0.0
        %1290 = vmatprep.subr.mxu0 0.0
        %1291 = vmatpush1.msra.mxu0 0.0
        %1292 = vmatprep.mubr.f32.mxu0 0.0
        %1293 = vmatmul.mubr.f32.gmra.mrb[0].mxu0 %v1152
        %v1294 = vpop.f32.mrb[0].mxu0
        %v1295 = vadd.f32 0.0, %v1294
        %v1296 = vpop.f32.mrb[0].mxu0
        %v1297 = vadd.f32 0.0, %v1296
        %1298 = vmatprep.mubr.f32.mxu0 0.0
        %1299 = vmatmul.mubr.f32.gmra.mrb[0].mxu0 %v1153
        %v1300 = vpop.f32.mrb[0].mxu0
        %v1301 = vadd.f32 0.0, %v1300
        %v1302 = vpop.f32.mrb[0].mxu0
        %v1303 = vadd.f32 0.0, %v1302
        %1304 = vmatprep.mubr.f32.mxu0 0.0
        %1305 = vmatmul.mubr.f32.gmra.mrb[0].mxu0 %v1154
        %v1306 = vpop.f32.mrb[0].mxu0
        %v1307 = vadd.f32 0.0, %v1306
        %v1308 = vpop.f32.mrb[0].mxu0
        %v1309 = vadd.f32 0.0, %v1308
        %1310 = vmatprep.mubr.f32.mxu0 0.0
        %1311 = vmatmul.mubr.f32.gmra.mrb[0].mxu0 %v1155
        %v1312 = vpop.f32.mrb[0].mxu0
        %v1313 = vadd.f32 0.0, %v1312
        %v1314 = vpop.f32.mrb[0].mxu0
        %v1315 = vadd.f32 0.0, %v1314
        %1316 = vmatprep.mubr.f32.mxu0 0.0
        %1317 = vmatmul.mubr.f32.gmra.mrb[0].mxu0 %v1156
        %v1318 = vpop.f32.mrb[0].mxu0
        %v1319 = vadd.f32 0.0, %v1318
        %v1320 = vpop.f32.mrb[0].mxu0
        %v1321 = vadd.f32 0.0, %v1320
        %1322 = vmatprep.mubr.f32.mxu0 0.0
        %1323 = vmatmul.mubr.f32.gmra.mrb[0].mxu0 %v1157
        %v1324 = vpop.f32.mrb[0].mxu0
        %v1325 = vadd.f32 0.0, %v1324
        %v1326 = vpop.f32.mrb[0].mxu0
        %v1327 = vadd.f32 0.0, %v1326
        %1328 = vmatprep.mubr.f32.mxu0 0.0
        %1329 = vmatmul.mubr.f32.gmra.mrb[0].mxu0 %v1158
        %v1330 = vpop.f32.mrb[0].mxu0
        %v1331 = vadd.f32 0.0, %v1330
        %v1332 = vpop.f32.mrb[0].mxu0
        %v1333 = vadd.f32 0.0, %v1332
        %1334 = vmatprep.mubr.f32.mxu0 0.0
        %1335 = vmatmul.mubr.f32.gmra.mrb[0].mxu0 %v1159
        %v1336 = vpop.f32.mrb[0].mxu0
        %v1337 = vadd.f32 0.0, %v1336
        %v1338 = vpop.f32.mrb[0].mxu0
        %v1339 = vadd.f32 0.0, %v1338
        %1340 = vdwg.mxu0
        %1341 = vmatprep.subr.mxu0 %v1164
        %1342 = vmatpush1.msra.mxu0 %v1163
        %1343 = vmatprep.subr.mxu0 %v1166
        %1344 = vmatpush1.msra.mxu0 %v1165
        %1345 = vmatprep.subr.mxu0 %v1168
        %1346 = vmatpush1.msra.mxu0 %v1167
        %1347 = vmatprep.subr.mxu0 %v1170
        %1348 = vmatpush1.msra.mxu0 %v1169
        %1349 = vmatprep.subr.mxu0 %v1172
        %1350 = vmatpush1.msra.mxu0 %v1171
        %1351 = vmatprep.subr.mxu0 %v1174
        %1352 = vmatpush1.msra.mxu0 %v1173
        %1353 = vmatprep.subr.mxu0 %v1176
        %1354 = vmatpush1.msra.mxu0 %v1175
        %1355 = vmatprep.subr.mxu0 %v1178
        %1356 = vmatpush1.msra.mxu0 %v1177
        %1357 = vmatprep.subr.mxu0 %v1180
        %1358 = vmatpush1.msra.mxu0 %v1179
        %1359 = vmatprep.subr.mxu0 %v1182
        %1360 = vmatpush1.msra.mxu0 %v1181
        %1361 = vmatprep.subr.mxu0 %v1184
        %1362 = vmatpush1.msra.mxu0 %v1183
        %1363 = vmatprep.subr.mxu0 %v1186
        %1364 = vmatpush1.msra.mxu0 %v1185
        %1365 = vmatprep.subr.mxu0 %v1188
        %1366 = vmatpush1.msra.mxu0 %v1187
        %1367 = vmatprep.subr.mxu0 %v1190
        %1368 = vmatpush1.msra.mxu0 %v1189
        %1369 = vmatprep.subr.mxu0 %v1192
        %1370 = vmatpush1.msra.mxu0 %v1191
        %1371 = vmatprep.subr.mxu0 %v1194
        %1372 = vmatpush1.msra.mxu0 %v1193
        %1373 = vmatprep.subr.mxu0 0.0
        %1374 = vmatpush1.msra.mxu0 0.0
        %1375 = vmatprep.subr.mxu0 0.0
        %1376 = vmatpush1.msra.mxu0 0.0
        %1377 = vmatprep.subr.mxu0 0.0
        %1378 = vmatpush1.msra.mxu0 0.0
        %1379 = vmatprep.subr.mxu0 0.0
        %1380 = vmatpush1.msra.mxu0 0.0
        %1381 = vmatprep.subr.mxu0 0.0
        %1382 = vmatpush1.msra.mxu0 0.0
        %1383 = vmatprep.subr.mxu0 0.0
        %1384 = vmatpush1.msra.mxu0 0.0
        %1385 = vmatprep.subr.mxu0 0.0
        %1386 = vmatpush1.msra.mxu0 0.0
        %1387 = vmatprep.subr.mxu0 0.0
        %1388 = vmatpush1.msra.mxu0 0.0
        %1389 = vmatprep.subr.mxu0 0.0
        %1390 = vmatpush1.msra.mxu0 0.0
        %1391 = vmatprep.subr.mxu0 0.0
        %1392 = vmatpush1.msra.mxu0 0.0
        %1393 = vmatprep.subr.mxu0 0.0
        %1394 = vmatpush1.msra.mxu0 0.0
        %1395 = vmatprep.subr.mxu0 0.0
        %1396 = vmatpush1.msra.mxu0 0.0
        %1397 = vmatprep.subr.mxu0 0.0
        %1398 = vmatpush1.msra.mxu0 0.0
        %1399 = vmatprep.subr.mxu0 0.0
        %1400 = vmatpush1.msra.mxu0 0.0
        %1401 = vmatprep.subr.mxu0 0.0
        %1402 = vmatpush1.msra.mxu0 0.0
        %1403 = vmatprep.subr.mxu0 0.0
        %1404 = vmatpush1.msra.mxu0 0.0
        %1405 = vmatprep.mubr.f32.mxu0 0.0
        %1406 = vmatmul.mubr.f32.gmra.mrb[0].mxu0 %v1151
        %v1407 = vpop.f32.mrb[0].mxu0
        %v1408 = vadd.f32 %v1295, %v1407
        %v1409 = vpop.f32.mrb[0].mxu0
        %v1410 = vadd.f32 %v1297, %v1409
        %1411 = vmatprep.mubr.f32.mxu0 0.0
        %1412 = vmatmul.mubr.f32.gmra.mrb[0].mxu0 %v1152
        %v1413 = vpop.f32.mrb[0].mxu0
        %v1414 = vadd.f32 %v1301, %v1413
        %v1415 = vpop.f32.mrb[0].mxu0
        %v1416 = vadd.f32 %v1303, %v1415
        %1417 = vmatprep.mubr.f32.mxu0 0.0
        %1418 = vmatmul.mubr.f32.gmra.mrb[0].mxu0 %v1153
        %v1419 = vpop.f32.mrb[0].mxu0
        %v1420 = vadd.f32 %v1307, %v1419
        %v1421 = vpop.f32.mrb[0].mxu0
        %v1422 = vadd.f32 %v1309, %v1421
        %1423 = vmatprep.mubr.f32.mxu0 0.0
        %1424 = vmatmul.mubr.f32.gmra.mrb[0].mxu0 %v1154
        %v1425 = vpop.f32.mrb[0].mxu0
        %v1426 = vadd.f32 %v1313, %v1425
        %v1427 = vpop.f32.mrb[0].mxu0
        %v1428 = vadd.f32 %v1315, %v1427
        %1429 = vmatprep.mubr.f32.mxu0 0.0
        %1430 = vmatmul.mubr.f32.gmra.mrb[0].mxu0 %v1155
        %v1431 = vpop.f32.mrb[0].mxu0
        %v1432 = vadd.f32 %v1319, %v1431
        %v1433 = vpop.f32.mrb[0].mxu0
        %v1434 = vadd.f32 %v1321, %v1433
        %1435 = vmatprep.mubr.f32.mxu0 0.0
        %1436 = vmatmul.mubr.f32.gmra.mrb[0].mxu0 %v1156
        %v1437 = vpop.f32.mrb[0].mxu0
        %v1438 = vadd.f32 %v1325, %v1437
        %v1439 = vpop.f32.mrb[0].mxu0
        %v1440 = vadd.f32 %v1327, %v1439
        %1441 = vmatprep.mubr.f32.mxu0 0.0
        %1442 = vmatmul.mubr.f32.gmra.mrb[0].mxu0 %v1157
        %v1443 = vpop.f32.mrb[0].mxu0
        %v1444 = vadd.f32 %v1331, %v1443
        %v1445 = vpop.f32.mrb[0].mxu0
        %v1446 = vadd.f32 %v1333, %v1445
        %1447 = vmatprep.mubr.f32.mxu0 0.0
        %1448 = vmatmul.mubr.f32.gmra.mrb[0].mxu0 %v1158
        %v1449 = vpop.f32.mrb[0].mxu0
        %v1450 = vadd.f32 %v1337, %v1449
        %v1451 = vpop.f32.mrb[0].mxu0
        %v1452 = vadd.f32 %v1339, %v1451
        %1453 = vdwg.mxu0
        %s1454 = scalar_lea.vmem %s4, 512
        %v1455 = vld [vmem:[%s1454] sm:$0xff]
        %v1456 = vld [vmem:[%s1454 + $0x8] sm:$0xff]
        %v1457 = vld [vmem:[%s1454 + $0x10] sm:$0xff]
        %v1458 = vld [vmem:[%s1454 + $0x18] sm:$0xff]
        %v1459 = vld [vmem:[%s1454 + $0x20] sm:$0xff]
        %v1460 = vld [vmem:[%s1454 + $0x28] sm:$0xff]
        %v1461 = vld [vmem:[%s1454 + $0x30] sm:$0xff]
        %v1462 = vld [vmem:[%s1454 + $0x38] sm:$0xff]
        %v1463 = vld [vmem:[%s1454 + $0x40] sm:$0xff]
        %v1464 = vld [vmem:[%s1454 + $0x48] sm:$0xff]
        %v1465 = vld [vmem:[%s1454 + $0x50] sm:$0xff]
        %v1466 = vld [vmem:[%s1454 + $0x58] sm:$0xff]
        %v1467 = vld [vmem:[%s1454 + $0x60] sm:$0xff]
        %v1468 = vld [vmem:[%s1454 + $0x68] sm:$0xff]
        %v1469 = vld [vmem:[%s1454 + $0x70] sm:$0xff]
        %v1470 = vld [vmem:[%s1454 + $0x78] sm:$0xff]
        %v1471 = vld [vmem:[%s1454 + $0x80] sm:$0xff]
        %v1472 = vld [vmem:[%s1454 + $0x88] sm:$0xff]
        %v1473 = vld [vmem:[%s1454 + $0x90] sm:$0xff]
        %v1474 = vld [vmem:[%s1454 + $0x98] sm:$0xff]
        %v1475 = vld [vmem:[%s1454 + $0xa0] sm:$0xff]
        %v1476 = vld [vmem:[%s1454 + $0xa8] sm:$0xff]
        %v1477 = vld [vmem:[%s1454 + $0xb0] sm:$0xff]
        %v1478 = vld [vmem:[%s1454 + $0xb8] sm:$0xff]
        %v1479 = vld [vmem:[%s1454 + $0xc0] sm:$0xff]
        %v1480 = vld [vmem:[%s1454 + $0xc8] sm:$0xff]
        %v1481 = vld [vmem:[%s1454 + $0xd0] sm:$0xff]
        %v1482 = vld [vmem:[%s1454 + $0xd8] sm:$0xff]
        %v1483 = vld [vmem:[%s1454 + $0xe0] sm:$0xff]
        %v1484 = vld [vmem:[%s1454 + $0xe8] sm:$0xff]
        %v1485 = vld [vmem:[%s1454 + $0xf0] sm:$0xff]
        %v1486 = vld [vmem:[%s1454 + $0xf8] sm:$0xff]
        %1487 = vmatprep.subr.mxu0 %v1456
        %1488 = vmatpush1.msra.mxu0 %v1455
        %1489 = vmatprep.subr.mxu0 %v1458
        %1490 = vmatpush1.msra.mxu0 %v1457
        %1491 = vmatprep.subr.mxu0 %v1460
        %1492 = vmatpush1.msra.mxu0 %v1459
        %1493 = vmatprep.subr.mxu0 %v1462
        %1494 = vmatpush1.msra.mxu0 %v1461
        %1495 = vmatprep.subr.mxu0 %v1464
        %1496 = vmatpush1.msra.mxu0 %v1463
        %1497 = vmatprep.subr.mxu0 %v1466
        %1498 = vmatpush1.msra.mxu0 %v1465
        %1499 = vmatprep.subr.mxu0 %v1468
        %1500 = vmatpush1.msra.mxu0 %v1467
        %1501 = vmatprep.subr.mxu0 %v1470
        %1502 = vmatpush1.msra.mxu0 %v1469
        %1503 = vmatprep.subr.mxu0 %v1472
        %1504 = vmatpush1.msra.mxu0 %v1471
        %1505 = vmatprep.subr.mxu0 %v1474
        %1506 = vmatpush1.msra.mxu0 %v1473
        %1507 = vmatprep.subr.mxu0 %v1476
        %1508 = vmatpush1.msra.mxu0 %v1475
        %1509 = vmatprep.subr.mxu0 %v1478
        %1510 = vmatpush1.msra.mxu0 %v1477
        %1511 = vmatprep.subr.mxu0 %v1480
        %1512 = vmatpush1.msra.mxu0 %v1479
        %1513 = vmatprep.subr.mxu0 %v1482
        %1514 = vmatpush1.msra.mxu0 %v1481
        %1515 = vmatprep.subr.mxu0 %v1484
        %1516 = vmatpush1.msra.mxu0 %v1483
        %1517 = vmatprep.subr.mxu0 %v1486
        %1518 = vmatpush1.msra.mxu0 %v1485
        %1519 = vmatprep.subr.mxu0 0.0
        %1520 = vmatpush1.msra.mxu0 0.0
        %1521 = vmatprep.subr.mxu0 0.0
        %1522 = vmatpush1.msra.mxu0 0.0
        %1523 = vmatprep.subr.mxu0 0.0
        %1524 = vmatpush1.msra.mxu0 0.0
        %1525 = vmatprep.subr.mxu0 0.0
        %1526 = vmatpush1.msra.mxu0 0.0
        %1527 = vmatprep.subr.mxu0 0.0
        %1528 = vmatpush1.msra.mxu0 0.0
        %1529 = vmatprep.subr.mxu0 0.0
        %1530 = vmatpush1.msra.mxu0 0.0
        %1531 = vmatprep.subr.mxu0 0.0
        %1532 = vmatpush1.msra.mxu0 0.0
        %1533 = vmatprep.subr.mxu0 0.0
        %1534 = vmatpush1.msra.mxu0 0.0
        %1535 = vmatprep.subr.mxu0 0.0
        %1536 = vmatpush1.msra.mxu0 0.0
        %1537 = vmatprep.subr.mxu0 0.0
        %1538 = vmatpush1.msra.mxu0 0.0
        %1539 = vmatprep.subr.mxu0 0.0
        %1540 = vmatpush1.msra.mxu0 0.0
        %1541 = vmatprep.subr.mxu0 0.0
        %1542 = vmatpush1.msra.mxu0 0.0
        %1543 = vmatprep.subr.mxu0 0.0
        %1544 = vmatpush1.msra.mxu0 0.0
        %1545 = vmatprep.subr.mxu0 0.0
        %1546 = vmatpush1.msra.mxu0 0.0
        %1547 = vmatprep.subr.mxu0 0.0
        %1548 = vmatpush1.msra.mxu0 0.0
        %1549 = vmatprep.subr.mxu0 0.0
        %1550 = vmatpush1.msra.mxu0 0.0
        %1551 = vmatprep.mubr.f32.mxu0 0.0
        %1552 = vmatmul.mubr.f32.gmra.mrb[0].mxu0 %v1153
        %v1553 = vpop.f32.mrb[0].mxu0
        %v1554 = vadd.f32 0.0, %v1553
        %v1555 = vpop.f32.mrb[0].mxu0
        %v1556 = vadd.f32 0.0, %v1555
        %1557 = vmatprep.mubr.f32.mxu0 0.0
        %1558 = vmatmul.mubr.f32.gmra.mrb[0].mxu0 %v1154
        %v1559 = vpop.f32.mrb[0].mxu0
        %v1560 = vadd.f32 0.0, %v1559
        %v1561 = vpop.f32.mrb[0].mxu0
        %v1562 = vadd.f32 0.0, %v1561
        %1563 = vmatprep.mubr.f32.mxu0 0.0
        %1564 = vmatmul.mubr.f32.gmra.mrb[0].mxu0 %v1155
        %v1565 = vpop.f32.mrb[0].mxu0
        %v1566 = vadd.f32 0.0, %v1565
        %v1567 = vpop.f32.mrb[0].mxu0
        %v1568 = vadd.f32 0.0, %v1567
        %1569 = vmatprep.mubr.f32.mxu0 0.0
        %1570 = vmatmul.mubr.f32.gmra.mrb[0].mxu0 %v1156
        %v1571 = vpop.f32.mrb[0].mxu0
        %v1572 = vadd.f32 0.0, %v1571
        %v1573 = vpop.f32.mrb[0].mxu0
        %v1574 = vadd.f32 0.0, %v1573
        %1575 = vmatprep.mubr.f32.mxu0 0.0
        %1576 = vmatmul.mubr.f32.gmra.mrb[0].mxu0 %v1157
        %v1577 = vpop.f32.mrb[0].mxu0
        %v1578 = vadd.f32 0.0, %v1577
        %v1579 = vpop.f32.mrb[0].mxu0
        %v1580 = vadd.f32 0.0, %v1579
        %1581 = vmatprep.mubr.f32.mxu0 0.0
        %1582 = vmatmul.mubr.f32.gmra.mrb[0].mxu0 %v1158
        %v1583 = vpop.f32.mrb[0].mxu0
        %v1584 = vadd.f32 0.0, %v1583
        %v1585 = vpop.f32.mrb[0].mxu0
        %v1586 = vadd.f32 0.0, %v1585
        %1587 = vmatprep.mubr.f32.mxu0 0.0
        %1588 = vmatmul.mubr.f32.gmra.mrb[0].mxu0 %v1159
        %v1589 = vpop.f32.mrb[0].mxu0
        %v1590 = vadd.f32 0.0, %v1589
        %v1591 = vpop.f32.mrb[0].mxu0
        %v1592 = vadd.f32 0.0, %v1591
        %1593 = vmatprep.mubr.f32.mxu0 0.0
        %1594 = vmatmul.mubr.f32.gmra.mrb[0].mxu0 %v1160
        %v1595 = vpop.f32.mrb[0].mxu0
        %v1596 = vadd.f32 0.0, %v1595
        %v1597 = vpop.f32.mrb[0].mxu0
        %v1598 = vadd.f32 0.0, %v1597
        %1599 = vdwg.mxu0
        %v1600 = vadd.f32 %v1408, %v1554
        %v1601 = vadd.f32 %v1410, %v1556
        %v1602 = vadd.f32 %v1414, %v1560
        %v1603 = vadd.f32 %v1416, %v1562
        %v1604 = vadd.f32 %v1420, %v1566
        %v1605 = vadd.f32 %v1422, %v1568
        %v1606 = vadd.f32 %v1426, %v1572
        %v1607 = vadd.f32 %v1428, %v1574
        %v1608 = vadd.f32 %v1432, %v1578
        %v1609 = vadd.f32 %v1434, %v1580
        %v1610 = vadd.f32 %v1438, %v1584
        %v1611 = vadd.f32 %v1440, %v1586
        %v1612 = vadd.f32 %v1444, %v1590
        %v1613 = vadd.f32 %v1446, %v1592
        %v1614 = vadd.f32 %v1450, %v1596
        %v1615 = vadd.f32 %v1452, %v1598
        %s1616 = scalar_lea.vmem %s4, 768
        %v1617 = vld [vmem:[%s1616] sm:$0xff]
        %v1618 = vld [vmem:[%s1616 + $0x8] sm:$0xff]
        %v1619 = vld [vmem:[%s1616 + $0x10] sm:$0xff]
        %v1620 = vld [vmem:[%s1616 + $0x18] sm:$0xff]
        %v1621 = vld [vmem:[%s1616 + $0x20] sm:$0xff]
        %v1622 = vld [vmem:[%s1616 + $0x28] sm:$0xff]
        %v1623 = vld [vmem:[%s1616 + $0x30] sm:$0xff]
        %v1624 = vld [vmem:[%s1616 + $0x38] sm:$0xff]
        %v1625 = vld [vmem:[%s1616 + $0x40] sm:$0xff]
        %v1626 = vld [vmem:[%s1616 + $0x48] sm:$0xff]
        %v1627 = vld [vmem:[%s1616 + $0x50] sm:$0xff]
        %v1628 = vld [vmem:[%s1616 + $0x58] sm:$0xff]
        %v1629 = vld [vmem:[%s1616 + $0x60] sm:$0xff]
        %v1630 = vld [vmem:[%s1616 + $0x68] sm:$0xff]
        %v1631 = vld [vmem:[%s1616 + $0x70] sm:$0xff]
        %v1632 = vld [vmem:[%s1616 + $0x78] sm:$0xff]
        %v1633 = vld [vmem:[%s1616 + $0x80] sm:$0xff]
        %v1634 = vld [vmem:[%s1616 + $0x88] sm:$0xff]
        %v1635 = vld [vmem:[%s1616 + $0x90] sm:$0xff]
        %v1636 = vld [vmem:[%s1616 + $0x98] sm:$0xff]
        %v1637 = vld [vmem:[%s1616 + $0xa0] sm:$0xff]
        %v1638 = vld [vmem:[%s1616 + $0xa8] sm:$0xff]
        %v1639 = vld [vmem:[%s1616 + $0xb0] sm:$0xff]
        %v1640 = vld [vmem:[%s1616 + $0xb8] sm:$0xff]
        %v1641 = vld [vmem:[%s1616 + $0xc0] sm:$0xff]
        %v1642 = vld [vmem:[%s1616 + $0xc8] sm:$0xff]
        %v1643 = vld [vmem:[%s1616 + $0xd0] sm:$0xff]
        %v1644 = vld [vmem:[%s1616 + $0xd8] sm:$0xff]
        %v1645 = vld [vmem:[%s1616 + $0xe0] sm:$0xff]
        %v1646 = vld [vmem:[%s1616 + $0xe8] sm:$0xff]
        %v1647 = vld [vmem:[%s1616 + $0xf0] sm:$0xff]
        %v1648 = vld [vmem:[%s1616 + $0xf8] sm:$0xff]
        %1649 = vmatprep.subr.mxu0 %v1618
        %1650 = vmatpush1.msra.mxu0 %v1617
        %1651 = vmatprep.subr.mxu0 %v1620
        %1652 = vmatpush1.msra.mxu0 %v1619
        %1653 = vmatprep.subr.mxu0 %v1622
        %1654 = vmatpush1.msra.mxu0 %v1621
        %1655 = vmatprep.subr.mxu0 %v1624
        %1656 = vmatpush1.msra.mxu0 %v1623
        %1657 = vmatprep.subr.mxu0 %v1626
        %1658 = vmatpush1.msra.mxu0 %v1625
        %1659 = vmatprep.subr.mxu0 %v1628
        %1660 = vmatpush1.msra.mxu0 %v1627
        %1661 = vmatprep.subr.mxu0 %v1630
        %1662 = vmatpush1.msra.mxu0 %v1629
        %1663 = vmatprep.subr.mxu0 %v1632
        %1664 = vmatpush1.msra.mxu0 %v1631
        %1665 = vmatprep.subr.mxu0 %v1634
        %1666 = vmatpush1.msra.mxu0 %v1633
        %1667 = vmatprep.subr.mxu0 %v1636
        %1668 = vmatpush1.msra.mxu0 %v1635
        %1669 = vmatprep.subr.mxu0 %v1638
        %1670 = vmatpush1.msra.mxu0 %v1637
        %1671 = vmatprep.subr.mxu0 %v1640
        %1672 = vmatpush1.msra.mxu0 %v1639
        %1673 = vmatprep.subr.mxu0 %v1642
        %1674 = vmatpush1.msra.mxu0 %v1641
        %1675 = vmatprep.subr.mxu0 %v1644
        %1676 = vmatpush1.msra.mxu0 %v1643
        %1677 = vmatprep.subr.mxu0 %v1646
        %1678 = vmatpush1.msra.mxu0 %v1645
        %1679 = vmatprep.subr.mxu0 %v1648
        %1680 = vmatpush1.msra.mxu0 %v1647
        %1681 = vmatprep.subr.mxu0 0.0
        %1682 = vmatpush1.msra.mxu0 0.0
        %1683 = vmatprep.subr.mxu0 0.0
        %1684 = vmatpush1.msra.mxu0 0.0
        %1685 = vmatprep.subr.mxu0 0.0
        %1686 = vmatpush1.msra.mxu0 0.0
        %1687 = vmatprep.subr.mxu0 0.0
        %1688 = vmatpush1.msra.mxu0 0.0
        %1689 = vmatprep.subr.mxu0 0.0
        %1690 = vmatpush1.msra.mxu0 0.0
        %1691 = vmatprep.subr.mxu0 0.0
        %1692 = vmatpush1.msra.mxu0 0.0
        %1693 = vmatprep.subr.mxu0 0.0
        %1694 = vmatpush1.msra.mxu0 0.0
        %1695 = vmatprep.subr.mxu0 0.0
        %1696 = vmatpush1.msra.mxu0 0.0
        %1697 = vmatprep.subr.mxu0 0.0
        %1698 = vmatpush1.msra.mxu0 0.0
        %1699 = vmatprep.subr.mxu0 0.0
        %1700 = vmatpush1.msra.mxu0 0.0
        %1701 = vmatprep.subr.mxu0 0.0
        %1702 = vmatpush1.msra.mxu0 0.0
        %1703 = vmatprep.subr.mxu0 0.0
        %1704 = vmatpush1.msra.mxu0 0.0
        %1705 = vmatprep.subr.mxu0 0.0
        %1706 = vmatpush1.msra.mxu0 0.0
        %1707 = vmatprep.subr.mxu0 0.0
        %1708 = vmatpush1.msra.mxu0 0.0
        %1709 = vmatprep.subr.mxu0 0.0
        %1710 = vmatpush1.msra.mxu0 0.0
        %1711 = vmatprep.subr.mxu0 0.0
        %1712 = vmatpush1.msra.mxu0 0.0
        %1713 = vmatprep.mubr.f32.mxu0 0.0
        %1714 = vmatmul.mubr.f32.gmra.mrb[0].mxu0 %v1154
        %v1715 = vpop.f32.mrb[0].mxu0
        %v1716 = vadd.f32 0.0, %v1715
        %v1717 = vpop.f32.mrb[0].mxu0
        %v1718 = vadd.f32 0.0, %v1717
        %1719 = vmatprep.mubr.f32.mxu0 0.0
        %1720 = vmatmul.mubr.f32.gmra.mrb[0].mxu0 %v1155
        %v1721 = vpop.f32.mrb[0].mxu0
        %v1722 = vadd.f32 0.0, %v1721
        %v1723 = vpop.f32.mrb[0].mxu0
        %v1724 = vadd.f32 0.0, %v1723
        %1725 = vmatprep.mubr.f32.mxu0 0.0
        %1726 = vmatmul.mubr.f32.gmra.mrb[0].mxu0 %v1156
        %v1727 = vpop.f32.mrb[0].mxu0
        %v1728 = vadd.f32 0.0, %v1727
        %v1729 = vpop.f32.mrb[0].mxu0
        %v1730 = vadd.f32 0.0, %v1729
        %1731 = vmatprep.mubr.f32.mxu0 0.0
        %1732 = vmatmul.mubr.f32.gmra.mrb[0].mxu0 %v1157
        %v1733 = vpop.f32.mrb[0].mxu0
        %v1734 = vadd.f32 0.0, %v1733
        %v1735 = vpop.f32.mrb[0].mxu0
        %v1736 = vadd.f32 0.0, %v1735
        %1737 = vmatprep.mubr.f32.mxu0 0.0
        %1738 = vmatmul.mubr.f32.gmra.mrb[0].mxu0 %v1158
        %v1739 = vpop.f32.mrb[0].mxu0
        %v1740 = vadd.f32 0.0, %v1739
        %v1741 = vpop.f32.mrb[0].mxu0
        %v1742 = vadd.f32 0.0, %v1741
        %1743 = vmatprep.mubr.f32.mxu0 0.0
        %1744 = vmatmul.mubr.f32.gmra.mrb[0].mxu0 %v1159
        %v1745 = vpop.f32.mrb[0].mxu0
        %v1746 = vadd.f32 0.0, %v1745
        %v1747 = vpop.f32.mrb[0].mxu0
        %v1748 = vadd.f32 0.0, %v1747
        %1749 = vmatprep.mubr.f32.mxu0 0.0
        %1750 = vmatmul.mubr.f32.gmra.mrb[0].mxu0 %v1160
        %v1751 = vpop.f32.mrb[0].mxu0
        %v1752 = vadd.f32 0.0, %v1751
        %v1753 = vpop.f32.mrb[0].mxu0
        %v1754 = vadd.f32 0.0, %v1753
        %1755 = vmatprep.mubr.f32.mxu0 0.0
        %1756 = vmatmul.mubr.f32.gmra.mrb[0].mxu0 %v1161
        %v1757 = vpop.f32.mrb[0].mxu0
        %v1758 = vadd.f32 0.0, %v1757
        %v1759 = vpop.f32.mrb[0].mxu0
        %v1760 = vadd.f32 0.0, %v1759
        %1761 = vdwg.mxu0
        %v1762 = vadd.f32 %v1600, %v1716
        %v1763 = vadd.f32 %v1601, %v1718
        %v1764 = vadd.f32 %v1602, %v1722
        %v1765 = vadd.f32 %v1603, %v1724
        %v1766 = vadd.f32 %v1604, %v1728
        %v1767 = vadd.f32 %v1605, %v1730
        %v1768 = vadd.f32 %v1606, %v1734
        %v1769 = vadd.f32 %v1607, %v1736
        %v1770 = vadd.f32 %v1608, %v1740
        %v1771 = vadd.f32 %v1609, %v1742
        %v1772 = vadd.f32 %v1610, %v1746
        %v1773 = vadd.f32 %v1611, %v1748
        %v1774 = vadd.f32 %v1612, %v1752
        %v1775 = vadd.f32 %v1613, %v1754
        %v1776 = vadd.f32 %v1614, %v1758
        %v1777 = vadd.f32 %v1615, %v1760
        %s1778 = scalar_lea.vmem %s4, 1024
        %v1779 = vld [vmem:[%s1778] sm:$0xff]
        %v1780 = vld [vmem:[%s1778 + $0x8] sm:$0xff]
        %v1781 = vld [vmem:[%s1778 + $0x10] sm:$0xff]
        %v1782 = vld [vmem:[%s1778 + $0x18] sm:$0xff]
        %v1783 = vld [vmem:[%s1778 + $0x20] sm:$0xff]
        %v1784 = vld [vmem:[%s1778 + $0x28] sm:$0xff]
        %v1785 = vld [vmem:[%s1778 + $0x30] sm:$0xff]
        %v1786 = vld [vmem:[%s1778 + $0x38] sm:$0xff]
        %v1787 = vld [vmem:[%s1778 + $0x40] sm:$0xff]
        %v1788 = vld [vmem:[%s1778 + $0x48] sm:$0xff]
        %v1789 = vld [vmem:[%s1778 + $0x50] sm:$0xff]
        %v1790 = vld [vmem:[%s1778 + $0x58] sm:$0xff]
        %v1791 = vld [vmem:[%s1778 + $0x60] sm:$0xff]
        %v1792 = vld [vmem:[%s1778 + $0x68] sm:$0xff]
        %v1793 = vld [vmem:[%s1778 + $0x70] sm:$0xff]
        %v1794 = vld [vmem:[%s1778 + $0x78] sm:$0xff]
        %v1795 = vld [vmem:[%s1778 + $0x80] sm:$0xff]
        %v1796 = vld [vmem:[%s1778 + $0x88] sm:$0xff]
        %v1797 = vld [vmem:[%s1778 + $0x90] sm:$0xff]
        %v1798 = vld [vmem:[%s1778 + $0x98] sm:$0xff]
        %v1799 = vld [vmem:[%s1778 + $0xa0] sm:$0xff]
        %v1800 = vld [vmem:[%s1778 + $0xa8] sm:$0xff]
        %v1801 = vld [vmem:[%s1778 + $0xb0] sm:$0xff]
        %v1802 = vld [vmem:[%s1778 + $0xb8] sm:$0xff]
        %v1803 = vld [vmem:[%s1778 + $0xc0] sm:$0xff]
        %v1804 = vld [vmem:[%s1778 + $0xc8] sm:$0xff]
        %v1805 = vld [vmem:[%s1778 + $0xd0] sm:$0xff]
        %v1806 = vld [vmem:[%s1778 + $0xd8] sm:$0xff]
        %v1807 = vld [vmem:[%s1778 + $0xe0] sm:$0xff]
        %v1808 = vld [vmem:[%s1778 + $0xe8] sm:$0xff]
        %v1809 = vld [vmem:[%s1778 + $0xf0] sm:$0xff]
        %v1810 = vld [vmem:[%s1778 + $0xf8] sm:$0xff]
        %1811 = vmatprep.subr.mxu0 %v1780
        %1812 = vmatpush1.msra.mxu0 %v1779
        %1813 = vmatprep.subr.mxu0 %v1782
        %1814 = vmatpush1.msra.mxu0 %v1781
        %1815 = vmatprep.subr.mxu0 %v1784
        %1816 = vmatpush1.msra.mxu0 %v1783
        %1817 = vmatprep.subr.mxu0 %v1786
        %1818 = vmatpush1.msra.mxu0 %v1785
        %1819 = vmatprep.subr.mxu0 %v1788
        %1820 = vmatpush1.msra.mxu0 %v1787
        %1821 = vmatprep.subr.mxu0 %v1790
        %1822 = vmatpush1.msra.mxu0 %v1789
        %1823 = vmatprep.subr.mxu0 %v1792
        %1824 = vmatpush1.msra.mxu0 %v1791
        %1825 = vmatprep.subr.mxu0 %v1794
        %1826 = vmatpush1.msra.mxu0 %v1793
        %1827 = vmatprep.subr.mxu0 %v1796
        %1828 = vmatpush1.msra.mxu0 %v1795
        %1829 = vmatprep.subr.mxu0 %v1798
        %1830 = vmatpush1.msra.mxu0 %v1797
        %1831 = vmatprep.subr.mxu0 %v1800
        %1832 = vmatpush1.msra.mxu0 %v1799
        %1833 = vmatprep.subr.mxu0 %v1802
        %1834 = vmatpush1.msra.mxu0 %v1801
        %1835 = vmatprep.subr.mxu0 %v1804
        %1836 = vmatpush1.msra.mxu0 %v1803
        %1837 = vmatprep.subr.mxu0 %v1806
        %1838 = vmatpush1.msra.mxu0 %v1805
        %1839 = vmatprep.subr.mxu0 %v1808
        %1840 = vmatpush1.msra.mxu0 %v1807
        %1841 = vmatprep.subr.mxu0 %v1810
        %1842 = vmatpush1.msra.mxu0 %v1809
        %1843 = vmatprep.subr.mxu0 0.0
        %1844 = vmatpush1.msra.mxu0 0.0
        %1845 = vmatprep.subr.mxu0 0.0
        %1846 = vmatpush1.msra.mxu0 0.0
        %1847 = vmatprep.subr.mxu0 0.0
        %1848 = vmatpush1.msra.mxu0 0.0
        %1849 = vmatprep.subr.mxu0 0.0
        %1850 = vmatpush1.msra.mxu0 0.0
        %1851 = vmatprep.subr.mxu0 0.0
        %1852 = vmatpush1.msra.mxu0 0.0
        %1853 = vmatprep.subr.mxu0 0.0
        %1854 = vmatpush1.msra.mxu0 0.0
        %1855 = vmatprep.subr.mxu0 0.0
        %1856 = vmatpush1.msra.mxu0 0.0
        %1857 = vmatprep.subr.mxu0 0.0
        %1858 = vmatpush1.msra.mxu0 0.0
        %1859 = vmatprep.subr.mxu0 0.0
        %1860 = vmatpush1.msra.mxu0 0.0
        %1861 = vmatprep.subr.mxu0 0.0
        %1862 = vmatpush1.msra.mxu0 0.0
        %1863 = vmatprep.subr.mxu0 0.0
        %1864 = vmatpush1.msra.mxu0 0.0
        %1865 = vmatprep.subr.mxu0 0.0
        %1866 = vmatpush1.msra.mxu0 0.0
        %1867 = vmatprep.subr.mxu0 0.0
        %1868 = vmatpush1.msra.mxu0 0.0
        %1869 = vmatprep.subr.mxu0 0.0
        %1870 = vmatpush1.msra.mxu0 0.0
        %1871 = vmatprep.subr.mxu0 0.0
        %1872 = vmatpush1.msra.mxu0 0.0
        %1873 = vmatprep.subr.mxu0 0.0
        %1874 = vmatpush1.msra.mxu0 0.0
        %1875 = vmatprep.mubr.f32.mxu0 0.0
        %1876 = vmatmul.mubr.f32.gmra.mrb[0].mxu0 %v1155
        %v1877 = vpop.f32.mrb[0].mxu0
        %v1878 = vadd.f32 0.0, %v1877
        %v1879 = vpop.f32.mrb[0].mxu0
        %v1880 = vadd.f32 0.0, %v1879
        %1881 = vmatprep.mubr.f32.mxu0 0.0
        %1882 = vmatmul.mubr.f32.gmra.mrb[0].mxu0 %v1156
        %v1883 = vpop.f32.mrb[0].mxu0
        %v1884 = vadd.f32 0.0, %v1883
        %v1885 = vpop.f32.mrb[0].mxu0
        %v1886 = vadd.f32 0.0, %v1885
        %1887 = vmatprep.mubr.f32.mxu0 0.0
        %1888 = vmatmul.mubr.f32.gmra.mrb[0].mxu0 %v1157
        %v1889 = vpop.f32.mrb[0].mxu0
        %v1890 = vadd.f32 0.0, %v1889
        %v1891 = vpop.f32.mrb[0].mxu0
        %v1892 = vadd.f32 0.0, %v1891
        %1893 = vmatprep.mubr.f32.mxu0 0.0
        %1894 = vmatmul.mubr.f32.gmra.mrb[0].mxu0 %v1158
        %v1895 = vpop.f32.mrb[0].mxu0
        %v1896 = vadd.f32 0.0, %v1895
        %v1897 = vpop.f32.mrb[0].mxu0
        %v1898 = vadd.f32 0.0, %v1897
        %1899 = vmatprep.mubr.f32.mxu0 0.0
        %1900 = vmatmul.mubr.f32.gmra.mrb[0].mxu0 %v1159
        %v1901 = vpop.f32.mrb[0].mxu0
        %v1902 = vadd.f32 0.0, %v1901
        %v1903 = vpop.f32.mrb[0].mxu0
        %v1904 = vadd.f32 0.0, %v1903
        %1905 = vmatprep.mubr.f32.mxu0 0.0
        %1906 = vmatmul.mubr.f32.gmra.mrb[0].mxu0 %v1160
        %v1907 = vpop.f32.mrb[0].mxu0
        %v1908 = vadd.f32 0.0, %v1907
        %v1909 = vpop.f32.mrb[0].mxu0
        %v1910 = vadd.f32 0.0, %v1909
        %1911 = vmatprep.mubr.f32.mxu0 0.0
        %1912 = vmatmul.mubr.f32.gmra.mrb[0].mxu0 %v1161
        %v1913 = vpop.f32.mrb[0].mxu0
        %v1914 = vadd.f32 0.0, %v1913
        %v1915 = vpop.f32.mrb[0].mxu0
        %v1916 = vadd.f32 0.0, %v1915
        %1917 = vmatprep.mubr.f32.mxu0 0.0
        %1918 = vmatmul.mubr.f32.gmra.mrb[0].mxu0 %v1162
        %v1919 = vpop.f32.mrb[0].mxu0
        %v1920 = vadd.f32 0.0, %v1919
        %v1921 = vpop.f32.mrb[0].mxu0
        %v1922 = vadd.f32 0.0, %v1921
        %1923 = vdwg.mxu0
        %v1924 = vadd.f32 %v1762, %v1878
        %v1925 = vadd.f32 %v1763, %v1880
        %v1926 = vadd.f32 %v1764, %v1884
        %v1927 = vadd.f32 %v1765, %v1886
        %v1928 = vadd.f32 %v1766, %v1890
        %v1929 = vadd.f32 %v1767, %v1892
        %v1930 = vadd.f32 %v1768, %v1896
        %v1931 = vadd.f32 %v1769, %v1898
        %v1932 = vadd.f32 %v1770, %v1902
        %v1933 = vadd.f32 %v1771, %v1904
        %v1934 = vadd.f32 %v1772, %v1908
        %v1935 = vadd.f32 %v1773, %v1910
        %v1936 = vadd.f32 %v1774, %v1914
        %v1937 = vadd.f32 %v1775, %v1916
        %v1938 = vadd.f32 %v1776, %v1920
        %v1939 = vadd.f32 %v1777, %v1922
        %v1940 = vld [vmem:[%s5] sm:$0x3]
        %v1942 = vlaneseq
        %v1943 = vshrl.u32 %v1942, 7
        %v1944 = vsub.s32 0, %v1943
        %v1945 = vrot.slane %v1940, %v1944
        %v1946 = vlaneseq
        %v1947 = vshrl.u32 %v1946, 7
        %v1948 = vsub.s32 1, %v1947
        %v1949 = vrot.slane %v1940, %v1948
        %v1952 = vadd.f32 %v1924, %v1945
        %v1953 = vadd.f32 %v1925, %v1949
        %v1954 = vadd.f32 %v1926, %v1945
        %v1955 = vadd.f32 %v1927, %v1949
        %v1956 = vadd.f32 %v1928, %v1945
        %v1957 = vadd.f32 %v1929, %v1949
        %v1958 = vadd.f32 %v1930, %v1945
        %v1959 = vadd.f32 %v1931, %v1949
        %v1960 = vadd.f32 %v1932, %v1945
        %v1961 = vadd.f32 %v1933, %v1949
        %v1962 = vadd.f32 %v1934, %v1945
        %v1963 = vadd.f32 %v1935, %v1949
        %v1964 = vadd.f32 %v1936, %v1945
        %v1965 = vadd.f32 %v1937, %v1949
        %v1966 = vadd.f32 %v1938, %v1945
        %v1967 = vadd.f32 %v1939, %v1949
        %v1968 = vmax.f32 %v1952, %v1954
        %v1969 = vmax.f32 %v1953, %v1955
        %v1970 = vmax.f32 %v1956, %v1958
        %v1971 = vmax.f32 %v1957, %v1959
        %v1972 = vmax.f32 %v1960, %v1962
        %v1973 = vmax.f32 %v1961, %v1963
        %v1974 = vmax.f32 %v1964, %v1966
        %v1975 = vmax.f32 %v1965, %v1967
        %v1976 = vld [vmem:[%s6] sm:$0xff]
        %v1977 = vld [vmem:[%s6 + $0x8] sm:$0xff]
        %v1978 = vld [vmem:[%s6 + $0x10] sm:$0xff]
        %v1979 = vld [vmem:[%s6 + $0x18] sm:$0xff]
        %v1980 = vld [vmem:[%s6 + $0x20] sm:$0xff]
        %v1981 = vld [vmem:[%s6 + $0x28] sm:$0xff]
        %v1982 = vld [vmem:[%s6 + $0x30] sm:$0xff]
        %v1983 = vld [vmem:[%s6 + $0x38] sm:$0xff]
        %v1984 = vld [vmem:[%s6 + $0x40] sm:$0xff]
        %v1985 = vld [vmem:[%s6 + $0x48] sm:$0xff]
        %v1986 = vld [vmem:[%s6 + $0x50] sm:$0xff]
        %v1987 = vld [vmem:[%s6 + $0x58] sm:$0xff]
        %v1988 = vld [vmem:[%s6 + $0x60] sm:$0xff]
        %v1989 = vld [vmem:[%s6 + $0x68] sm:$0xff]
        %v1990 = vld [vmem:[%s6 + $0x70] sm:$0xff]
        %v1991 = vld [vmem:[%s6 + $0x78] sm:$0xff]
        %v1992 = vld [vmem:[%s6 + $0x80] sm:$0xff]
        %v1993 = vld [vmem:[%s6 + $0x88] sm:$0xff]
        %v1994 = vld [vmem:[%s6 + $0x90] sm:$0xff]
        %v1995 = vld [vmem:[%s6 + $0x98] sm:$0xff]
        %v1996 = vld [vmem:[%s6 + $0xa0] sm:$0xff]
        %v1997 = vld [vmem:[%s6 + $0xa8] sm:$0xff]
        %v1998 = vld [vmem:[%s6 + $0xb0] sm:$0xff]
        %v1999 = vld [vmem:[%s6 + $0xb8] sm:$0xff]
        %v2000 = vld [vmem:[%s6 + $0xc0] sm:$0xff]
        %v2001 = vld [vmem:[%s6 + $0xc8] sm:$0xff]
        %v2002 = vld [vmem:[%s6 + $0xd0] sm:$0xff]
        %v2003 = vld [vmem:[%s6 + $0xd8] sm:$0xff]
        %v2004 = vld [vmem:[%s6 + $0xe0] sm:$0xff]
        %v2005 = vld [vmem:[%s6 + $0xe8] sm:$0xff]
        %v2006 = vld [vmem:[%s6 + $0xf0] sm:$0xff]
        %v2007 = vld [vmem:[%s6 + $0xf8] sm:$0xff]
        %v2008 = vld [vmem:[%s6 + $0x100] sm:$0xff]
        %v2009 = vld [vmem:[%s6 + $0x108] sm:$0xff]
        %v2010 = vld [vmem:[%s6 + $0x110] sm:$0xff]
        %v2011 = vld [vmem:[%s6 + $0x118] sm:$0xff]
        %v2012 = vld [vmem:[%s6 + $0x120] sm:$0xff]
        %v2013 = vld [vmem:[%s6 + $0x128] sm:$0xff]
        %v2014 = vld [vmem:[%s6 + $0x130] sm:$0xff]
        %v2015 = vld [vmem:[%s6 + $0x138] sm:$0xff]
        %v2017 = vsel %vm599, %v1969, 0
        %v2020 = vsel %vm599, %v1971, 0
        %v2023 = vsel %vm599, %v1973, 0
        %v2026 = vsel %vm599, %v1975, 0
        %2028 = vmatprep.subr.mxu0 %v1977
        %2029 = vmatpush1.msra.mxu0 %v1976
        %2030 = vmatprep.subr.mxu0 %v1979
        %2031 = vmatpush1.msra.mxu0 %v1978
        %2032 = vmatprep.subr.mxu0 %v1981
        %2033 = vmatpush1.msra.mxu0 %v1980
        %2034 = vmatprep.subr.mxu0 %v1983
        %2035 = vmatpush1.msra.mxu0 %v1982
        %2036 = vmatprep.subr.mxu0 %v1985
        %2037 = vmatpush1.msra.mxu0 %v1984
        %2038 = vmatprep.subr.mxu0 %v1987
        %2039 = vmatpush1.msra.mxu0 %v1986
        %2040 = vmatprep.subr.mxu0 %v1989
        %2041 = vmatpush1.msra.mxu0 %v1988
        %2042 = vmatprep.subr.mxu0 %v1991
        %2043 = vmatpush1.msra.mxu0 %v1990
        %2044 = vmatprep.subr.mxu0 %v1993
        %2045 = vmatpush1.msra.mxu0 %v1992
        %2046 = vmatprep.subr.mxu0 %v1995
        %2047 = vmatpush1.msra.mxu0 %v1994
        %2048 = vmatprep.subr.mxu0 %v1997
        %2049 = vmatpush1.msra.mxu0 %v1996
        %2050 = vmatprep.subr.mxu0 %v1999
        %2051 = vmatpush1.msra.mxu0 %v1998
        %2052 = vmatprep.subr.mxu0 %v2001
        %2053 = vmatpush1.msra.mxu0 %v2000
        %2054 = vmatprep.subr.mxu0 %v2003
        %2055 = vmatpush1.msra.mxu0 %v2002
        %2056 = vmatprep.subr.mxu0 %v2005
        %2057 = vmatpush1.msra.mxu0 %v2004
        %2058 = vmatprep.subr.mxu0 %v2007
        %2059 = vmatpush1.msra.mxu0 %v2006
        %2060 = vmatprep.subr.mxu0 %v2009
        %2061 = vmatpush1.msra.mxu0 %v2008
        %2062 = vmatprep.subr.mxu0 %v2011
        %2063 = vmatpush1.msra.mxu0 %v2010
        %2064 = vmatprep.subr.mxu0 %v2013
        %2065 = vmatpush1.msra.mxu0 %v2012
        %2066 = vmatprep.subr.mxu0 %v2015
        %2067 = vmatpush1.msra.mxu0 %v2014
        %2068 = vmatprep.subr.mxu0 0.0
        %2069 = vmatpush1.msra.mxu0 0.0
        %2070 = vmatprep.subr.mxu0 0.0
        %2071 = vmatpush1.msra.mxu0 0.0
        %2072 = vmatprep.subr.mxu0 0.0
        %2073 = vmatpush1.msra.mxu0 0.0
        %2074 = vmatprep.subr.mxu0 0.0
        %2075 = vmatpush1.msra.mxu0 0.0
        %2076 = vmatprep.subr.mxu0 0.0
        %2077 = vmatpush1.msra.mxu0 0.0
        %2078 = vmatprep.subr.mxu0 0.0
        %2079 = vmatpush1.msra.mxu0 0.0
        %2080 = vmatprep.subr.mxu0 0.0
        %2081 = vmatpush1.msra.mxu0 0.0
        %2082 = vmatprep.subr.mxu0 0.0
        %2083 = vmatpush1.msra.mxu0 0.0
        %2084 = vmatprep.subr.mxu0 0.0
        %2085 = vmatpush1.msra.mxu0 0.0
        %2086 = vmatprep.subr.mxu0 0.0
        %2087 = vmatpush1.msra.mxu0 0.0
        %2088 = vmatprep.subr.mxu0 0.0
        %2089 = vmatpush1.msra.mxu0 0.0
        %2090 = vmatprep.subr.mxu0 0.0
        %2091 = vmatpush1.msra.mxu0 0.0
        %2092 = vmatprep.mubr.f32.mxu0 %v2017
        %2093 = vmatmul.mubr.f32.gmra.mrb[0].mxu0 %v1968
        %v2094 = vpop.f32.mrb[0].mxu0
        %v2095 = vadd.f32 0.0, %v2094
        %v2096 = vpop.f32.mrb[0].mxu0
        %v2097 = vadd.f32 0.0, %v2096
        %2098 = vmatprep.mubr.f32.mxu0 %v2020
        %2099 = vmatmul.mubr.f32.gmra.mrb[0].mxu0 %v1970
        %v2100 = vpop.f32.mrb[0].mxu0
        %v2101 = vadd.f32 0.0, %v2100
        %v2102 = vpop.f32.mrb[0].mxu0
        %v2103 = vadd.f32 0.0, %v2102
        %2104 = vmatprep.mubr.f32.mxu0 %v2023
        %2105 = vmatmul.mubr.f32.gmra.mrb[0].mxu0 %v1972
        %v2106 = vpop.f32.mrb[0].mxu0
        %v2107 = vadd.f32 0.0, %v2106
        %v2108 = vpop.f32.mrb[0].mxu0
        %v2109 = vadd.f32 0.0, %v2108
        %2110 = vmatprep.mubr.f32.mxu0 %v2026
        %2111 = vmatmul.mubr.f32.gmra.mrb[0].mxu0 %v1974
        %v2112 = vpop.f32.mrb[0].mxu0
        %v2113 = vadd.f32 0.0, %v2112
        %v2114 = vpop.f32.mrb[0].mxu0
        %v2115 = vadd.f32 0.0, %v2114
        %2116 = vdwg.mxu0
        %v2117 = vmax.f32 %v2095, %v2097
        %v2118 = vmax.f32 %v2101, %v2103
        %v2119 = vmax.f32 %v2107, %v2109
        %v2120 = vmax.f32 %v2113, %v2115
        %v2121 = vmax.f32 %v2117, 0.0
        %v2122 = vmax.f32 %v2118, 0.0
        %v2123 = vmax.f32 %v2119, 0.0
        %v2124 = vmax.f32 %v2120, 0.0
        %v2125 = vld [vmem:[%s7] sm:$0xff]
        %v2126 = vld [vmem:[%s7 + $0x8] sm:$0xff]
        %v2127 = vld [vmem:[%s7 + $0x10] sm:$0xff]
        %v2128 = vld [vmem:[%s7 + $0x18] sm:$0xff]
        %v2129 = vld [vmem:[%s7 + $0x20] sm:$0xff]
        %v2130 = vld [vmem:[%s7 + $0x28] sm:$0xff]
        %v2131 = vld [vmem:[%s7 + $0x30] sm:$0xff]
        %v2132 = vld [vmem:[%s7 + $0x38] sm:$0xff]
        %v2133 = vld [vmem:[%s7 + $0x40] sm:$0xff]
        %v2134 = vld [vmem:[%s7 + $0x48] sm:$0xff]
        %v2135 = vld [vmem:[%s7 + $0x50] sm:$0xff]
        %v2136 = vld [vmem:[%s7 + $0x58] sm:$0xff]
        %v2137 = vld [vmem:[%s7 + $0x60] sm:$0xff]
        %v2138 = vld [vmem:[%s7 + $0x68] sm:$0xff]
        %v2139 = vld [vmem:[%s7 + $0x70] sm:$0xff]
        %v2140 = vld [vmem:[%s7 + $0x78] sm:$0xff]
        %s2141 = scalar_lea.vmem %s7, 128
        %v2142 = vld [vmem:[%s2141] sm:$0xff]
        %v2143 = vld [vmem:[%s2141 + $0x8] sm:$0xff]
        %v2144 = vld [vmem:[%s2141 + $0x10] sm:$0xff]
        %v2145 = vld [vmem:[%s2141 + $0x18] sm:$0xff]
        %v2146 = vld [vmem:[%s2141 + $0x20] sm:$0xff]
        %v2147 = vld [vmem:[%s2141 + $0x28] sm:$0xff]
        %v2148 = vld [vmem:[%s2141 + $0x30] sm:$0xff]
        %v2149 = vld [vmem:[%s2141 + $0x38] sm:$0xff]
        %v2150 = vld [vmem:[%s2141 + $0x40] sm:$0xff]
        %v2151 = vld [vmem:[%s2141 + $0x48] sm:$0xff]
        %v2152 = vld [vmem:[%s2141 + $0x50] sm:$0xff]
        %v2153 = vld [vmem:[%s2141 + $0x58] sm:$0xff]
        %v2154 = vld [vmem:[%s2141 + $0x60] sm:$0xff]
        %v2155 = vld [vmem:[%s2141 + $0x68] sm:$0xff]
        %v2156 = vld [vmem:[%s2141 + $0x70] sm:$0xff]
        %v2157 = vld [vmem:[%s2141 + $0x78] sm:$0xff]
        %2158 = vmatprep.subr.mxu0 0.0
        %2159 = vmatpush1.msra.mxu0 %v2142
        %2160 = vmatprep.subr.mxu0 0.0
        %2161 = vmatpush1.msra.mxu0 %v2143
        %2162 = vmatprep.subr.mxu0 0.0
        %2163 = vmatpush1.msra.mxu0 %v2144
        %2164 = vmatprep.subr.mxu0 0.0
        %2165 = vmatpush1.msra.mxu0 %v2145
        %2166 = vmatprep.subr.mxu0 0.0
        %2167 = vmatpush1.msra.mxu0 %v2146
        %2168 = vmatprep.subr.mxu0 0.0
        %2169 = vmatpush1.msra.mxu0 %v2147
        %2170 = vmatprep.subr.mxu0 0.0
        %2171 = vmatpush1.msra.mxu0 %v2148
        %2172 = vmatprep.subr.mxu0 0.0
        %2173 = vmatpush1.msra.mxu0 %v2149
        %2174 = vmatprep.subr.mxu0 0.0
        %2175 = vmatpush1.msra.mxu0 %v2150
        %2176 = vmatprep.subr.mxu0 0.0
        %2177 = vmatpush1.msra.mxu0 %v2151
        %2178 = vmatprep.subr.mxu0 0.0
        %2179 = vmatpush1.msra.mxu0 %v2152
        %2180 = vmatprep.subr.mxu0 0.0
        %2181 = vmatpush1.msra.mxu0 %v2153
        %2182 = vmatprep.subr.mxu0 0.0
        %2183 = vmatpush1.msra.mxu0 %v2154
        %2184 = vmatprep.subr.mxu0 0.0
        %2185 = vmatpush1.msra.mxu0 %v2155
        %2186 = vmatprep.subr.mxu0 0.0
        %2187 = vmatpush1.msra.mxu0 %v2156
        %2188 = vmatprep.subr.mxu0 0.0
        %2189 = vmatpush1.msra.mxu0 %v2157
        %2190 = vmatprep.subr.mxu0 0.0
        %2191 = vmatpush1.msra.mxu0 0.0
        %2192 = vmatprep.subr.mxu0 0.0
        %2193 = vmatpush1.msra.mxu0 0.0
        %2194 = vmatprep.subr.mxu0 0.0
        %2195 = vmatpush1.msra.mxu0 0.0
        %2196 = vmatprep.subr.mxu0 0.0
        %2197 = vmatpush1.msra.mxu0 0.0
        %2198 = vmatprep.subr.mxu0 0.0
        %2199 = vmatpush1.msra.mxu0 0.0
        %2200 = vmatprep.subr.mxu0 0.0
        %2201 = vmatpush1.msra.mxu0 0.0
        %2202 = vmatprep.subr.mxu0 0.0
        %2203 = vmatpush1.msra.mxu0 0.0
        %2204 = vmatprep.subr.mxu0 0.0
        %2205 = vmatpush1.msra.mxu0 0.0
        %2206 = vmatprep.subr.mxu0 0.0
        %2207 = vmatpush1.msra.mxu0 0.0
        %2208 = vmatprep.subr.mxu0 0.0
        %2209 = vmatpush1.msra.mxu0 0.0
        %2210 = vmatprep.subr.mxu0 0.0
        %2211 = vmatpush1.msra.mxu0 0.0
        %2212 = vmatprep.subr.mxu0 0.0
        %2213 = vmatpush1.msra.mxu0 0.0
        %2214 = vmatprep.subr.mxu0 0.0
        %2215 = vmatpush1.msra.mxu0 0.0
        %2216 = vmatprep.subr.mxu0 0.0
        %2217 = vmatpush1.msra.mxu0 0.0
        %2218 = vmatprep.subr.mxu0 0.0
        %2219 = vmatpush1.msra.mxu0 0.0
        %2220 = vmatprep.subr.mxu0 0.0
        %2221 = vmatpush1.msra.mxu0 0.0
        %2222 = vmatprep.mubr.f32.mxu0 0.0
        %2223 = vmatmul.mubr.f32.gmra.mrb[0].mxu0 %v2122
        %v2224 = vpop.f32.mrb[0].mxu0
        %v2225 = vadd.f32 0.0, %v2224
        %v2226 = vpop.f32.mrb[0].mxu0
        %2227 = vdwg.mxu0
        %2228 = vmatprep.subr.mxu0 0.0
        %2229 = vmatpush1.msra.mxu0 %v2125
        %2230 = vmatprep.subr.mxu0 0.0
        %2231 = vmatpush1.msra.mxu0 %v2126
        %2232 = vmatprep.subr.mxu0 0.0
        %2233 = vmatpush1.msra.mxu0 %v2127
        %2234 = vmatprep.subr.mxu0 0.0
        %2235 = vmatpush1.msra.mxu0 %v2128
        %2236 = vmatprep.subr.mxu0 0.0
        %2237 = vmatpush1.msra.mxu0 %v2129
        %2238 = vmatprep.subr.mxu0 0.0
        %2239 = vmatpush1.msra.mxu0 %v2130
        %2240 = vmatprep.subr.mxu0 0.0
        %2241 = vmatpush1.msra.mxu0 %v2131
        %2242 = vmatprep.subr.mxu0 0.0
        %2243 = vmatpush1.msra.mxu0 %v2132
        %2244 = vmatprep.subr.mxu0 0.0
        %2245 = vmatpush1.msra.mxu0 %v2133
        %2246 = vmatprep.subr.mxu0 0.0
        %2247 = vmatpush1.msra.mxu0 %v2134
        %2248 = vmatprep.subr.mxu0 0.0
        %2249 = vmatpush1.msra.mxu0 %v2135
        %2250 = vmatprep.subr.mxu0 0.0
        %2251 = vmatpush1.msra.mxu0 %v2136
        %2252 = vmatprep.subr.mxu0 0.0
        %2253 = vmatpush1.msra.mxu0 %v2137
        %2254 = vmatprep.subr.mxu0 0.0
        %2255 = vmatpush1.msra.mxu0 %v2138
        %2256 = vmatprep.subr.mxu0 0.0
        %2257 = vmatpush1.msra.mxu0 %v2139
        %2258 = vmatprep.subr.mxu0 0.0
        %2259 = vmatpush1.msra.mxu0 %v2140
        %2260 = vmatprep.subr.mxu0 0.0
        %2261 = vmatpush1.msra.mxu0 0.0
        %2262 = vmatprep.subr.mxu0 0.0
        %2263 = vmatpush1.msra.mxu0 0.0
        %2264 = vmatprep.subr.mxu0 0.0
        %2265 = vmatpush1.msra.mxu0 0.0
        %2266 = vmatprep.subr.mxu0 0.0
        %2267 = vmatpush1.msra.mxu0 0.0
        %2268 = vmatprep.subr.mxu0 0.0
        %2269 = vmatpush1.msra.mxu0 0.0
        %2270 = vmatprep.subr.mxu0 0.0
        %2271 = vmatpush1.msra.mxu0 0.0
        %2272 = vmatprep.subr.mxu0 0.0
        %2273 = vmatpush1.msra.mxu0 0.0
        %2274 = vmatprep.subr.mxu0 0.0
        %2275 = vmatpush1.msra.mxu0 0.0
        %2276 = vmatprep.subr.mxu0 0.0
        %2277 = vmatpush1.msra.mxu0 0.0
        %2278 = vmatprep.subr.mxu0 0.0
        %2279 = vmatpush1.msra.mxu0 0.0
        %2280 = vmatprep.subr.mxu0 0.0
        %2281 = vmatpush1.msra.mxu0 0.0
        %2282 = vmatprep.subr.mxu0 0.0
        %2283 = vmatpush1.msra.mxu0 0.0
        %2284 = vmatprep.subr.mxu0 0.0
        %2285 = vmatpush1.msra.mxu0 0.0
        %2286 = vmatprep.subr.mxu0 0.0
        %2287 = vmatpush1.msra.mxu0 0.0
        %2288 = vmatprep.subr.mxu0 0.0
        %2289 = vmatpush1.msra.mxu0 0.0
        %2290 = vmatprep.subr.mxu0 0.0
        %2291 = vmatpush1.msra.mxu0 0.0
        %2292 = vmatprep.mubr.f32.mxu0 0.0
        %2293 = vmatmul.mubr.f32.gmra.mrb[0].mxu0 %v2121
        %v2294 = vpop.f32.mrb[0].mxu0
        %v2295 = vadd.f32 %v2225, %v2294
        %v2296 = vpop.f32.mrb[0].mxu0
        %2297 = vdwg.mxu0
        %s2298 = scalar_lea.vmem %s7, 256
        %v2299 = vld [vmem:[%s2298] sm:$0xff]
        %v2300 = vld [vmem:[%s2298 + $0x8] sm:$0xff]
        %v2301 = vld [vmem:[%s2298 + $0x10] sm:$0xff]
        %v2302 = vld [vmem:[%s2298 + $0x18] sm:$0xff]
        %v2303 = vld [vmem:[%s2298 + $0x20] sm:$0xff]
        %v2304 = vld [vmem:[%s2298 + $0x28] sm:$0xff]
        %v2305 = vld [vmem:[%s2298 + $0x30] sm:$0xff]
        %v2306 = vld [vmem:[%s2298 + $0x38] sm:$0xff]
        %v2307 = vld [vmem:[%s2298 + $0x40] sm:$0xff]
        %v2308 = vld [vmem:[%s2298 + $0x48] sm:$0xff]
        %v2309 = vld [vmem:[%s2298 + $0x50] sm:$0xff]
        %v2310 = vld [vmem:[%s2298 + $0x58] sm:$0xff]
        %v2311 = vld [vmem:[%s2298 + $0x60] sm:$0xff]
        %v2312 = vld [vmem:[%s2298 + $0x68] sm:$0xff]
        %v2313 = vld [vmem:[%s2298 + $0x70] sm:$0xff]
        %v2314 = vld [vmem:[%s2298 + $0x78] sm:$0xff]
        %2315 = vmatprep.subr.mxu0 0.0
        %2316 = vmatpush1.msra.mxu0 %v2299
        %2317 = vmatprep.subr.mxu0 0.0
        %2318 = vmatpush1.msra.mxu0 %v2300
        %2319 = vmatprep.subr.mxu0 0.0
        %2320 = vmatpush1.msra.mxu0 %v2301
        %2321 = vmatprep.subr.mxu0 0.0
        %2322 = vmatpush1.msra.mxu0 %v2302
        %2323 = vmatprep.subr.mxu0 0.0
        %2324 = vmatpush1.msra.mxu0 %v2303
        %2325 = vmatprep.subr.mxu0 0.0
        %2326 = vmatpush1.msra.mxu0 %v2304
        %2327 = vmatprep.subr.mxu0 0.0
        %2328 = vmatpush1.msra.mxu0 %v2305
        %2329 = vmatprep.subr.mxu0 0.0
        %2330 = vmatpush1.msra.mxu0 %v2306
        %2331 = vmatprep.subr.mxu0 0.0
        %2332 = vmatpush1.msra.mxu0 %v2307
        %2333 = vmatprep.subr.mxu0 0.0
        %2334 = vmatpush1.msra.mxu0 %v2308
        %2335 = vmatprep.subr.mxu0 0.0
        %2336 = vmatpush1.msra.mxu0 %v2309
        %2337 = vmatprep.subr.mxu0 0.0
        %2338 = vmatpush1.msra.mxu0 %v2310
        %2339 = vmatprep.subr.mxu0 0.0
        %2340 = vmatpush1.msra.mxu0 %v2311
        %2341 = vmatprep.subr.mxu0 0.0
        %2342 = vmatpush1.msra.mxu0 %v2312
        %2343 = vmatprep.subr.mxu0 0.0
        %2344 = vmatpush1.msra.mxu0 %v2313
        %2345 = vmatprep.subr.mxu0 0.0
        %2346 = vmatpush1.msra.mxu0 %v2314
        %2347 = vmatprep.subr.mxu0 0.0
        %2348 = vmatpush1.msra.mxu0 0.0
        %2349 = vmatprep.subr.mxu0 0.0
        %2350 = vmatpush1.msra.mxu0 0.0
        %2351 = vmatprep.subr.mxu0 0.0
        %2352 = vmatpush1.msra.mxu0 0.0
        %2353 = vmatprep.subr.mxu0 0.0
        %2354 = vmatpush1.msra.mxu0 0.0
        %2355 = vmatprep.subr.mxu0 0.0
        %2356 = vmatpush1.msra.mxu0 0.0
        %2357 = vmatprep.subr.mxu0 0.0
        %2358 = vmatpush1.msra.mxu0 0.0
        %2359 = vmatprep.subr.mxu0 0.0
        %2360 = vmatpush1.msra.mxu0 0.0
        %2361 = vmatprep.subr.mxu0 0.0
        %2362 = vmatpush1.msra.mxu0 0.0
        %2363 = vmatprep.subr.mxu0 0.0
        %2364 = vmatpush1.msra.mxu0 0.0
        %2365 = vmatprep.subr.mxu0 0.0
        %2366 = vmatpush1.msra.mxu0 0.0
        %2367 = vmatprep.subr.mxu0 0.0
        %2368 = vmatpush1.msra.mxu0 0.0
        %2369 = vmatprep.subr.mxu0 0.0
        %2370 = vmatpush1.msra.mxu0 0.0
        %2371 = vmatprep.subr.mxu0 0.0
        %2372 = vmatpush1.msra.mxu0 0.0
        %2373 = vmatprep.subr.mxu0 0.0
        %2374 = vmatpush1.msra.mxu0 0.0
        %2375 = vmatprep.subr.mxu0 0.0
        %2376 = vmatpush1.msra.mxu0 0.0
        %2377 = vmatprep.subr.mxu0 0.0
        %2378 = vmatpush1.msra.mxu0 0.0
        %2379 = vmatprep.mubr.f32.mxu0 0.0
        %2380 = vmatmul.mubr.f32.gmra.mrb[0].mxu0 %v2123
        %v2381 = vpop.f32.mrb[0].mxu0
        %v2382 = vadd.f32 0.0, %v2381
        %v2383 = vpop.f32.mrb[0].mxu0
        %2384 = vdwg.mxu0
        %v2385 = vadd.f32 %v2295, %v2382
        %s2386 = scalar_lea.vmem %s7, 384
        %v2387 = vld [vmem:[%s2386] sm:$0xff]
        %v2388 = vld [vmem:[%s2386 + $0x8] sm:$0xff]
        %v2389 = vld [vmem:[%s2386 + $0x10] sm:$0xff]
        %v2390 = vld [vmem:[%s2386 + $0x18] sm:$0xff]
        %v2391 = vld [vmem:[%s2386 + $0x20] sm:$0xff]
        %v2392 = vld [vmem:[%s2386 + $0x28] sm:$0xff]
        %v2393 = vld [vmem:[%s2386 + $0x30] sm:$0xff]
        %v2394 = vld [vmem:[%s2386 + $0x38] sm:$0xff]
        %v2395 = vld [vmem:[%s2386 + $0x40] sm:$0xff]
        %v2396 = vld [vmem:[%s2386 + $0x48] sm:$0xff]
        %v2397 = vld [vmem:[%s2386 + $0x50] sm:$0xff]
        %v2398 = vld [vmem:[%s2386 + $0x58] sm:$0xff]
        %v2399 = vld [vmem:[%s2386 + $0x60] sm:$0xff]
        %v2400 = vld [vmem:[%s2386 + $0x68] sm:$0xff]
        %v2401 = vld [vmem:[%s2386 + $0x70] sm:$0xff]
        %v2402 = vld [vmem:[%s2386 + $0x78] sm:$0xff]
        %2403 = vmatprep.subr.mxu0 0.0
        %2404 = vmatpush1.msra.mxu0 %v2387
        %2405 = vmatprep.subr.mxu0 0.0
        %2406 = vmatpush1.msra.mxu0 %v2388
        %2407 = vmatprep.subr.mxu0 0.0
        %2408 = vmatpush1.msra.mxu0 %v2389
        %2409 = vmatprep.subr.mxu0 0.0
        %2410 = vmatpush1.msra.mxu0 %v2390
        %2411 = vmatprep.subr.mxu0 0.0
        %2412 = vmatpush1.msra.mxu0 %v2391
        %2413 = vmatprep.subr.mxu0 0.0
        %2414 = vmatpush1.msra.mxu0 %v2392
        %2415 = vmatprep.subr.mxu0 0.0
        %2416 = vmatpush1.msra.mxu0 %v2393
        %2417 = vmatprep.subr.mxu0 0.0
        %2418 = vmatpush1.msra.mxu0 %v2394
        %2419 = vmatprep.subr.mxu0 0.0
        %2420 = vmatpush1.msra.mxu0 %v2395
        %2421 = vmatprep.subr.mxu0 0.0
        %2422 = vmatpush1.msra.mxu0 %v2396
        %2423 = vmatprep.subr.mxu0 0.0
        %2424 = vmatpush1.msra.mxu0 %v2397
        %2425 = vmatprep.subr.mxu0 0.0
        %2426 = vmatpush1.msra.mxu0 %v2398
        %2427 = vmatprep.subr.mxu0 0.0
        %2428 = vmatpush1.msra.mxu0 %v2399
        %2429 = vmatprep.subr.mxu0 0.0
        %2430 = vmatpush1.msra.mxu0 %v2400
        %2431 = vmatprep.subr.mxu0 0.0
        %2432 = vmatpush1.msra.mxu0 %v2401
        %2433 = vmatprep.subr.mxu0 0.0
        %2434 = vmatpush1.msra.mxu0 %v2402
        %2435 = vmatprep.subr.mxu0 0.0
        %2436 = vmatpush1.msra.mxu0 0.0
        %2437 = vmatprep.subr.mxu0 0.0
        %2438 = vmatpush1.msra.mxu0 0.0
        %2439 = vmatprep.subr.mxu0 0.0
        %2440 = vmatpush1.msra.mxu0 0.0
        %2441 = vmatprep.subr.mxu0 0.0
        %2442 = vmatpush1.msra.mxu0 0.0
        %2443 = vmatprep.subr.mxu0 0.0
        %2444 = vmatpush1.msra.mxu0 0.0
        %2445 = vmatprep.subr.mxu0 0.0
        %2446 = vmatpush1.msra.mxu0 0.0
        %2447 = vmatprep.subr.mxu0 0.0
        %2448 = vmatpush1.msra.mxu0 0.0
        %2449 = vmatprep.subr.mxu0 0.0
        %2450 = vmatpush1.msra.mxu0 0.0
        %2451 = vmatprep.subr.mxu0 0.0
        %2452 = vmatpush1.msra.mxu0 0.0
        %2453 = vmatprep.subr.mxu0 0.0
        %2454 = vmatpush1.msra.mxu0 0.0
        %2455 = vmatprep.subr.mxu0 0.0
        %2456 = vmatpush1.msra.mxu0 0.0
        %2457 = vmatprep.subr.mxu0 0.0
        %2458 = vmatpush1.msra.mxu0 0.0
        %2459 = vmatprep.subr.mxu0 0.0
        %2460 = vmatpush1.msra.mxu0 0.0
        %2461 = vmatprep.subr.mxu0 0.0
        %2462 = vmatpush1.msra.mxu0 0.0
        %2463 = vmatprep.subr.mxu0 0.0
        %2464 = vmatpush1.msra.mxu0 0.0
        %2465 = vmatprep.subr.mxu0 0.0
        %2466 = vmatpush1.msra.mxu0 0.0
        %2467 = vmatprep.mubr.f32.mxu0 0.0
        %2468 = vmatmul.mubr.f32.gmra.mrb[0].mxu0 %v2124
        %v2469 = vpop.f32.mrb[0].mxu0
        %v2470 = vadd.f32 0.0, %v2469
        %v2471 = vpop.f32.mrb[0].mxu0
        %2472 = vdwg.mxu0
        %v2473 = vadd.f32 %v2385, %v2470
        %v2474 = vld [vmem:[%s8] sm:$0x1]
        %v2476 = vlaneseq
        %v2477 = vshrl.u32 %v2476, 7
        %v2478 = vsub.s32 0, %v2477
        %v2479 = vrot.slane %v2474, %v2478
        %v2481 = vadd.f32 %v2473, %v2479
        %v2482 = vmax.f32 %v2481, 0.0
        %v2483 = vld [vmem:[%s9] sm:$0xff]
        %v2484 = vld [vmem:[%s9 + $0x8] sm:$0xff]
        %v2485 = vld [vmem:[%s9 + $0x10] sm:$0xff]
        %v2486 = vld [vmem:[%s9 + $0x18] sm:$0xff]
        %v2487 = vld [vmem:[%s9 + $0x20] sm:$0xff]
        %v2488 = vld [vmem:[%s9 + $0x28] sm:$0xff]
        %v2489 = vld [vmem:[%s9 + $0x30] sm:$0xff]
        %v2490 = vld [vmem:[%s9 + $0x38] sm:$0xff]
        %v2491 = vld [vmem:[%s9 + $0x40] sm:$0xff]
        %v2492 = vld [vmem:[%s9 + $0x48] sm:$0xff]
        %v2493 = vld [vmem:[%s9 + $0x50] sm:$0xff]
        %v2494 = vld [vmem:[%s9 + $0x58] sm:$0xff]
        %v2495 = vld [vmem:[%s9 + $0x60] sm:$0xff]
        %v2496 = vld [vmem:[%s9 + $0x68] sm:$0xff]
        %v2497 = vld [vmem:[%s9 + $0x70] sm:$0xff]
        %v2498 = vld [vmem:[%s9 + $0x78] sm:$0xff]
        %v2499 = vld [vmem:[%s10] sm:$0x1]
        %v2501 = vlaneseq
        %v2502 = vshrl.u32 %v2501, 7
        %v2503 = vsub.s32 0, %v2502
        %v2504 = vrot.slane %v2499, %v2503
        %2506 = vmatprep.subr.mxu0 0.0
        %2507 = vmatpush1.msra.mxu0 %v2483
        %2508 = vmatprep.subr.mxu0 0.0
        %2509 = vmatpush1.msra.mxu0 %v2484
        %2510 = vmatprep.subr.mxu0 0.0
        %2511 = vmatpush1.msra.mxu0 %v2485
        %2512 = vmatprep.subr.mxu0 0.0
        %2513 = vmatpush1.msra.mxu0 %v2486
        %2514 = vmatprep.subr.mxu0 0.0
        %2515 = vmatpush1.msra.mxu0 %v2487
        %2516 = vmatprep.subr.mxu0 0.0
        %2517 = vmatpush1.msra.mxu0 %v2488
        %2518 = vmatprep.subr.mxu0 0.0
        %2519 = vmatpush1.msra.mxu0 %v2489
        %2520 = vmatprep.subr.mxu0 0.0
        %2521 = vmatpush1.msra.mxu0 %v2490
        %2522 = vmatprep.subr.mxu0 0.0
        %2523 = vmatpush1.msra.mxu0 %v2491
        %2524 = vmatprep.subr.mxu0 0.0
        %2525 = vmatpush1.msra.mxu0 %v2492
        %2526 = vmatprep.subr.mxu0 0.0
        %2527 = vmatpush1.msra.mxu0 %v2493
        %2528 = vmatprep.subr.mxu0 0.0
        %2529 = vmatpush1.msra.mxu0 %v2494
        %2530 = vmatprep.subr.mxu0 0.0
        %2531 = vmatpush1.msra.mxu0 %v2495
        %2532 = vmatprep.subr.mxu0 0.0
        %2533 = vmatpush1.msra.mxu0 %v2496
        %2534 = vmatprep.subr.mxu0 0.0
        %2535 = vmatpush1.msra.mxu0 %v2497
        %2536 = vmatprep.subr.mxu0 0.0
        %2537 = vmatpush1.msra.mxu0 %v2498
        %2538 = vmatprep.subr.mxu0 0.0
        %2539 = vmatpush1.msra.mxu0 0.0
        %2540 = vmatprep.subr.mxu0 0.0
        %2541 = vmatpush1.msra.mxu0 0.0
        %2542 = vmatprep.subr.mxu0 0.0
        %2543 = vmatpush1.msra.mxu0 0.0
        %2544 = vmatprep.subr.mxu0 0.0
        %2545 = vmatpush1.msra.mxu0 0.0
        %2546 = vmatprep.subr.mxu0 0.0
        %2547 = vmatpush1.msra.mxu0 0.0
        %2548 = vmatprep.subr.mxu0 0.0
        %2549 = vmatpush1.msra.mxu0 0.0
        %2550 = vmatprep.subr.mxu0 0.0
        %2551 = vmatpush1.msra.mxu0 0.0
        %2552 = vmatprep.subr.mxu0 0.0
        %2553 = vmatpush1.msra.mxu0 0.0
        %2554 = vmatprep.subr.mxu0 0.0
        %2555 = vmatpush1.msra.mxu0 0.0
        %2556 = vmatprep.subr.mxu0 0.0
        %2557 = vmatpush1.msra.mxu0 0.0
        %2558 = vmatprep.subr.mxu0 0.0
        %2559 = vmatpush1.msra.mxu0 0.0
        %2560 = vmatprep.subr.mxu0 0.0
        %2561 = vmatpush1.msra.mxu0 0.0
        %2562 = vmatprep.subr.mxu0 0.0
        %2563 = vmatpush1.msra.mxu0 0.0
        %2564 = vmatprep.subr.mxu0 0.0
        %2565 = vmatpush1.msra.mxu0 0.0
        %2566 = vmatprep.subr.mxu0 0.0
        %2567 = vmatpush1.msra.mxu0 0.0
        %2568 = vmatprep.subr.mxu0 0.0
        %2569 = vmatpush1.msra.mxu0 0.0
        %2570 = vmatprep.mubr.f32.mxu0 0.0
        %2571 = vmatmul.mubr.f32.gmra.mrb[0].mxu0 %v2482
        %v2572 = vpop.f32.mrb[0].mxu0
        %v2573 = vadd.f32 %v2504, %v2572
        %v2574 = vpop.f32.mrb[0].mxu0
        %2575 = vdwg.mxu0
        %v2576 = vlaneseq
        %v2577 = vand.u32 %v2576, 127
        %vm2578 = vcmp.lt.s32.totalorder %v2577, 10
        %v2579 = vsel %vm2578, %v2573, -1e+30
        %2580 = vmax.xlane.f32.xlu0 %v2579
        %v2581 = vpop.xlane.xlu0 %2580
        %v2582 = vsub.f32 %v2573, %v2581
        %v2583 = vmul.f32 %v2582, 1.442695
        %v2584 = vpow.pop %v2583
        %v2585 = vsel %vm2578, %v2584, 0.0
        %2586 = vadd.xlane.f32.xlu0 %v2585
        %v2587 = vpop.xlane.xlu0 %2586
        %v2588 = vlog2.pop %v2587
        %v2589 = vmul.f32 %v2588, 0.6931472
        %v2590 = vsub.f32 %v2582, %v2589
        %2591 = vst [vmem:[%s498] sm:$0xff] %v2590
        %p2592 = scmp.lt.s32.totalorder %s22, 1
        %s2593 = scalar_select %p2592, %s22, 1
        %s2594 = smul.addr %s2593, 8
        %s2595 = scalar_lea.vmem %s11, %s2594
        // Predicated region
        $region88: #{net_forward.1} parent=82 // pred_check
          %p2596 = pneg %p276
        $region89: #{net_forward.1} parent=82 // pred_check_branch
          %2598 = sbr.rel (%p2596) target = $region91
        $region90: #{net_forward.1} parent=82 // pred_region
          _
        $region91: #{net_forward.1} parent=82 // pred_fallthru
          _
      $region83: #{net_forward.1} parent=5 // pred_fallthru
        _
      %p2599 = scmp.le.s32.totalorder 2, %s17
      // Predicated region
      $region92: #{net_forward.1} parent=5 // pred_check
        %p2600 = pneg %p2599
      $region93: #{net_forward.1} parent=5 // pred_check_branch
        %2602 = sbr.rel (%p2600) target = $region95
      $region94: #{net_forward.1} parent=5 // pred_region
        %s2603 = ssub.s32 %s17, 2
        // Predicated region
        $region96: #{net_forward.1} parent=94 // pred_check
          %p2604 = pneg %p282
        $region97: #{net_forward.1} parent=94 // pred_check_branch
          %2606 = sbr.rel (%p2604) target = $region99
        $region98: #{net_forward.1} parent=94 // pred_region
          %p2607 = scmp.lt.s32.totalorder %s23, 1
          %s2608 = scalar_select %p2607, %s23, 1
          %s2609 = smul.addr %s2608, 8
          %s2610 = scalar_lea.vmem %s11, %s2609
        $region99: #{net_forward.1} parent=94 // pred_fallthru
          _
      $region95: #{net_forward.1} parent=5 // pred_fallthru
        _
    $region6: #{net_forward.1} parent=1 // loop_footer
      %s21 = sadd.s32 1, %s17
    $region7: #{net_forward.1} parent=1 // loop_footer_branch
      %16 = sbr.rel target = $region3
    $region8: #{net_forward.1} parent=1 // loop_exit
      _

</llo_original>
